<compile_context>
chip_gen: v7x
topology: tpu7x:2x2x1
jax: 0.10.0
libtpu: 0.0.40
codegen_flags: <defaults>
</compile_context>

<pallas_src>
import numpy as np
import jax
import jax.numpy as jnp
from jax.experimental import pallas as pl
from jax.experimental.pallas import tpu as pltpu


# --------------------------------------------------------------------------
# Fused kernel
# --------------------------------------------------------------------------
def _make_fused_mlp_kernel(num_layers, omega, outermost_linear):
    """Build kernel(xT_ref, w0, b0, ..., w{L-1}, b{L-1}, oT_ref).

    xT_ref : (in_features, tm)   activations, batch on the lane axis
    w_i    : (out_i, in_i)       PyTorch Linear layout, full block (VMEM resident)
    b_i    : (out_i, 1)          broadcasts along lanes
    oT_ref : (out_features, tm)
    """

    def kernel(*refs):
        x_ref = refs[0]
        o_ref = refs[-1]
        wb_refs = refs[1:-1]

        h = x_ref[...].astype(jnp.float32)                       # (in, tm)
        for li in range(num_layers):
            w = wb_refs[2 * li][...]                             # (out_i, in_i)
            b = wb_refs[2 * li + 1][...]                         # (out_i, 1)
            # y^T = W @ h  -> (out_i, tm); f32-accurate MXU accumulation.
            y = jnp.dot(w, h,
                        preferred_element_type=jnp.float32,
                        precision=jax.lax.Precision.HIGHEST)
            y = y + b                                            # lane broadcast
            if (li != num_layers - 1) or (not outermost_linear):
                y = jnp.sin(omega * y)                           # Sine activation
            h = y
        o_ref[...] = h.astype(o_ref.dtype)

    return kernel


def _choose_tm(M, tm_max=2048):
    """Lane-dense batch tile: multiple of 128, large (amortizes per-step
    overhead), but with >= 2 grid steps when the batch allows (megacore)."""
    m128 = ((M + 127) // 128) * 128
    tm = min(tm_max, m128)
    if (m128 // tm) < 2 and m128 >= 256:
        tm = max(128, ((m128 // 2) // 128) * 128)
    return tm


def fc_block_forward(x, params, *, omega, outermost_linear=True, tm_max=2048):
    """Fused FCBlock forward.

    x      : (M, in_features) f32
    params : list of (W (out_i, in_i), b (out_i, 1)) f32 arrays
    returns: (M, out_features) f32
    """
    M, in_features = x.shape
    out_features = params[-1][0].shape[0]
    num_layers = len(params)

    tm = _choose_tm(M, tm_max)
    M_pad = ((M + tm - 1) // tm) * tm

    # Transposed, padded activation slab (layout plumbing done by XLA outside
    # the kernel); padded columns are sliced off afterwards.
    xT = jnp.zeros((in_features, M_pad), x.dtype)
    xT = xT.at[:, :M].set(x.T)

    in_specs = [pl.BlockSpec((in_features, tm), lambda i: (0, i))]
    flat_params = []
    for (w, b) in params:
        in_specs.append(pl.BlockSpec(w.shape, lambda i: (0, 0)))  # VMEM-resident
        in_specs.append(pl.BlockSpec(b.shape, lambda i: (0, 0)))
        flat_params.extend((w, b))

    kernel = _make_fused_mlp_kernel(num_layers, omega, outermost_linear)

    outT = pl.pallas_call(
        kernel,
        out_shape=jax.ShapeDtypeStruct((out_features, M_pad), jnp.float32),
        grid=(M_pad // tm,),
        in_specs=in_specs,
        out_specs=pl.BlockSpec((out_features, tm), lambda i: (0, i)),
        compiler_params=pltpu.CompilerParams(
            dimension_semantics=("parallel",)),
    )(xT, *flat_params)

    return outT[:, :M].T


# --------------------------------------------------------------------------
# Parameter init (mirrors torch.nn.Linear default init) and float64 reference
# --------------------------------------------------------------------------
def init_fc_block_params(key, in_features, out_features, num_hidden_layers,
                         hidden_features):
    """U(-1/sqrt(fan_in), 1/sqrt(fan_in)) for both weight and bias.
    Weights stored PyTorch-style as (out, in); biases as (out, 1)."""
    dims = [in_features] + [hidden_features] * (num_hidden_layers + 1) + [out_features]
    params = []
    for fan_in, fan_out in zip(dims[:-1], dims[1:]):
        key, kw, kb = jax.random.split(key, 3)
        bound = 1.0 / float(np.sqrt(fan_in))
        w = jax.random.uniform(kw, (fan_out, fan_in), jnp.float32, -bound, bound)
        b = jax.random.uniform(kb, (fan_out, 1), jnp.float32, -bound, bound)
        params.append((w, b))
    return params


def fc_block_reference_np(x, params, *, omega, outermost_linear=True):
    """Float64 numpy ground truth (row-major, matches the PyTorch module)."""
    h = np.asarray(x, dtype=np.float64)
    n_layers = len(params)
    for li, (w, b) in enumerate(params):
        w64 = np.asarray(w, dtype=np.float64)
        b64 = np.asarray(b, dtype=np.float64)[:, 0]
        h = h @ w64.T + b64
        if (li != n_layers - 1) or (not outermost_linear):
            h = np.sin(omega * h)
    return h


# --------------------------------------------------------------------------
if __name__ == "__main__":
    # Small SIREN-like config: coords (x, y) -> 1 output channel.
    in_features = 2
    out_features = 1
    num_hidden_layers = 2
    hidden_features = 32
    omega = 30.0
    batch = 256  # flattened coordinate points

    key = jax.random.PRNGKey(0)
    key_x, key_p = jax.random.split(key)
    x = jax.random.uniform(key_x, (batch, in_features), jnp.float32, -1.0, 1.0)
    params = init_fc_block_params(key_p, in_features, out_features,
                                  num_hidden_layers, hidden_features)

    out = fc_block_forward(x, params, omega=omega, outermost_linear=True)
    out = jax.block_until_ready(out)
    assert out.shape == (batch, out_features), out.shape

    # Float64 ground truth.  Tolerance sized for f32 arithmetic amplified by
    # three sin(30 * .) layers (~2e-4 typical error); real semantic bugs give
    # errors on the order of the output scale (~0.4), two orders above this.
    ref = fc_block_reference_np(x, params, omega=omega, outermost_linear=True)
    err = float(np.max(np.abs(np.asarray(out, dtype=np.float64) - ref)))
    assert err < 5e-3, f"mismatch vs float64 reference: max abs err {err:.3e}"

    print("KERNEL_OK")
</pallas_src>

<mosaic_0001>
module attributes {stable_mosaic.version = 11 : i64} {
  func.func @kernel(%arg0: i32, %arg1: memref<2x128xf32, #tpu.memory_space<vmem>>, %arg2: memref<32x2xf32, #tpu.memory_space<vmem>>, %arg3: memref<32x1xf32, #tpu.memory_space<vmem>>, %arg4: memref<32x32xf32, #tpu.memory_space<vmem>>, %arg5: memref<32x1xf32, #tpu.memory_space<vmem>>, %arg6: memref<32x32xf32, #tpu.memory_space<vmem>>, %arg7: memref<32x1xf32, #tpu.memory_space<vmem>>, %arg8: memref<1x32xf32, #tpu.memory_space<vmem>>, %arg9: memref<1x1xf32, #tpu.memory_space<vmem>>, %arg10: memref<1x128xf32, #tpu.memory_space<vmem>>) attributes {dimension_semantics = [#tpu.dimension_semantics<parallel>], iteration_bounds = array<i64: 2>, scalar_prefetch = 0 : i64, scratch_operands = 0 : i64, tpu.core_type = #tpu.core_type<tc>, window_params = [{transform_indices = @transform_0, window_bounds = array<i64: 2, 128>}, {pipeline_mode = #tpu.pipeline_mode<synchronous>, transform_indices = @transform_1, window_bounds = array<i64: 32, 2>}, {pipeline_mode = #tpu.pipeline_mode<synchronous>, transform_indices = @transform_2, window_bounds = array<i64: 32, 1>}, {pipeline_mode = #tpu.pipeline_mode<synchronous>, transform_indices = @transform_3, window_bounds = array<i64: 32, 32>}, {pipeline_mode = #tpu.pipeline_mode<synchronous>, transform_indices = @transform_4, window_bounds = array<i64: 32, 1>}, {pipeline_mode = #tpu.pipeline_mode<synchronous>, transform_indices = @transform_5, window_bounds = array<i64: 32, 32>}, {pipeline_mode = #tpu.pipeline_mode<synchronous>, transform_indices = @transform_6, window_bounds = array<i64: 32, 1>}, {pipeline_mode = #tpu.pipeline_mode<synchronous>, transform_indices = @transform_7, window_bounds = array<i64: 1, 32>}, {pipeline_mode = #tpu.pipeline_mode<synchronous>, transform_indices = @transform_8, window_bounds = array<i64: 1, 1>}, {transform_indices = @transform_9, window_bounds = array<i64: 1, 128>}]} {
    %c0 = arith.constant 0 : index
    %c0_0 = arith.constant 0 : index
    %0 = vector.load %arg1[%c0, %c0_0] : memref<2x128xf32, #tpu.memory_space<vmem>>, vector<2x128xf32>
    %c0_1 = arith.constant 0 : index
    %c0_2 = arith.constant 0 : index
    %1 = vector.load %arg2[%c0_1, %c0_2] : memref<32x2xf32, #tpu.memory_space<vmem>>, vector<32x2xf32>
    %c0_3 = arith.constant 0 : index
    %c0_4 = arith.constant 0 : index
    %2 = vector.load %arg3[%c0_3, %c0_4] : memref<32x1xf32, #tpu.memory_space<vmem>>, vector<32x1xf32>
    %cst = arith.constant dense<0.000000e+00> : vector<32x128xf32>
    %3 = tpu.matmul %1, %0, %cst {dimension_numbers = #tpu.dot_dimension_numbers<[1], [0], [0], [1], [0, 0, 1, 1], [], []>, precision = #tpu.contract_precision<fp32>} : vector<32x2xf32>, vector<2x128xf32>, vector<32x128xf32> -> vector<32x128xf32>
    %4 = vector.broadcast %2 : vector<32x1xf32> to vector<32x128xf32>
    %5 = arith.addf %3, %4 : vector<32x128xf32>
    %cst_5 = arith.constant 3.000000e+01 : f32
    %6 = vector.broadcast %cst_5 : f32 to vector<32x128xf32>
    %7 = arith.mulf %6, %5 : vector<32x128xf32>
    %8 = math.sin %7 : vector<32x128xf32>
    %c0_6 = arith.constant 0 : index
    %c0_7 = arith.constant 0 : index
    %9 = vector.load %arg4[%c0_6, %c0_7] : memref<32x32xf32, #tpu.memory_space<vmem>>, vector<32x32xf32>
    %c0_8 = arith.constant 0 : index
    %c0_9 = arith.constant 0 : index
    %10 = vector.load %arg5[%c0_8, %c0_9] : memref<32x1xf32, #tpu.memory_space<vmem>>, vector<32x1xf32>
    %cst_10 = arith.constant dense<0.000000e+00> : vector<32x128xf32>
    %11 = tpu.matmul %9, %8, %cst_10 {dimension_numbers = #tpu.dot_dimension_numbers<[1], [0], [0], [1], [0, 0, 1, 1], [], []>, precision = #tpu.contract_precision<fp32>} : vector<32x32xf32>, vector<32x128xf32>, vector<32x128xf32> -> vector<32x128xf32>
    %12 = vector.broadcast %10 : vector<32x1xf32> to vector<32x128xf32>
    %13 = arith.addf %11, %12 : vector<32x128xf32>
    %cst_11 = arith.constant 3.000000e+01 : f32
    %14 = vector.broadcast %cst_11 : f32 to vector<32x128xf32>
    %15 = arith.mulf %14, %13 : vector<32x128xf32>
    %16 = math.sin %15 : vector<32x128xf32>
    %c0_12 = arith.constant 0 : index
    %c0_13 = arith.constant 0 : index
    %17 = vector.load %arg6[%c0_12, %c0_13] : memref<32x32xf32, #tpu.memory_space<vmem>>, vector<32x32xf32>
    %c0_14 = arith.constant 0 : index
    %c0_15 = arith.constant 0 : index
    %18 = vector.load %arg7[%c0_14, %c0_15] : memref<32x1xf32, #tpu.memory_space<vmem>>, vector<32x1xf32>
    %cst_16 = arith.constant dense<0.000000e+00> : vector<32x128xf32>
    %19 = tpu.matmul %17, %16, %cst_16 {dimension_numbers = #tpu.dot_dimension_numbers<[1], [0], [0], [1], [0, 0, 1, 1], [], []>, precision = #tpu.contract_precision<fp32>} : vector<32x32xf32>, vector<32x128xf32>, vector<32x128xf32> -> vector<32x128xf32>
    %20 = vector.broadcast %18 : vector<32x1xf32> to vector<32x128xf32>
    %21 = arith.addf %19, %20 : vector<32x128xf32>
    %cst_17 = arith.constant 3.000000e+01 : f32
    %22 = vector.broadcast %cst_17 : f32 to vector<32x128xf32>
    %23 = arith.mulf %22, %21 : vector<32x128xf32>
    %24 = math.sin %23 : vector<32x128xf32>
    %c0_18 = arith.constant 0 : index
    %c0_19 = arith.constant 0 : index
    %25 = vector.load %arg8[%c0_18, %c0_19] : memref<1x32xf32, #tpu.memory_space<vmem>>, vector<1x32xf32>
    %c0_20 = arith.constant 0 : index
    %c0_21 = arith.constant 0 : index
    %26 = vector.load %arg9[%c0_20, %c0_21] : memref<1x1xf32, #tpu.memory_space<vmem>>, vector<1x1xf32>
    %cst_22 = arith.constant dense<0.000000e+00> : vector<1x128xf32>
    %27 = tpu.matmul %25, %24, %cst_22 {dimension_numbers = #tpu.dot_dimension_numbers<[1], [0], [0], [1], [0, 0, 1, 1], [], []>, precision = #tpu.contract_precision<fp32>} : vector<1x32xf32>, vector<32x128xf32>, vector<1x128xf32> -> vector<1x128xf32>
    %28 = vector.broadcast %26 : vector<1x1xf32> to vector<1x128xf32>
    %29 = arith.addf %27, %28 : vector<1x128xf32>
    %c0_23 = arith.constant 0 : index
    %c0_24 = arith.constant 0 : index
    %30 = vector.load %arg10[%c0_23, %c0_24] : memref<1x128xf32, #tpu.memory_space<vmem>>, vector<1x128xf32>
    tpu.vector_store %arg10[%c0_23, %c0_24], %29 {strides = array<i32>} : memref<1x128xf32, #tpu.memory_space<vmem>>, vector<1x128xf32>,
    return
  }
  func.func @transform_0(%arg0: i32) -> (i32, i32) {
    %c0_i32 = arith.constant 0 : i32
    %c0_i32_0 = arith.constant 0 : i32
    return %c0_i32, %arg0 : i32, i32
  }
  func.func @transform_1(%arg0: i32) -> (i32, i32) {
    %c0_i32 = arith.constant 0 : i32
    %c0_i32_0 = arith.constant 0 : i32
    %c0_i32_1 = arith.constant 0 : i32
    return %c0_i32, %c0_i32_0 : i32, i32
  }
  func.func @transform_2(%arg0: i32) -> (i32, i32) {
    %c0_i32 = arith.constant 0 : i32
    %c0_i32_0 = arith.constant 0 : i32
    %c0_i32_1 = arith.constant 0 : i32
    return %c0_i32, %c0_i32_0 : i32, i32
  }
  func.func @transform_3(%arg0: i32) -> (i32, i32) {
    %c0_i32 = arith.constant 0 : i32
    %c0_i32_0 = arith.constant 0 : i32
    %c0_i32_1 = arith.constant 0 : i32
    return %c0_i32, %c0_i32_0 : i32, i32
  }
  func.func @transform_4(%arg0: i32) -> (i32, i32) {
    %c0_i32 = arith.constant 0 : i32
    %c0_i32_0 = arith.constant 0 : i32
    %c0_i32_1 = arith.constant 0 : i32
    return %c0_i32, %c0_i32_0 : i32, i32
  }
  func.func @transform_5(%arg0: i32) -> (i32, i32) {
    %c0_i32 = arith.constant 0 : i32
    %c0_i32_0 = arith.constant 0 : i32
    %c0_i32_1 = arith.constant 0 : i32
    return %c0_i32, %c0_i32_0 : i32, i32
  }
  func.func @transform_6(%arg0: i32) -> (i32, i32) {
    %c0_i32 = arith.constant 0 : i32
    %c0_i32_0 = arith.constant 0 : i32
    %c0_i32_1 = arith.constant 0 : i32
    return %c0_i32, %c0_i32_0 : i32, i32
  }
  func.func @transform_7(%arg0: i32) -> (i32, i32) {
    %c0_i32 = arith.constant 0 : i32
    %c0_i32_0 = arith.constant 0 : i32
    %c0_i32_1 = arith.constant 0 : i32
    return %c0_i32, %c0_i32_0 : i32, i32
  }
  func.func @transform_8(%arg0: i32) -> (i32, i32) {
    %c0_i32 = arith.constant 0 : i32
    %c0_i32_0 = arith.constant 0 : i32
    %c0_i32_1 = arith.constant 0 : i32
    return %c0_i32, %c0_i32_0 : i32, i32
  }
  func.func @transform_9(%arg0: i32) -> (i32, i32) {
    %c0_i32 = arith.constant 0 : i32
    %c0_i32_0 = arith.constant 0 : i32
    return %c0_i32, %arg0 : i32, i32
  }
}

</mosaic_0001>

<llo_original>
// kernel: tpu_custom_call.1
$region0: #{tpu_custom_call.1}
  #allocation0 [shape = 'u32[]', space=smem, size = 0x4, offset = 0x4, fixed_abs, tag = 'smem constant byte address 0x4 - core index']
  #allocation1 [shape = 'u32[144,128]{1,0:T(1,128)}', space=vmem, size = 0x12000, scoped, tag = 'internal scratch']
  #allocation2 [shape = 'f32[1,1]{1,0:T(1,128)S(1)}', space=vmem, size = 0x200, scoped, tag = 'scoped memory for tpu_custom_call.1']
  %s0 = inlined_call_operand.vmem [shape: f32[2,256], index: 0, kind: input, shape index: {}]
  %s1 = inlined_call_operand.vmem [shape: f32[32,2], index: 1, kind: input, shape index: {}]
  %s2 = inlined_call_operand.vmem [shape: f32[32,1], index: 2, kind: input, shape index: {}]
  %s3 = inlined_call_operand.vmem [shape: f32[32,32], index: 3, kind: input, shape index: {}]
  %s4 = inlined_call_operand.vmem [shape: f32[32,1], index: 4, kind: input, shape index: {}]
  %s5 = inlined_call_operand.vmem [shape: f32[32,32], index: 5, kind: input, shape index: {}]
  %s6 = inlined_call_operand.vmem [shape: f32[32,1], index: 6, kind: input, shape index: {}]
  %s7 = inlined_call_operand.vmem [shape: f32[1,32], index: 7, kind: input, shape index: {}]
  %s8 = inlined_call_operand.<no memory space> [shape: f32[1,1], index: 8, kind: input, shape index: {}]
  %s9 = inlined_call_operand.hbm [shape: f32[1,256], index: 9, kind: output, shape index: {}]
  %s10 = sld [smem:[#allocation0]]
  $region69: #{tpu_custom_call.1} parent=0
    _
  %s12 = ssub.s32 1, %s10
  %s13 = scalar_select 0, %s12, %s10
  %v14 = vstv %s8
  %15 = vst [vmem:[#allocation2] sm:$0x1] %v14
  $region1: #{tpu_custom_call.1} parent=0
    #allocation3 [shape = 'u8[1024]{0}', space=vmem, size = 0x400, scoped, tag = 'output window, operand 0']
    #allocation4 [shape = 's32[2]{0}', space=sflag, size = 0x8, scoped, tag = 'scoped memory for tpu_custom_call.1']
    %16 = vsyncpa [#allocation4], 0
    %s17 = scalar_lea.sflag [#allocation4], 1
    %18 = vsyncpa %s17, 0
    loop: start=0, step=1, limit=4
    $region2: #{tpu_custom_call.1} parent=1 // loop_pre_header
      _
    $region3: #{tpu_custom_call.1} parent=1 // loop_header
      %s20 = sphi 0, %s24
      %p21 = scmp.ge.s32.totalorder %s20, 4
      %s30 = sphi 0, %s32
      %s33 = sphi 0, %s30
      %s34 = sphi 0, %s33
      %s50 = sphi 0, %s34
      %s54 = sphi 0, %s54
      %s56 = sphi 0, %s54
      %s57 = sphi 0, %s56
      %s71 = sphi 0, %s57
      %s75 = sphi 0, %s75
      %s77 = sphi 0, %s75
      %s78 = sphi 0, %s77
      %s92 = sphi 0, %s78
      %s96 = sphi 0, %s96
      %s98 = sphi 0, %s96
      %s99 = sphi 0, %s98
      %s113 = sphi 0, %s99
      %s117 = sphi 0, %s117
      %s119 = sphi 0, %s117
      %s120 = sphi 0, %s119
      %s134 = sphi 0, %s120
      %s138 = sphi 0, %s138
      %s140 = sphi 0, %s138
      %s141 = sphi 0, %s140
      %s155 = sphi 0, %s141
      %s159 = sphi 0, %s159
      %s161 = sphi 0, %s159
      %s162 = sphi 0, %s161
      %s176 = sphi 0, %s162
      %s180 = sphi 0, %s180
      %s182 = sphi 0, %s180
      %s183 = sphi 0, %s182
      %s197 = sphi 0, %s183
      %s201 = sphi 0, %s201
      %s203 = sphi 0, %s201
      %s204 = sphi 0, %s203
      %s218 = sphi 0, %s204
      %s224 = sphi 0, %s226
      %s227 = sphi 0, %s224
      %s228 = sphi 0, %s227
      %s244 = sphi 0, %s228
    $region4: #{tpu_custom_call.1} parent=1 // loop_header_branch
      %23 = sbr.rel (%p21) target = $region8
    $region5: #{tpu_custom_call.1} parent=1 // loop_body
      %s25 = ssub.s32 %s20, 1
      %s26 = ssub.s32 %s20, 2
      %s27 = sadd.s32 %s20, 1
      %s28 = ssub.s32 %s20, %s27
      %p29 = scmp.eq.s32.totalorder %s28, 0
      %s31 = sadd.s32 %s30, 1
      %s32 = scalar_select %p29, %s30, %s31
      %p35 = pneg %p29
      %p36 = scmp.eq.s32.totalorder %s20, 1
      %p37 = por %p35, %p36
      %p38 = scmp.ne.s32.totalorder %s30, %s33
      %p39 = scmp.eq.s32.totalorder %s20, 0
      %p40 = por %p38, %p39
      %p41 = scmp.ne.s32.totalorder %s30, %s33
      %p42 = scmp.eq.s32.totalorder %s25, 1
      %p43 = por %p41, %p42
      %p44 = scmp.ne.s32.totalorder %s33, %s34
      %p45 = scmp.eq.s32.totalorder %s25, 0
      %p46 = por %p44, %p45
      %p47 = scmp.ne.s32.totalorder %s33, %s34
      %p48 = scmp.eq.s32.totalorder %s26, 1
      %p49 = por %p47, %p48
      %p51 = scmp.ne.s32.totalorder %s34, %s50
      %p52 = scmp.eq.s32.totalorder %s26, 0
      %p53 = por %p51, %p52
      %s55 = sadd.s32 %s54, 1
      %p58 = scmp.eq.s32.totalorder %s20, 1
      %p59 = scmp.ne.s32.totalorder %s54, %s56
      %p60 = scmp.eq.s32.totalorder %s20, 0
      %p61 = por %p59, %p60
      %p62 = scmp.ne.s32.totalorder %s54, %s56
      %p63 = scmp.eq.s32.totalorder %s25, 1
      %p64 = por %p62, %p63
      %p65 = scmp.ne.s32.totalorder %s56, %s57
      %p66 = scmp.eq.s32.totalorder %s25, 0
      %p67 = por %p65, %p66
      %p68 = scmp.ne.s32.totalorder %s56, %s57
      %p69 = scmp.eq.s32.totalorder %s26, 1
      %p70 = por %p68, %p69
      %p72 = scmp.ne.s32.totalorder %s57, %s71
      %p73 = scmp.eq.s32.totalorder %s26, 0
      %p74 = por %p72, %p73
      %s76 = sadd.s32 %s75, 1
      %p79 = scmp.eq.s32.totalorder %s20, 1
      %p80 = scmp.ne.s32.totalorder %s75, %s77
      %p81 = scmp.eq.s32.totalorder %s20, 0
      %p82 = por %p80, %p81
      %p83 = scmp.ne.s32.totalorder %s75, %s77
      %p84 = scmp.eq.s32.totalorder %s25, 1
      %p85 = por %p83, %p84
      %p86 = scmp.ne.s32.totalorder %s77, %s78
      %p87 = scmp.eq.s32.totalorder %s25, 0
      %p88 = por %p86, %p87
      %p89 = scmp.ne.s32.totalorder %s77, %s78
      %p90 = scmp.eq.s32.totalorder %s26, 1
      %p91 = por %p89, %p90
      %p93 = scmp.ne.s32.totalorder %s78, %s92
      %p94 = scmp.eq.s32.totalorder %s26, 0
      %p95 = por %p93, %p94
      %s97 = sadd.s32 %s96, 1
      %p100 = scmp.eq.s32.totalorder %s20, 1
      %p101 = scmp.ne.s32.totalorder %s96, %s98
      %p102 = scmp.eq.s32.totalorder %s20, 0
      %p103 = por %p101, %p102
      %p104 = scmp.ne.s32.totalorder %s96, %s98
      %p105 = scmp.eq.s32.totalorder %s25, 1
      %p106 = por %p104, %p105
      %p107 = scmp.ne.s32.totalorder %s98, %s99
      %p108 = scmp.eq.s32.totalorder %s25, 0
      %p109 = por %p107, %p108
      %p110 = scmp.ne.s32.totalorder %s98, %s99
      %p111 = scmp.eq.s32.totalorder %s26, 1
      %p112 = por %p110, %p111
      %p114 = scmp.ne.s32.totalorder %s99, %s113
      %p115 = scmp.eq.s32.totalorder %s26, 0
      %p116 = por %p114, %p115
      %s118 = sadd.s32 %s117, 1
      %p121 = scmp.eq.s32.totalorder %s20, 1
      %p122 = scmp.ne.s32.totalorder %s117, %s119
      %p123 = scmp.eq.s32.totalorder %s20, 0
      %p124 = por %p122, %p123
      %p125 = scmp.ne.s32.totalorder %s117, %s119
      %p126 = scmp.eq.s32.totalorder %s25, 1
      %p127 = por %p125, %p126
      %p128 = scmp.ne.s32.totalorder %s119, %s120
      %p129 = scmp.eq.s32.totalorder %s25, 0
      %p130 = por %p128, %p129
      %p131 = scmp.ne.s32.totalorder %s119, %s120
      %p132 = scmp.eq.s32.totalorder %s26, 1
      %p133 = por %p131, %p132
      %p135 = scmp.ne.s32.totalorder %s120, %s134
      %p136 = scmp.eq.s32.totalorder %s26, 0
      %p137 = por %p135, %p136
      %s139 = sadd.s32 %s138, 1
      %p142 = scmp.eq.s32.totalorder %s20, 1
      %p143 = scmp.ne.s32.totalorder %s138, %s140
      %p144 = scmp.eq.s32.totalorder %s20, 0
      %p145 = por %p143, %p144
      %p146 = scmp.ne.s32.totalorder %s138, %s140
      %p147 = scmp.eq.s32.totalorder %s25, 1
      %p148 = por %p146, %p147
      %p149 = scmp.ne.s32.totalorder %s140, %s141
      %p150 = scmp.eq.s32.totalorder %s25, 0
      %p151 = por %p149, %p150
      %p152 = scmp.ne.s32.totalorder %s140, %s141
      %p153 = scmp.eq.s32.totalorder %s26, 1
      %p154 = por %p152, %p153
      %p156 = scmp.ne.s32.totalorder %s141, %s155
      %p157 = scmp.eq.s32.totalorder %s26, 0
      %p158 = por %p156, %p157
      %s160 = sadd.s32 %s159, 1
      %p163 = scmp.eq.s32.totalorder %s20, 1
      %p164 = scmp.ne.s32.totalorder %s159, %s161
      %p165 = scmp.eq.s32.totalorder %s20, 0
      %p166 = por %p164, %p165
      %p167 = scmp.ne.s32.totalorder %s159, %s161
      %p168 = scmp.eq.s32.totalorder %s25, 1
      %p169 = por %p167, %p168
      %p170 = scmp.ne.s32.totalorder %s161, %s162
      %p171 = scmp.eq.s32.totalorder %s25, 0
      %p172 = por %p170, %p171
      %p173 = scmp.ne.s32.totalorder %s161, %s162
      %p174 = scmp.eq.s32.totalorder %s26, 1
      %p175 = por %p173, %p174
      %p177 = scmp.ne.s32.totalorder %s162, %s176
      %p178 = scmp.eq.s32.totalorder %s26, 0
      %p179 = por %p177, %p178
      %s181 = sadd.s32 %s180, 1
      %p184 = scmp.eq.s32.totalorder %s20, 1
      %p185 = scmp.ne.s32.totalorder %s180, %s182
      %p186 = scmp.eq.s32.totalorder %s20, 0
      %p187 = por %p185, %p186
      %p188 = scmp.ne.s32.totalorder %s180, %s182
      %p189 = scmp.eq.s32.totalorder %s25, 1
      %p190 = por %p188, %p189
      %p191 = scmp.ne.s32.totalorder %s182, %s183
      %p192 = scmp.eq.s32.totalorder %s25, 0
      %p193 = por %p191, %p192
      %p194 = scmp.ne.s32.totalorder %s182, %s183
      %p195 = scmp.eq.s32.totalorder %s26, 1
      %p196 = por %p194, %p195
      %p198 = scmp.ne.s32.totalorder %s183, %s197
      %p199 = scmp.eq.s32.totalorder %s26, 0
      %p200 = por %p198, %p199
      %s202 = sadd.s32 %s201, 1
      %p205 = scmp.eq.s32.totalorder %s20, 1
      %p206 = scmp.ne.s32.totalorder %s201, %s203
      %p207 = scmp.eq.s32.totalorder %s20, 0
      %p208 = por %p206, %p207
      %p209 = scmp.ne.s32.totalorder %s201, %s203
      %p210 = scmp.eq.s32.totalorder %s25, 1
      %p211 = por %p209, %p210
      %p212 = scmp.ne.s32.totalorder %s203, %s204
      %p213 = scmp.eq.s32.totalorder %s25, 0
      %p214 = por %p212, %p213
      %p215 = scmp.ne.s32.totalorder %s203, %s204
      %p216 = scmp.eq.s32.totalorder %s26, 1
      %p217 = por %p215, %p216
      %p219 = scmp.ne.s32.totalorder %s204, %s218
      %p220 = scmp.eq.s32.totalorder %s26, 0
      %p221 = por %p219, %p220
      %s222 = ssub.s32 %s20, %s27
      %p223 = scmp.eq.s32.totalorder %s222, 0
      %s225 = sadd.s32 %s224, 1
      %s226 = scalar_select %p223, %s224, %s225
      %p229 = pneg %p223
      %p230 = scmp.eq.s32.totalorder %s20, 1
      %p231 = por %p229, %p230
      %p232 = scmp.ne.s32.totalorder %s224, %s227
      %p233 = scmp.eq.s32.totalorder %s20, 0
      %p234 = por %p232, %p233
      %p235 = scmp.ne.s32.totalorder %s224, %s227
      %p236 = scmp.eq.s32.totalorder %s25, 1
      %p237 = por %p235, %p236
      %p238 = scmp.ne.s32.totalorder %s227, %s228
      %p239 = scmp.eq.s32.totalorder %s25, 0
      %p240 = por %p238, %p239
      %p241 = scmp.ne.s32.totalorder %s227, %s228
      %p242 = scmp.eq.s32.totalorder %s26, 1
      %p243 = por %p241, %p242
      %p245 = scmp.ne.s32.totalorder %s228, %s244
      %p246 = scmp.eq.s32.totalorder %s26, 0
      %p247 = por %p245, %p246
      %p248 = scmp.le.s32.totalorder 1, %s20
      %p249 = scmp.lt.s32.totalorder %s20, 3
      %p250 = pnand %p248, %p249
      %p251 = pneg %p250
      // Predicated region
      $region9: #{tpu_custom_call.1} parent=5 // pred_check
        _
      $region10: #{tpu_custom_call.1} parent=5 // pred_check_branch
        %253 = sbr.rel (%p250) target = $region12
      $region11: #{tpu_custom_call.1} parent=5 // pred_region
        %s254 = ssub.s32 %s20, 1
        // Predicated region
        $region13: #{tpu_custom_call.1} parent=11 // pred_check
          %p255 = pneg %p67
        $region14: #{tpu_custom_call.1} parent=11 // pred_check_branch
          %257 = sbr.rel (%p255) target = $region16
        $region15: #{tpu_custom_call.1} parent=11 // pred_region
          _
        $region16: #{tpu_custom_call.1} parent=11 // pred_fallthru
          _
        // Predicated region
        $region17: #{tpu_custom_call.1} parent=11 // pred_check
          %p258 = pneg %p88
        $region18: #{tpu_custom_call.1} parent=11 // pred_check_branch
          %260 = sbr.rel (%p258) target = $region20
        $region19: #{tpu_custom_call.1} parent=11 // pred_region
          _
        $region20: #{tpu_custom_call.1} parent=11 // pred_fallthru
          _
        // Predicated region
        $region21: #{tpu_custom_call.1} parent=11 // pred_check
          %p261 = pneg %p109
        $region22: #{tpu_custom_call.1} parent=11 // pred_check_branch
          %263 = sbr.rel (%p261) target = $region24
        $region23: #{tpu_custom_call.1} parent=11 // pred_region
          _
        $region24: #{tpu_custom_call.1} parent=11 // pred_fallthru
          _
        // Predicated region
        $region25: #{tpu_custom_call.1} parent=11 // pred_check
          %p264 = pneg %p130
        $region26: #{tpu_custom_call.1} parent=11 // pred_check_branch
          %266 = sbr.rel (%p264) target = $region28
        $region27: #{tpu_custom_call.1} parent=11 // pred_region
          _
        $region28: #{tpu_custom_call.1} parent=11 // pred_fallthru
          _
        // Predicated region
        $region29: #{tpu_custom_call.1} parent=11 // pred_check
          %p267 = pneg %p151
        $region30: #{tpu_custom_call.1} parent=11 // pred_check_branch
          %269 = sbr.rel (%p267) target = $region32
        $region31: #{tpu_custom_call.1} parent=11 // pred_region
          _
        $region32: #{tpu_custom_call.1} parent=11 // pred_fallthru
          _
        // Predicated region
        $region33: #{tpu_custom_call.1} parent=11 // pred_check
          %p270 = pneg %p172
        $region34: #{tpu_custom_call.1} parent=11 // pred_check_branch
          %272 = sbr.rel (%p270) target = $region36
        $region35: #{tpu_custom_call.1} parent=11 // pred_region
          _
        $region36: #{tpu_custom_call.1} parent=11 // pred_fallthru
          _
        // Predicated region
        $region37: #{tpu_custom_call.1} parent=11 // pred_check
          %p273 = pneg %p193
        $region38: #{tpu_custom_call.1} parent=11 // pred_check_branch
          %275 = sbr.rel (%p273) target = $region40
        $region39: #{tpu_custom_call.1} parent=11 // pred_region
          _
        $region40: #{tpu_custom_call.1} parent=11 // pred_fallthru
          _
        // Predicated region
        $region41: #{tpu_custom_call.1} parent=11 // pred_check
          %p276 = pneg %p214
        $region42: #{tpu_custom_call.1} parent=11 // pred_check_branch
          %278 = sbr.rel (%p276) target = $region44
        $region43: #{tpu_custom_call.1} parent=11 // pred_region
          _
        $region44: #{tpu_custom_call.1} parent=11 // pred_fallthru
          _
      $region12: #{tpu_custom_call.1} parent=5 // pred_fallthru
        _
      %p279 = scmp.lt.s32.totalorder %s20, 2
      // Predicated region
      $region45: #{tpu_custom_call.1} parent=5 // pred_check
        %p280 = pneg %p279
      $region46: #{tpu_custom_call.1} parent=5 // pred_check_branch
        %282 = sbr.rel (%p280) target = $region48
      $region47: #{tpu_custom_call.1} parent=5 // pred_region
        // Predicated region
        $region49: #{tpu_custom_call.1} parent=47 // pred_check
          %p283 = pneg %p40
        $region50: #{tpu_custom_call.1} parent=47 // pred_check_branch
          %285 = sbr.rel (%p283) target = $region52
        $region51: #{tpu_custom_call.1} parent=47 // pred_region
          %p286 = scmp.lt.s32.totalorder %s20, 1
          %s287 = scalar_select %p286, %s20, 1
          %s288 = smul.addr %s287, 2
          %s289 = scalar_lea.vmem %s0, %s288
        $region52: #{tpu_custom_call.1} parent=47 // pred_fallthru
          _
      $region48: #{tpu_custom_call.1} parent=5 // pred_fallthru
        _
      %p290 = scmp.le.s32.totalorder 1, %s20
      %p291 = scmp.lt.s32.totalorder %s20, 3
      %p292 = pnand %p290, %p291
      %p293 = pneg %p292
      // Predicated region
      $region53: #{tpu_custom_call.1} parent=5 // pred_check
        _
      $region54: #{tpu_custom_call.1} parent=5 // pred_check_branch
        %295 = sbr.rel (%p292) target = $region56
      $region55: #{tpu_custom_call.1} parent=5 // pred_region
        %s296 = ssub.s32 %s20, 1
        %p297 = scmp.lt.s32.totalorder %s25, 1
        %s298 = scalar_select %p297, %s25, 1
        %s299 = smul.addr %s298, 2
        %s300 = scalar_lea.vmem %s0, %s299
        %p301 = pneg %p46
        %p302 = pneg %p43
        %p303 = pneg %p67
        %p304 = pneg %p64
        %p305 = pneg %p88
        %p306 = pneg %p85
        %p307 = pneg %p109
        %p308 = pneg %p106
        %p309 = pneg %p130
        %p310 = pneg %p127
        %p311 = pneg %p151
        %p312 = pneg %p148
        %p313 = pneg %p172
        %p314 = pneg %p169
        %p315 = pneg %p193
        %p316 = pneg %p190
        %p317 = pneg %p214
        %p318 = pneg %p211
        %p319 = pneg %p240
        %p320 = pneg %p237
        %s321 = sand.u32 %s227, 1
        %s322 = scalar_lea.sflag [#allocation4], %s321
        %s323 = sand.u32 %s227, 1
        %s324 = scalar_lea.vmem [#allocation3], %s323
        %p325 = scmp.lt.s32.totalorder %s25, 1
        %s326 = scalar_select %p325, %s25, 1
        %s327 = smul.addr %s326, 2
        %s328 = scalar_lea.vmem %s0, %s327
        %v329 = vld [vmem:[%s328] sm:$0x3]
        %v330 = vld [vmem:[%s1] sm:$0xff]
        %v331 = vld [vmem:[%s1 + $0x8] sm:$0xff]
        %v332 = vld [vmem:[%s1 + $0x10] sm:$0xff]
        %v333 = vld [vmem:[%s1 + $0x18] sm:$0xff]
        %v334 = vld [vmem:[%s2] sm:$0xff]
        %v335 = vld [vmem:[%s2 + $0x8] sm:$0xff]
        %v336 = vld [vmem:[%s2 + $0x10] sm:$0xff]
        %v337 = vld [vmem:[%s2 + $0x18] sm:$0xff]
        %339 = vset.pattern.permute.xlu0 0
        %340 = vperm.xlu0 %339, %v334
        %v341 = vpop.permute.xlu0 %340
        %344 = vset.pattern.permute.xlu0 0
        %345 = vperm.xlu0 %344, %v335
        %v346 = vpop.permute.xlu0 %345
        %349 = vset.pattern.permute.xlu0 0
        %350 = vperm.xlu0 %349, %v336
        %v351 = vpop.permute.xlu0 %350
        %354 = vset.pattern.permute.xlu0 0
        %355 = vperm.xlu0 %354, %v337
        %v356 = vpop.permute.xlu0 %355
        %vm358 = vcmask 15360
        %v360 = vsel %vm358, %v330, 0
        %v363 = vsel %vm358, %v331, 0
        %v366 = vsel %vm358, %v332, 0
        %v369 = vsel %vm358, %v333, 0
        %vm371 = vcmask 1041408
        %v373 = vsel %vm371, %v329, 0
        %375 = vmatprep.subr.mxu0 0.0
        %v376 = vand.u32 %v373, 4294901760
        %377 = vmatpush1.msra.mxu0 %v376
        %378 = vmatprep.subr.mxu0 0.0
        %379 = vmatpush1.msra.mxu0 0.0
        %380 = vmatprep.subr.mxu0 0.0
        %381 = vmatpush1.msra.mxu0 0.0
        %382 = vmatprep.subr.mxu0 0.0
        %383 = vmatpush1.msra.mxu0 0.0
        %384 = vmatprep.subr.mxu0 0.0
        %385 = vmatpush1.msra.mxu0 0.0
        %386 = vmatprep.subr.mxu0 0.0
        %387 = vmatpush1.msra.mxu0 0.0
        %388 = vmatprep.subr.mxu0 0.0
        %389 = vmatpush1.msra.mxu0 0.0
        %390 = vmatprep.subr.mxu0 0.0
        %391 = vmatpush1.msra.mxu0 0.0
        %392 = vmatprep.subr.mxu0 0.0
        %393 = vmatpush1.msra.mxu0 0.0
        %394 = vmatprep.subr.mxu0 0.0
        %395 = vmatpush1.msra.mxu0 0.0
        %396 = vmatprep.subr.mxu0 0.0
        %397 = vmatpush1.msra.mxu0 0.0
        %398 = vmatprep.subr.mxu0 0.0
        %399 = vmatpush1.msra.mxu0 0.0
        %400 = vmatprep.subr.mxu0 0.0
        %401 = vmatpush1.msra.mxu0 0.0
        %402 = vmatprep.subr.mxu0 0.0
        %403 = vmatpush1.msra.mxu0 0.0
        %404 = vmatprep.subr.mxu0 0.0
        %405 = vmatpush1.msra.mxu0 0.0
        %406 = vmatprep.subr.mxu0 0.0
        %407 = vmatpush1.msra.mxu0 0.0
        %408 = vmatprep.subr.mxu0 0.0
        %409 = vmatpush1.msra.mxu0 0.0
        %410 = vmatprep.subr.mxu0 0.0
        %411 = vmatpush1.msra.mxu0 0.0
        %412 = vmatprep.subr.mxu0 0.0
        %413 = vmatpush1.msra.mxu0 0.0
        %414 = vmatprep.subr.mxu0 0.0
        %415 = vmatpush1.msra.mxu0 0.0
        %416 = vmatprep.subr.mxu0 0.0
        %417 = vmatpush1.msra.mxu0 0.0
        %418 = vmatprep.subr.mxu0 0.0
        %419 = vmatpush1.msra.mxu0 0.0
        %420 = vmatprep.subr.mxu0 0.0
        %421 = vmatpush1.msra.mxu0 0.0
        %422 = vmatprep.subr.mxu0 0.0
        %423 = vmatpush1.msra.mxu0 0.0
        %424 = vmatprep.subr.mxu0 0.0
        %425 = vmatpush1.msra.mxu0 0.0
        %426 = vmatprep.subr.mxu0 0.0
        %427 = vmatpush1.msra.mxu0 0.0
        %428 = vmatprep.subr.mxu0 0.0
        %429 = vmatpush1.msra.mxu0 0.0
        %430 = vmatprep.subr.mxu0 0.0
        %431 = vmatpush1.msra.mxu0 0.0
        %432 = vmatprep.subr.mxu0 0.0
        %433 = vmatpush1.msra.mxu0 0.0
        %434 = vmatprep.subr.mxu0 0.0
        %435 = vmatpush1.msra.mxu0 0.0
        %436 = vmatprep.subr.mxu0 0.0
        %437 = vmatpush1.msra.mxu0 0.0
        %438 = vmatprep.subr.mxu0 0.0
        %439 = vmatpush1.msra.mxu0 0.0
        %440 = vmatprep.mubr.f32.mxu0 0.0
        %v441 = vand.u32 %v360, 4294901760
        %v442 = vsub.f32 %v360, %v441
        %v443 = vand.u32 %v442, 4294901760
        %v444 = vsub.f32 %v442, %v443
        %v445 = vand.u32 %v444, 4294901760
        %446 = vmatmul.mubr.f32.gmra.mrb[0].mxu0 %v445
        %v447 = vpop.f32.mrb[0].mxu0
        %v448 = vadd.f32 %v341, %v447
        %v449 = vpop.f32.mrb[0].mxu0
        %450 = vmatprep.mubr.f32.mxu0 0.0
        %v451 = vand.u32 %v363, 4294901760
        %v452 = vsub.f32 %v363, %v451
        %v453 = vand.u32 %v452, 4294901760
        %v454 = vsub.f32 %v452, %v453
        %v455 = vand.u32 %v454, 4294901760
        %456 = vmatmul.mubr.f32.gmra.mrb[0].mxu0 %v455
        %v457 = vpop.f32.mrb[0].mxu0
        %v458 = vadd.f32 %v346, %v457
        %v459 = vpop.f32.mrb[0].mxu0
        %460 = vmatprep.mubr.f32.mxu0 0.0
        %v461 = vand.u32 %v366, 4294901760
        %v462 = vsub.f32 %v366, %v461
        %v463 = vand.u32 %v462, 4294901760
        %v464 = vsub.f32 %v462, %v463
        %v465 = vand.u32 %v464, 4294901760
        %466 = vmatmul.mubr.f32.gmra.mrb[0].mxu0 %v465
        %v467 = vpop.f32.mrb[0].mxu0
        %v468 = vadd.f32 %v351, %v467
        %v469 = vpop.f32.mrb[0].mxu0
        %470 = vmatprep.mubr.f32.mxu0 0.0
        %v471 = vand.u32 %v369, 4294901760
        %v472 = vsub.f32 %v369, %v471
        %v473 = vand.u32 %v472, 4294901760
        %v474 = vsub.f32 %v472, %v473
        %v475 = vand.u32 %v474, 4294901760
        %476 = vmatmul.mubr.f32.gmra.mrb[0].mxu0 %v475
        %v477 = vpop.f32.mrb[0].mxu0
        %v478 = vadd.f32 %v356, %v477
        %v479 = vpop.f32.mrb[0].mxu0
        %480 = vdwg.mxu0
        %481 = vmatprep.subr.mxu0 0.0
        %v482 = vand.u32 %v373, 4294901760
        %v483 = vsub.f32 %v373, %v482
        %v484 = vand.u32 %v483, 4294901760
        %v485 = vsub.f32 %v483, %v484
        %v486 = vand.u32 %v485, 4294901760
        %487 = vmatpush1.msra.mxu0 %v486
        %488 = vmatprep.subr.mxu0 0.0
        %489 = vmatpush1.msra.mxu0 0.0
        %490 = vmatprep.subr.mxu0 0.0
        %491 = vmatpush1.msra.mxu0 0.0
        %492 = vmatprep.subr.mxu0 0.0
        %493 = vmatpush1.msra.mxu0 0.0
        %494 = vmatprep.subr.mxu0 0.0
        %495 = vmatpush1.msra.mxu0 0.0
        %496 = vmatprep.subr.mxu0 0.0
        %497 = vmatpush1.msra.mxu0 0.0
        %498 = vmatprep.subr.mxu0 0.0
        %499 = vmatpush1.msra.mxu0 0.0
        %500 = vmatprep.subr.mxu0 0.0
        %501 = vmatpush1.msra.mxu0 0.0
        %502 = vmatprep.subr.mxu0 0.0
        %503 = vmatpush1.msra.mxu0 0.0
        %504 = vmatprep.subr.mxu0 0.0
        %505 = vmatpush1.msra.mxu0 0.0
        %506 = vmatprep.subr.mxu0 0.0
        %507 = vmatpush1.msra.mxu0 0.0
        %508 = vmatprep.subr.mxu0 0.0
        %509 = vmatpush1.msra.mxu0 0.0
        %510 = vmatprep.subr.mxu0 0.0
        %511 = vmatpush1.msra.mxu0 0.0
        %512 = vmatprep.subr.mxu0 0.0
        %513 = vmatpush1.msra.mxu0 0.0
        %514 = vmatprep.subr.mxu0 0.0
        %515 = vmatpush1.msra.mxu0 0.0
        %516 = vmatprep.subr.mxu0 0.0
        %517 = vmatpush1.msra.mxu0 0.0
        %518 = vmatprep.subr.mxu0 0.0
        %519 = vmatpush1.msra.mxu0 0.0
        %520 = vmatprep.subr.mxu0 0.0
        %521 = vmatpush1.msra.mxu0 0.0
        %522 = vmatprep.subr.mxu0 0.0
        %523 = vmatpush1.msra.mxu0 0.0
        %524 = vmatprep.subr.mxu0 0.0
        %525 = vmatpush1.msra.mxu0 0.0
        %526 = vmatprep.subr.mxu0 0.0
        %527 = vmatpush1.msra.mxu0 0.0
        %528 = vmatprep.subr.mxu0 0.0
        %529 = vmatpush1.msra.mxu0 0.0
        %530 = vmatprep.subr.mxu0 0.0
        %531 = vmatpush1.msra.mxu0 0.0
        %532 = vmatprep.subr.mxu0 0.0
        %533 = vmatpush1.msra.mxu0 0.0
        %534 = vmatprep.subr.mxu0 0.0
        %535 = vmatpush1.msra.mxu0 0.0
        %536 = vmatprep.subr.mxu0 0.0
        %537 = vmatpush1.msra.mxu0 0.0
        %538 = vmatprep.subr.mxu0 0.0
        %539 = vmatpush1.msra.mxu0 0.0
        %540 = vmatprep.subr.mxu0 0.0
        %541 = vmatpush1.msra.mxu0 0.0
        %542 = vmatprep.subr.mxu0 0.0
        %543 = vmatpush1.msra.mxu0 0.0
        %544 = vmatprep.subr.mxu0 0.0
        %545 = vmatpush1.msra.mxu0 0.0
        %546 = vmatprep.subr.mxu0 0.0
        %547 = vmatpush1.msra.mxu0 0.0
        %548 = vmatprep.subr.mxu0 0.0
        %549 = vmatpush1.msra.mxu0 0.0
        %550 = vmatprep.mubr.f32.mxu0 0.0
        %v551 = vand.u32 %v360, 4294901760
        %552 = vmatmul.mubr.f32.gmra.mrb[0].mxu0 %v551
        %v553 = vpop.f32.mrb[0].mxu0
        %v554 = vadd.f32 %v448, %v553
        %v555 = vpop.f32.mrb[0].mxu0
        %556 = vmatprep.mubr.f32.mxu0 0.0
        %v557 = vand.u32 %v363, 4294901760
        %558 = vmatmul.mubr.f32.gmra.mrb[0].mxu0 %v557
        %v559 = vpop.f32.mrb[0].mxu0
        %v560 = vadd.f32 %v458, %v559
        %v561 = vpop.f32.mrb[0].mxu0
        %562 = vmatprep.mubr.f32.mxu0 0.0
        %v563 = vand.u32 %v366, 4294901760
        %564 = vmatmul.mubr.f32.gmra.mrb[0].mxu0 %v563
        %v565 = vpop.f32.mrb[0].mxu0
        %v566 = vadd.f32 %v468, %v565
        %v567 = vpop.f32.mrb[0].mxu0
        %568 = vmatprep.mubr.f32.mxu0 0.0
        %v569 = vand.u32 %v369, 4294901760
        %570 = vmatmul.mubr.f32.gmra.mrb[0].mxu0 %v569
        %v571 = vpop.f32.mrb[0].mxu0
        %v572 = vadd.f32 %v478, %v571
        %v573 = vpop.f32.mrb[0].mxu0
        %574 = vdwg.mxu0
        %575 = vmatprep.subr.mxu0 0.0
        %v576 = vand.u32 %v373, 4294901760
        %v577 = vsub.f32 %v373, %v576
        %578 = vmatpush1.msra.mxu0 %v577
        %579 = vmatprep.subr.mxu0 0.0
        %580 = vmatpush1.msra.mxu0 0.0
        %581 = vmatprep.subr.mxu0 0.0
        %582 = vmatpush1.msra.mxu0 0.0
        %583 = vmatprep.subr.mxu0 0.0
        %584 = vmatpush1.msra.mxu0 0.0
        %585 = vmatprep.subr.mxu0 0.0
        %586 = vmatpush1.msra.mxu0 0.0
        %587 = vmatprep.subr.mxu0 0.0
        %588 = vmatpush1.msra.mxu0 0.0
        %589 = vmatprep.subr.mxu0 0.0
        %590 = vmatpush1.msra.mxu0 0.0
        %591 = vmatprep.subr.mxu0 0.0
        %592 = vmatpush1.msra.mxu0 0.0
        %593 = vmatprep.subr.mxu0 0.0
        %594 = vmatpush1.msra.mxu0 0.0
        %595 = vmatprep.subr.mxu0 0.0
        %596 = vmatpush1.msra.mxu0 0.0
        %597 = vmatprep.subr.mxu0 0.0
        %598 = vmatpush1.msra.mxu0 0.0
        %599 = vmatprep.subr.mxu0 0.0
        %600 = vmatpush1.msra.mxu0 0.0
        %601 = vmatprep.subr.mxu0 0.0
        %602 = vmatpush1.msra.mxu0 0.0
        %603 = vmatprep.subr.mxu0 0.0
        %604 = vmatpush1.msra.mxu0 0.0
        %605 = vmatprep.subr.mxu0 0.0
        %606 = vmatpush1.msra.mxu0 0.0
        %607 = vmatprep.subr.mxu0 0.0
        %608 = vmatpush1.msra.mxu0 0.0
        %609 = vmatprep.subr.mxu0 0.0
        %610 = vmatpush1.msra.mxu0 0.0
        %611 = vmatprep.subr.mxu0 0.0
        %612 = vmatpush1.msra.mxu0 0.0
        %613 = vmatprep.subr.mxu0 0.0
        %614 = vmatpush1.msra.mxu0 0.0
        %615 = vmatprep.subr.mxu0 0.0
        %616 = vmatpush1.msra.mxu0 0.0
        %617 = vmatprep.subr.mxu0 0.0
        %618 = vmatpush1.msra.mxu0 0.0
        %619 = vmatprep.subr.mxu0 0.0
        %620 = vmatpush1.msra.mxu0 0.0
        %621 = vmatprep.subr.mxu0 0.0
        %622 = vmatpush1.msra.mxu0 0.0
        %623 = vmatprep.subr.mxu0 0.0
        %624 = vmatpush1.msra.mxu0 0.0
        %625 = vmatprep.subr.mxu0 0.0
        %626 = vmatpush1.msra.mxu0 0.0
        %627 = vmatprep.subr.mxu0 0.0
        %628 = vmatpush1.msra.mxu0 0.0
        %629 = vmatprep.subr.mxu0 0.0
        %630 = vmatpush1.msra.mxu0 0.0
        %631 = vmatprep.subr.mxu0 0.0
        %632 = vmatpush1.msra.mxu0 0.0
        %633 = vmatprep.subr.mxu0 0.0
        %634 = vmatpush1.msra.mxu0 0.0
        %635 = vmatprep.subr.mxu0 0.0
        %636 = vmatpush1.msra.mxu0 0.0
        %637 = vmatprep.subr.mxu0 0.0
        %638 = vmatpush1.msra.mxu0 0.0
        %639 = vmatprep.subr.mxu0 0.0
        %640 = vmatpush1.msra.mxu0 0.0
        %641 = vmatprep.mubr.f32.mxu0 0.0
        %v642 = vand.u32 %v360, 4294901760
        %v643 = vsub.f32 %v360, %v642
        %644 = vmatmul.mubr.f32.gmra.mrb[0].mxu0 %v643
        %v645 = vpop.f32.mrb[0].mxu0
        %v646 = vadd.f32 %v554, %v645
        %v647 = vpop.f32.mrb[0].mxu0
        %648 = vmatprep.mubr.f32.mxu0 0.0
        %v649 = vand.u32 %v363, 4294901760
        %v650 = vsub.f32 %v363, %v649
        %651 = vmatmul.mubr.f32.gmra.mrb[0].mxu0 %v650
        %v652 = vpop.f32.mrb[0].mxu0
        %v653 = vadd.f32 %v560, %v652
        %v654 = vpop.f32.mrb[0].mxu0
        %655 = vmatprep.mubr.f32.mxu0 0.0
        %v656 = vand.u32 %v366, 4294901760
        %v657 = vsub.f32 %v366, %v656
        %658 = vmatmul.mubr.f32.gmra.mrb[0].mxu0 %v657
        %v659 = vpop.f32.mrb[0].mxu0
        %v660 = vadd.f32 %v566, %v659
        %v661 = vpop.f32.mrb[0].mxu0
        %662 = vmatprep.mubr.f32.mxu0 0.0
        %v663 = vand.u32 %v369, 4294901760
        %v664 = vsub.f32 %v369, %v663
        %665 = vmatmul.mubr.f32.gmra.mrb[0].mxu0 %v664
        %v666 = vpop.f32.mrb[0].mxu0
        %v667 = vadd.f32 %v572, %v666
        %v668 = vpop.f32.mrb[0].mxu0
        %669 = vdwg.mxu0
        %670 = vmatprep.subr.mxu0 0.0
        %v671 = vand.u32 %v373, 4294901760
        %672 = vmatpush1.msra.mxu0 %v671
        %673 = vmatprep.subr.mxu0 0.0
        %674 = vmatpush1.msra.mxu0 0.0
        %675 = vmatprep.subr.mxu0 0.0
        %676 = vmatpush1.msra.mxu0 0.0
        %677 = vmatprep.subr.mxu0 0.0
        %678 = vmatpush1.msra.mxu0 0.0
        %679 = vmatprep.subr.mxu0 0.0
        %680 = vmatpush1.msra.mxu0 0.0
        %681 = vmatprep.subr.mxu0 0.0
        %682 = vmatpush1.msra.mxu0 0.0
        %683 = vmatprep.subr.mxu0 0.0
        %684 = vmatpush1.msra.mxu0 0.0
        %685 = vmatprep.subr.mxu0 0.0
        %686 = vmatpush1.msra.mxu0 0.0
        %687 = vmatprep.subr.mxu0 0.0
        %688 = vmatpush1.msra.mxu0 0.0
        %689 = vmatprep.subr.mxu0 0.0
        %690 = vmatpush1.msra.mxu0 0.0
        %691 = vmatprep.subr.mxu0 0.0
        %692 = vmatpush1.msra.mxu0 0.0
        %693 = vmatprep.subr.mxu0 0.0
        %694 = vmatpush1.msra.mxu0 0.0
        %695 = vmatprep.subr.mxu0 0.0
        %696 = vmatpush1.msra.mxu0 0.0
        %697 = vmatprep.subr.mxu0 0.0
        %698 = vmatpush1.msra.mxu0 0.0
        %699 = vmatprep.subr.mxu0 0.0
        %700 = vmatpush1.msra.mxu0 0.0
        %701 = vmatprep.subr.mxu0 0.0
        %702 = vmatpush1.msra.mxu0 0.0
        %703 = vmatprep.subr.mxu0 0.0
        %704 = vmatpush1.msra.mxu0 0.0
        %705 = vmatprep.subr.mxu0 0.0
        %706 = vmatpush1.msra.mxu0 0.0
        %707 = vmatprep.subr.mxu0 0.0
        %708 = vmatpush1.msra.mxu0 0.0
        %709 = vmatprep.subr.mxu0 0.0
        %710 = vmatpush1.msra.mxu0 0.0
        %711 = vmatprep.subr.mxu0 0.0
        %712 = vmatpush1.msra.mxu0 0.0
        %713 = vmatprep.subr.mxu0 0.0
        %714 = vmatpush1.msra.mxu0 0.0
        %715 = vmatprep.subr.mxu0 0.0
        %716 = vmatpush1.msra.mxu0 0.0
        %717 = vmatprep.subr.mxu0 0.0
        %718 = vmatpush1.msra.mxu0 0.0
        %719 = vmatprep.subr.mxu0 0.0
        %720 = vmatpush1.msra.mxu0 0.0
        %721 = vmatprep.subr.mxu0 0.0
        %722 = vmatpush1.msra.mxu0 0.0
        %723 = vmatprep.subr.mxu0 0.0
        %724 = vmatpush1.msra.mxu0 0.0
        %725 = vmatprep.subr.mxu0 0.0
        %726 = vmatpush1.msra.mxu0 0.0
        %727 = vmatprep.subr.mxu0 0.0
        %728 = vmatpush1.msra.mxu0 0.0
        %729 = vmatprep.subr.mxu0 0.0
        %730 = vmatpush1.msra.mxu0 0.0
        %731 = vmatprep.subr.mxu0 0.0
        %732 = vmatpush1.msra.mxu0 0.0
        %733 = vmatprep.subr.mxu0 0.0
        %734 = vmatpush1.msra.mxu0 0.0
        %735 = vmatprep.mubr.f32.mxu0 0.0
        %v736 = vand.u32 %v360, 4294901760
        %v737 = vsub.f32 %v360, %v736
        %v738 = vand.u32 %v737, 4294901760
        %739 = vmatmul.mubr.f32.gmra.mrb[0].mxu0 %v738
        %v740 = vpop.f32.mrb[0].mxu0
        %v741 = vadd.f32 %v646, %v740
        %v742 = vpop.f32.mrb[0].mxu0
        %743 = vmatprep.mubr.f32.mxu0 0.0
        %v744 = vand.u32 %v363, 4294901760
        %v745 = vsub.f32 %v363, %v744
        %v746 = vand.u32 %v745, 4294901760
        %747 = vmatmul.mubr.f32.gmra.mrb[0].mxu0 %v746
        %v748 = vpop.f32.mrb[0].mxu0
        %v749 = vadd.f32 %v653, %v748
        %v750 = vpop.f32.mrb[0].mxu0
        %751 = vmatprep.mubr.f32.mxu0 0.0
        %v752 = vand.u32 %v366, 4294901760
        %v753 = vsub.f32 %v366, %v752
        %v754 = vand.u32 %v753, 4294901760
        %755 = vmatmul.mubr.f32.gmra.mrb[0].mxu0 %v754
        %v756 = vpop.f32.mrb[0].mxu0
        %v757 = vadd.f32 %v660, %v756
        %v758 = vpop.f32.mrb[0].mxu0
        %759 = vmatprep.mubr.f32.mxu0 0.0
        %v760 = vand.u32 %v369, 4294901760
        %v761 = vsub.f32 %v369, %v760
        %v762 = vand.u32 %v761, 4294901760
        %763 = vmatmul.mubr.f32.gmra.mrb[0].mxu0 %v762
        %v764 = vpop.f32.mrb[0].mxu0
        %v765 = vadd.f32 %v667, %v764
        %v766 = vpop.f32.mrb[0].mxu0
        %767 = vdwg.mxu0
        %768 = vmatprep.subr.mxu0 0.0
        %v769 = vand.u32 %v373, 4294901760
        %v770 = vsub.f32 %v373, %v769
        %v771 = vand.u32 %v770, 4294901760
        %772 = vmatpush1.msra.mxu0 %v771
        %773 = vmatprep.subr.mxu0 0.0
        %774 = vmatpush1.msra.mxu0 0.0
        %775 = vmatprep.subr.mxu0 0.0
        %776 = vmatpush1.msra.mxu0 0.0
        %777 = vmatprep.subr.mxu0 0.0
        %778 = vmatpush1.msra.mxu0 0.0
        %779 = vmatprep.subr.mxu0 0.0
        %780 = vmatpush1.msra.mxu0 0.0
        %781 = vmatprep.subr.mxu0 0.0
        %782 = vmatpush1.msra.mxu0 0.0
        %783 = vmatprep.subr.mxu0 0.0
        %784 = vmatpush1.msra.mxu0 0.0
        %785 = vmatprep.subr.mxu0 0.0
        %786 = vmatpush1.msra.mxu0 0.0
        %787 = vmatprep.subr.mxu0 0.0
        %788 = vmatpush1.msra.mxu0 0.0
        %789 = vmatprep.subr.mxu0 0.0
        %790 = vmatpush1.msra.mxu0 0.0
        %791 = vmatprep.subr.mxu0 0.0
        %792 = vmatpush1.msra.mxu0 0.0
        %793 = vmatprep.subr.mxu0 0.0
        %794 = vmatpush1.msra.mxu0 0.0
        %795 = vmatprep.subr.mxu0 0.0
        %796 = vmatpush1.msra.mxu0 0.0
        %797 = vmatprep.subr.mxu0 0.0
        %798 = vmatpush1.msra.mxu0 0.0
        %799 = vmatprep.subr.mxu0 0.0
        %800 = vmatpush1.msra.mxu0 0.0
        %801 = vmatprep.subr.mxu0 0.0
        %802 = vmatpush1.msra.mxu0 0.0
        %803 = vmatprep.subr.mxu0 0.0
        %804 = vmatpush1.msra.mxu0 0.0
        %805 = vmatprep.subr.mxu0 0.0
        %806 = vmatpush1.msra.mxu0 0.0
        %807 = vmatprep.subr.mxu0 0.0
        %808 = vmatpush1.msra.mxu0 0.0
        %809 = vmatprep.subr.mxu0 0.0
        %810 = vmatpush1.msra.mxu0 0.0
        %811 = vmatprep.subr.mxu0 0.0
        %812 = vmatpush1.msra.mxu0 0.0
        %813 = vmatprep.subr.mxu0 0.0
        %814 = vmatpush1.msra.mxu0 0.0
        %815 = vmatprep.subr.mxu0 0.0
        %816 = vmatpush1.msra.mxu0 0.0
        %817 = vmatprep.subr.mxu0 0.0
        %818 = vmatpush1.msra.mxu0 0.0
        %819 = vmatprep.subr.mxu0 0.0
        %820 = vmatpush1.msra.mxu0 0.0
        %821 = vmatprep.subr.mxu0 0.0
        %822 = vmatpush1.msra.mxu0 0.0
        %823 = vmatprep.subr.mxu0 0.0
        %824 = vmatpush1.msra.mxu0 0.0
        %825 = vmatprep.subr.mxu0 0.0
        %826 = vmatpush1.msra.mxu0 0.0
        %827 = vmatprep.subr.mxu0 0.0
        %828 = vmatpush1.msra.mxu0 0.0
        %829 = vmatprep.subr.mxu0 0.0
        %830 = vmatpush1.msra.mxu0 0.0
        %831 = vmatprep.subr.mxu0 0.0
        %832 = vmatpush1.msra.mxu0 0.0
        %833 = vmatprep.subr.mxu0 0.0
        %834 = vmatpush1.msra.mxu0 0.0
        %835 = vmatprep.mubr.f32.mxu0 0.0
        %v836 = vand.u32 %v360, 4294901760
        %837 = vmatmul.mubr.f32.gmra.mrb[0].mxu0 %v836
        %v838 = vpop.f32.mrb[0].mxu0
        %v839 = vadd.f32 %v741, %v838
        %v840 = vpop.f32.mrb[0].mxu0
        %841 = vmatprep.mubr.f32.mxu0 0.0
        %v842 = vand.u32 %v363, 4294901760
        %843 = vmatmul.mubr.f32.gmra.mrb[0].mxu0 %v842
        %v844 = vpop.f32.mrb[0].mxu0
        %v845 = vadd.f32 %v749, %v844
        %v846 = vpop.f32.mrb[0].mxu0
        %847 = vmatprep.mubr.f32.mxu0 0.0
        %v848 = vand.u32 %v366, 4294901760
        %849 = vmatmul.mubr.f32.gmra.mrb[0].mxu0 %v848
        %v850 = vpop.f32.mrb[0].mxu0
        %v851 = vadd.f32 %v757, %v850
        %v852 = vpop.f32.mrb[0].mxu0
        %853 = vmatprep.mubr.f32.mxu0 0.0
        %v854 = vand.u32 %v369, 4294901760
        %855 = vmatmul.mubr.f32.gmra.mrb[0].mxu0 %v854
        %v856 = vpop.f32.mrb[0].mxu0
        %v857 = vadd.f32 %v765, %v856
        %v858 = vpop.f32.mrb[0].mxu0
        %859 = vdwg.mxu0
        %860 = vmatprep.subr.mxu0 0.0
        %v861 = vand.u32 %v373, 4294901760
        %862 = vmatpush1.msra.mxu0 %v861
        %863 = vmatprep.subr.mxu0 0.0
        %864 = vmatpush1.msra.mxu0 0.0
        %865 = vmatprep.subr.mxu0 0.0
        %866 = vmatpush1.msra.mxu0 0.0
        %867 = vmatprep.subr.mxu0 0.0
        %868 = vmatpush1.msra.mxu0 0.0
        %869 = vmatprep.subr.mxu0 0.0
        %870 = vmatpush1.msra.mxu0 0.0
        %871 = vmatprep.subr.mxu0 0.0
        %872 = vmatpush1.msra.mxu0 0.0
        %873 = vmatprep.subr.mxu0 0.0
        %874 = vmatpush1.msra.mxu0 0.0
        %875 = vmatprep.subr.mxu0 0.0
        %876 = vmatpush1.msra.mxu0 0.0
        %877 = vmatprep.subr.mxu0 0.0
        %878 = vmatpush1.msra.mxu0 0.0
        %879 = vmatprep.subr.mxu0 0.0
        %880 = vmatpush1.msra.mxu0 0.0
        %881 = vmatprep.subr.mxu0 0.0
        %882 = vmatpush1.msra.mxu0 0.0
        %883 = vmatprep.subr.mxu0 0.0
        %884 = vmatpush1.msra.mxu0 0.0
        %885 = vmatprep.subr.mxu0 0.0
        %886 = vmatpush1.msra.mxu0 0.0
        %887 = vmatprep.subr.mxu0 0.0
        %888 = vmatpush1.msra.mxu0 0.0
        %889 = vmatprep.subr.mxu0 0.0
        %890 = vmatpush1.msra.mxu0 0.0
        %891 = vmatprep.subr.mxu0 0.0
        %892 = vmatpush1.msra.mxu0 0.0
        %893 = vmatprep.subr.mxu0 0.0
        %894 = vmatpush1.msra.mxu0 0.0
        %895 = vmatprep.subr.mxu0 0.0
        %896 = vmatpush1.msra.mxu0 0.0
        %897 = vmatprep.subr.mxu0 0.0
        %898 = vmatpush1.msra.mxu0 0.0
        %899 = vmatprep.subr.mxu0 0.0
        %900 = vmatpush1.msra.mxu0 0.0
        %901 = vmatprep.subr.mxu0 0.0
        %902 = vmatpush1.msra.mxu0 0.0
        %903 = vmatprep.subr.mxu0 0.0
        %904 = vmatpush1.msra.mxu0 0.0
        %905 = vmatprep.subr.mxu0 0.0
        %906 = vmatpush1.msra.mxu0 0.0
        %907 = vmatprep.subr.mxu0 0.0
        %908 = vmatpush1.msra.mxu0 0.0
        %909 = vmatprep.subr.mxu0 0.0
        %910 = vmatpush1.msra.mxu0 0.0
        %911 = vmatprep.subr.mxu0 0.0
        %912 = vmatpush1.msra.mxu0 0.0
        %913 = vmatprep.subr.mxu0 0.0
        %914 = vmatpush1.msra.mxu0 0.0
        %915 = vmatprep.subr.mxu0 0.0
        %916 = vmatpush1.msra.mxu0 0.0
        %917 = vmatprep.subr.mxu0 0.0
        %918 = vmatpush1.msra.mxu0 0.0
        %919 = vmatprep.subr.mxu0 0.0
        %920 = vmatpush1.msra.mxu0 0.0
        %921 = vmatprep.subr.mxu0 0.0
        %922 = vmatpush1.msra.mxu0 0.0
        %923 = vmatprep.subr.mxu0 0.0
        %924 = vmatpush1.msra.mxu0 0.0
        %925 = vmatprep.mubr.f32.mxu0 0.0
        %v926 = vand.u32 %v360, 4294901760
        %927 = vmatmul.mubr.f32.gmra.mrb[0].mxu0 %v926
        %v928 = vpop.f32.mrb[0].mxu0
        %v929 = vadd.f32 %v839, %v928
        %v930 = vpop.f32.mrb[0].mxu0
        %931 = vmatprep.mubr.f32.mxu0 0.0
        %v932 = vand.u32 %v363, 4294901760
        %933 = vmatmul.mubr.f32.gmra.mrb[0].mxu0 %v932
        %v934 = vpop.f32.mrb[0].mxu0
        %v935 = vadd.f32 %v845, %v934
        %v936 = vpop.f32.mrb[0].mxu0
        %937 = vmatprep.mubr.f32.mxu0 0.0
        %v938 = vand.u32 %v366, 4294901760
        %939 = vmatmul.mubr.f32.gmra.mrb[0].mxu0 %v938
        %v940 = vpop.f32.mrb[0].mxu0
        %v941 = vadd.f32 %v851, %v940
        %v942 = vpop.f32.mrb[0].mxu0
        %943 = vmatprep.mubr.f32.mxu0 0.0
        %v944 = vand.u32 %v369, 4294901760
        %945 = vmatmul.mubr.f32.gmra.mrb[0].mxu0 %v944
        %v946 = vpop.f32.mrb[0].mxu0
        %v947 = vadd.f32 %v857, %v946
        %v948 = vpop.f32.mrb[0].mxu0
        %949 = vdwg.mxu0
        %v950 = vmul.f32 %v929, 30.0
        %v951 = vmul.f32 %v935, 30.0
        %v952 = vmul.f32 %v941, 30.0
        %v953 = vmul.f32 %v947, 30.0
        %v954 = vand.u32 2147483647, %v950
        %vm955 = vcmp.le.f32.partialorder %v954, 0.7853982
        %vm956 = vcmp.lt.s32.totalorder %v950, 0
        %v957 = vand.u32 %v950, 2139095040
        %v958 = vshrl.u32 %v957, 23
        %v959 = vsub.s32 %v958, 127
        %v960 = vand.u32 2147483647, %v950
        %v961 = vand.u32 %v960, 8388607
        %v962 = vor.u32 %v961, 8388608
        %v963 = vsub.s32 0, %v962
        %v964 = vadd.s32 %v959, 1
        %vm965 = vcmp.gt.s32.totalorder %v964, 0
        %v966 = vsel %vm965, %v964, 0
        %v967 = vshrl.u32 %v966, 5
        %v968 = vand.u32 %v966, 31
        %v969 = vsub.s32 32, %v968
        %v970 = vshrl.u32 683565275, %v969
        %v971 = vshll.u32 683565275, %v968
        %v972 = vshrl.u32 2475754826, %v969
        %v973 = vor.u32 %v971, %v972
        %v974 = vshll.u32 2475754826, %v968
        %v975 = vshrl.u32 2131351028, %v969
        %v976 = vor.u32 %v974, %v975
        %v977 = vshll.u32 2131351028, %v968
        %v978 = vshrl.u32 2102212464, %v969
        %v979 = vor.u32 %v977, %v978
        %v980 = vshll.u32 2102212464, %v968
        %v981 = vshrl.u32 920167782, %v969
        %v982 = vor.u32 %v980, %v981
        %v983 = vshll.u32 920167782, %v968
        %v984 = vshrl.u32 1326507024, %v969
        %v985 = vor.u32 %v983, %v984
        %vm986 = vcmp.lt.s32.totalorder %v967, 1
        %vm987 = vcmp.lt.s32.totalorder %v967, 2
        %vm988 = vcmp.lt.s32.totalorder %v967, 3
        %vm989 = vcmp.lt.s32.totalorder %v967, 4
        %v990 = vsel %vm986, %v970, %v973
        %v991 = vsel %vm989, %v979, 2102212464
        %v992 = vsel %vm988, %v976, %v991
        %v993 = vsel %vm987, %v990, %v992
        %v994 = vsel %vm986, %v973, %v976
        %v995 = vsel %vm989, %v982, 920167782
        %v996 = vsel %vm988, %v979, %v995
        %v997 = vsel %vm987, %v994, %v996
        %v998 = vsel %vm986, %v976, %v979
        %v999 = vsel %vm989, %v985, 1326507024
        %v1000 = vsel %vm988, %v982, %v999
        %v1001 = vsel %vm987, %v998, %v1000
        %v1002 = vshll.u32 %v962, 8
        %v1003 = vmul.u32.u64.compose %v1002, %v1001
        %v1004 = vextract.low.u32 %v1003
        %v1005 = vextract.high.u32 %v1003
        %v1006 = vmul.u32.u64.compose %v1002, %v997
        %v1007 = vextract.low.u32 %v1006
        %v1008 = vextract.high.u32 %v1006
        %v1009 = vmul.u32 %v1002, %v993
        %v1010 = vadd.s32 %v1005, %v1007
        %vm1011 = vc.u32 %v1005, %v1007
        %v1012 = vadd.s32 %v1008, 1
        %v1013 = vsel %vm1011, %v1012, %v1008
        %v1014 = vadd.s32 %v1009, %v1013
        %v1015 = vadd.s32 %v1014, 536870912
        %v1016 = vshrl.u32 %v1015, 30
        %v1017 = vshll.u32 %v1016, 30
        %v1018 = vsub.s32 %v1014, %v1017
        %vm1019 = vcmp.lt.s32.totalorder %v1018, 0
        %v1020 = vsub.s32 0, %v1018
        %v1021 = vsel %vm1019, %v1020, %v1018
        %v1022 = vclz %v1021
        %v1023 = vsub.s32 %v1022, 2
        %vm1024 = vcmp.gt.s32.totalorder 0, %v1023
        %v1025 = vsel %vm1024, 0, %v1023
        %v1026 = vsub.s32 32, %v1025
        %v1027 = vshll.u32 %v1018, %v1025
        %v1028 = vshrl.u32 %v1010, %v1026
        %v1029 = vor.u32 %v1027, %v1028
        %v1030 = vsub.s32 4294967266, %v1025
        %v1031 = vadd.s32 %v1030, 127
        %v1032 = vshll.u32 %v1031, 23
        %v1033 = vor.u32 4788187, %v1032
        %v1034 = vand.u32 2147483647, %v1033
        %v1036 = vcvt.s32.f32 %v1029
        %v1037 = vmul.f32 %v1036, %v1034
        %v1038 = vxor.u32 %v1037, 2147483648
        %v1039 = vsel %vm956, %v1038, %v1037
        %v1040 = vsub.s32 4, %v1016
        %v1041 = vsel %vm956, %v1040, %v1016
        %v1042 = vsel %vm955, %v950, %v1039
        %v1043 = vsel %vm955, 0, %v1041
        %v1044 = vcosq.f32.pop %v1042
        %v1045 = vsinq.f32.pop %v1042
        %vm1046 = vweird.f32 %v950
        %v1047 = vadd.s32 %v1043, 3
        %v1048 = vand.u32 %v1047, 3
        %vm1049 = vcmp.lt.s32.totalorder %v1048, 2
        %vm1050 = vcmp.eq.s32.totalorder %v1048, 0
        %v1051 = vxor.u32 %v1045, 2147483648
        %v1052 = vsel %vm1050, %v1044, %v1051
        %vm1053 = vcmp.eq.s32.totalorder %v1048, 2
        %v1054 = vxor.u32 %v1044, 2147483648
        %v1055 = vsel %vm1053, %v1054, %v1045
        %v1056 = vsel %vm1049, %v1052, %v1055
        %v1057 = vsel %vm1046, nan, %v1056
        %v1058 = vand.u32 2147483647, %v951
        %vm1059 = vcmp.le.f32.partialorder %v1058, 0.7853982
        %vm1060 = vcmp.lt.s32.totalorder %v951, 0
        %v1061 = vand.u32 %v951, 2139095040
        %v1062 = vshrl.u32 %v1061, 23
        %v1063 = vsub.s32 %v1062, 127
        %v1064 = vand.u32 2147483647, %v951
        %v1065 = vand.u32 %v1064, 8388607
        %v1066 = vor.u32 %v1065, 8388608
        %v1067 = vsub.s32 0, %v1066
        %v1068 = vadd.s32 %v1063, 1
        %vm1069 = vcmp.gt.s32.totalorder %v1068, 0
        %v1070 = vsel %vm1069, %v1068, 0
        %v1071 = vshrl.u32 %v1070, 5
        %v1072 = vand.u32 %v1070, 31
        %v1073 = vsub.s32 32, %v1072
        %v1074 = vshrl.u32 683565275, %v1073
        %v1075 = vshll.u32 683565275, %v1072
        %v1076 = vshrl.u32 2475754826, %v1073
        %v1077 = vor.u32 %v1075, %v1076
        %v1078 = vshll.u32 2475754826, %v1072
        %v1079 = vshrl.u32 2131351028, %v1073
        %v1080 = vor.u32 %v1078, %v1079
        %v1081 = vshll.u32 2131351028, %v1072
        %v1082 = vshrl.u32 2102212464, %v1073
        %v1083 = vor.u32 %v1081, %v1082
        %v1084 = vshll.u32 2102212464, %v1072
        %v1085 = vshrl.u32 920167782, %v1073
        %v1086 = vor.u32 %v1084, %v1085
        %v1087 = vshll.u32 920167782, %v1072
        %v1088 = vshrl.u32 1326507024, %v1073
        %v1089 = vor.u32 %v1087, %v1088
        %vm1090 = vcmp.lt.s32.totalorder %v1071, 1
        %vm1091 = vcmp.lt.s32.totalorder %v1071, 2
        %vm1092 = vcmp.lt.s32.totalorder %v1071, 3
        %vm1093 = vcmp.lt.s32.totalorder %v1071, 4
        %v1094 = vsel %vm1090, %v1074, %v1077
        %v1095 = vsel %vm1093, %v1083, 2102212464
        %v1096 = vsel %vm1092, %v1080, %v1095
        %v1097 = vsel %vm1091, %v1094, %v1096
        %v1098 = vsel %vm1090, %v1077, %v1080
        %v1099 = vsel %vm1093, %v1086, 920167782
        %v1100 = vsel %vm1092, %v1083, %v1099
        %v1101 = vsel %vm1091, %v1098, %v1100
        %v1102 = vsel %vm1090, %v1080, %v1083
        %v1103 = vsel %vm1093, %v1089, 1326507024
        %v1104 = vsel %vm1092, %v1086, %v1103
        %v1105 = vsel %vm1091, %v1102, %v1104
        %v1106 = vshll.u32 %v1066, 8
        %v1107 = vmul.u32.u64.compose %v1106, %v1105
        %v1108 = vextract.low.u32 %v1107
        %v1109 = vextract.high.u32 %v1107
        %v1110 = vmul.u32.u64.compose %v1106, %v1101
        %v1111 = vextract.low.u32 %v1110
        %v1112 = vextract.high.u32 %v1110
        %v1113 = vmul.u32 %v1106, %v1097
        %v1114 = vadd.s32 %v1109, %v1111
        %vm1115 = vc.u32 %v1109, %v1111
        %v1116 = vadd.s32 %v1112, 1
        %v1117 = vsel %vm1115, %v1116, %v1112
        %v1118 = vadd.s32 %v1113, %v1117
        %v1119 = vadd.s32 %v1118, 536870912
        %v1120 = vshrl.u32 %v1119, 30
        %v1121 = vshll.u32 %v1120, 30
        %v1122 = vsub.s32 %v1118, %v1121
        %vm1123 = vcmp.lt.s32.totalorder %v1122, 0
        %v1124 = vsub.s32 0, %v1122
        %v1125 = vsel %vm1123, %v1124, %v1122
        %v1126 = vclz %v1125
        %v1127 = vsub.s32 %v1126, 2
        %vm1128 = vcmp.gt.s32.totalorder 0, %v1127
        %v1129 = vsel %vm1128, 0, %v1127
        %v1130 = vsub.s32 32, %v1129
        %v1131 = vshll.u32 %v1122, %v1129
        %v1132 = vshrl.u32 %v1114, %v1130
        %v1133 = vor.u32 %v1131, %v1132
        %v1134 = vsub.s32 4294967266, %v1129
        %v1135 = vadd.s32 %v1134, 127
        %v1136 = vshll.u32 %v1135, 23
        %v1137 = vor.u32 4788187, %v1136
        %v1138 = vand.u32 2147483647, %v1137
        %v1140 = vcvt.s32.f32 %v1133
        %v1141 = vmul.f32 %v1140, %v1138
        %v1142 = vxor.u32 %v1141, 2147483648
        %v1143 = vsel %vm1060, %v1142, %v1141
        %v1144 = vsub.s32 4, %v1120
        %v1145 = vsel %vm1060, %v1144, %v1120
        %v1146 = vsel %vm1059, %v951, %v1143
        %v1147 = vsel %vm1059, 0, %v1145
        %v1148 = vcosq.f32.pop %v1146
        %v1149 = vsinq.f32.pop %v1146
        %vm1150 = vweird.f32 %v951
        %v1151 = vadd.s32 %v1147, 3
        %v1152 = vand.u32 %v1151, 3
        %vm1153 = vcmp.lt.s32.totalorder %v1152, 2
        %vm1154 = vcmp.eq.s32.totalorder %v1152, 0
        %v1155 = vxor.u32 %v1149, 2147483648
        %v1156 = vsel %vm1154, %v1148, %v1155
        %vm1157 = vcmp.eq.s32.totalorder %v1152, 2
        %v1158 = vxor.u32 %v1148, 2147483648
        %v1159 = vsel %vm1157, %v1158, %v1149
        %v1160 = vsel %vm1153, %v1156, %v1159
        %v1161 = vsel %vm1150, nan, %v1160
        %v1162 = vand.u32 2147483647, %v952
        %vm1163 = vcmp.le.f32.partialorder %v1162, 0.7853982
        %vm1164 = vcmp.lt.s32.totalorder %v952, 0
        %v1165 = vand.u32 %v952, 2139095040
        %v1166 = vshrl.u32 %v1165, 23
        %v1167 = vsub.s32 %v1166, 127
        %v1168 = vand.u32 2147483647, %v952
        %v1169 = vand.u32 %v1168, 8388607
        %v1170 = vor.u32 %v1169, 8388608
        %v1171 = vsub.s32 0, %v1170
        %v1172 = vadd.s32 %v1167, 1
        %vm1173 = vcmp.gt.s32.totalorder %v1172, 0
        %v1174 = vsel %vm1173, %v1172, 0
        %v1175 = vshrl.u32 %v1174, 5
        %v1176 = vand.u32 %v1174, 31
        %v1177 = vsub.s32 32, %v1176
        %v1178 = vshrl.u32 683565275, %v1177
        %v1179 = vshll.u32 683565275, %v1176
        %v1180 = vshrl.u32 2475754826, %v1177
        %v1181 = vor.u32 %v1179, %v1180
        %v1182 = vshll.u32 2475754826, %v1176
        %v1183 = vshrl.u32 2131351028, %v1177
        %v1184 = vor.u32 %v1182, %v1183
        %v1185 = vshll.u32 2131351028, %v1176
        %v1186 = vshrl.u32 2102212464, %v1177
        %v1187 = vor.u32 %v1185, %v1186
        %v1188 = vshll.u32 2102212464, %v1176
        %v1189 = vshrl.u32 920167782, %v1177
        %v1190 = vor.u32 %v1188, %v1189
        %v1191 = vshll.u32 920167782, %v1176
        %v1192 = vshrl.u32 1326507024, %v1177
        %v1193 = vor.u32 %v1191, %v1192
        %vm1194 = vcmp.lt.s32.totalorder %v1175, 1
        %vm1195 = vcmp.lt.s32.totalorder %v1175, 2
        %vm1196 = vcmp.lt.s32.totalorder %v1175, 3
        %vm1197 = vcmp.lt.s32.totalorder %v1175, 4
        %v1198 = vsel %vm1194, %v1178, %v1181
        %v1199 = vsel %vm1197, %v1187, 2102212464
        %v1200 = vsel %vm1196, %v1184, %v1199
        %v1201 = vsel %vm1195, %v1198, %v1200
        %v1202 = vsel %vm1194, %v1181, %v1184
        %v1203 = vsel %vm1197, %v1190, 920167782
        %v1204 = vsel %vm1196, %v1187, %v1203
        %v1205 = vsel %vm1195, %v1202, %v1204
        %v1206 = vsel %vm1194, %v1184, %v1187
        %v1207 = vsel %vm1197, %v1193, 1326507024
        %v1208 = vsel %vm1196, %v1190, %v1207
        %v1209 = vsel %vm1195, %v1206, %v1208
        %v1210 = vshll.u32 %v1170, 8
        %v1211 = vmul.u32.u64.compose %v1210, %v1209
        %v1212 = vextract.low.u32 %v1211
        %v1213 = vextract.high.u32 %v1211
        %v1214 = vmul.u32.u64.compose %v1210, %v1205
        %v1215 = vextract.low.u32 %v1214
        %v1216 = vextract.high.u32 %v1214
        %v1217 = vmul.u32 %v1210, %v1201
        %v1218 = vadd.s32 %v1213, %v1215
        %vm1219 = vc.u32 %v1213, %v1215
        %v1220 = vadd.s32 %v1216, 1
        %v1221 = vsel %vm1219, %v1220, %v1216
        %v1222 = vadd.s32 %v1217, %v1221
        %v1223 = vadd.s32 %v1222, 536870912
        %v1224 = vshrl.u32 %v1223, 30
        %v1225 = vshll.u32 %v1224, 30
        %v1226 = vsub.s32 %v1222, %v1225
        %vm1227 = vcmp.lt.s32.totalorder %v1226, 0
        %v1228 = vsub.s32 0, %v1226
        %v1229 = vsel %vm1227, %v1228, %v1226
        %v1230 = vclz %v1229
        %v1231 = vsub.s32 %v1230, 2
        %vm1232 = vcmp.gt.s32.totalorder 0, %v1231
        %v1233 = vsel %vm1232, 0, %v1231
        %v1234 = vsub.s32 32, %v1233
        %v1235 = vshll.u32 %v1226, %v1233
        %v1236 = vshrl.u32 %v1218, %v1234
        %v1237 = vor.u32 %v1235, %v1236
        %v1238 = vsub.s32 4294967266, %v1233
        %v1239 = vadd.s32 %v1238, 127
        %v1240 = vshll.u32 %v1239, 23
        %v1241 = vor.u32 4788187, %v1240
        %v1242 = vand.u32 2147483647, %v1241
        %v1244 = vcvt.s32.f32 %v1237
        %v1245 = vmul.f32 %v1244, %v1242
        %v1246 = vxor.u32 %v1245, 2147483648
        %v1247 = vsel %vm1164, %v1246, %v1245
        %v1248 = vsub.s32 4, %v1224
        %v1249 = vsel %vm1164, %v1248, %v1224
        %v1250 = vsel %vm1163, %v952, %v1247
        %v1251 = vsel %vm1163, 0, %v1249
        %v1252 = vcosq.f32.pop %v1250
        %v1253 = vsinq.f32.pop %v1250
        %vm1254 = vweird.f32 %v952
        %v1255 = vadd.s32 %v1251, 3
        %v1256 = vand.u32 %v1255, 3
        %vm1257 = vcmp.lt.s32.totalorder %v1256, 2
        %vm1258 = vcmp.eq.s32.totalorder %v1256, 0
        %v1259 = vxor.u32 %v1253, 2147483648
        %v1260 = vsel %vm1258, %v1252, %v1259
        %vm1261 = vcmp.eq.s32.totalorder %v1256, 2
        %v1262 = vxor.u32 %v1252, 2147483648
        %v1263 = vsel %vm1261, %v1262, %v1253
        %v1264 = vsel %vm1257, %v1260, %v1263
        %v1265 = vsel %vm1254, nan, %v1264
        %v1266 = vand.u32 2147483647, %v953
        %vm1267 = vcmp.le.f32.partialorder %v1266, 0.7853982
        %vm1268 = vcmp.lt.s32.totalorder %v953, 0
        %v1269 = vand.u32 %v953, 2139095040
        %v1270 = vshrl.u32 %v1269, 23
        %v1271 = vsub.s32 %v1270, 127
        %v1272 = vand.u32 2147483647, %v953
        %v1273 = vand.u32 %v1272, 8388607
        %v1274 = vor.u32 %v1273, 8388608
        %v1275 = vsub.s32 0, %v1274
        %v1276 = vadd.s32 %v1271, 1
        %vm1277 = vcmp.gt.s32.totalorder %v1276, 0
        %v1278 = vsel %vm1277, %v1276, 0
        %v1279 = vshrl.u32 %v1278, 5
        %v1280 = vand.u32 %v1278, 31
        %v1281 = vsub.s32 32, %v1280
        %v1282 = vshrl.u32 683565275, %v1281
        %v1283 = vshll.u32 683565275, %v1280
        %v1284 = vshrl.u32 2475754826, %v1281
        %v1285 = vor.u32 %v1283, %v1284
        %v1286 = vshll.u32 2475754826, %v1280
        %v1287 = vshrl.u32 2131351028, %v1281
        %v1288 = vor.u32 %v1286, %v1287
        %v1289 = vshll.u32 2131351028, %v1280
        %v1290 = vshrl.u32 2102212464, %v1281
        %v1291 = vor.u32 %v1289, %v1290
        %v1292 = vshll.u32 2102212464, %v1280
        %v1293 = vshrl.u32 920167782, %v1281
        %v1294 = vor.u32 %v1292, %v1293
        %v1295 = vshll.u32 920167782, %v1280
        %v1296 = vshrl.u32 1326507024, %v1281
        %v1297 = vor.u32 %v1295, %v1296
        %vm1298 = vcmp.lt.s32.totalorder %v1279, 1
        %vm1299 = vcmp.lt.s32.totalorder %v1279, 2
        %vm1300 = vcmp.lt.s32.totalorder %v1279, 3
        %vm1301 = vcmp.lt.s32.totalorder %v1279, 4
        %v1302 = vsel %vm1298, %v1282, %v1285
        %v1303 = vsel %vm1301, %v1291, 2102212464
        %v1304 = vsel %vm1300, %v1288, %v1303
        %v1305 = vsel %vm1299, %v1302, %v1304
        %v1306 = vsel %vm1298, %v1285, %v1288
        %v1307 = vsel %vm1301, %v1294, 920167782
        %v1308 = vsel %vm1300, %v1291, %v1307
        %v1309 = vsel %vm1299, %v1306, %v1308
        %v1310 = vsel %vm1298, %v1288, %v1291
        %v1311 = vsel %vm1301, %v1297, 1326507024
        %v1312 = vsel %vm1300, %v1294, %v1311
        %v1313 = vsel %vm1299, %v1310, %v1312
        %v1314 = vshll.u32 %v1274, 8
        %v1315 = vmul.u32.u64.compose %v1314, %v1313
        %v1316 = vextract.low.u32 %v1315
        %v1317 = vextract.high.u32 %v1315
        %v1318 = vmul.u32.u64.compose %v1314, %v1309
        %v1319 = vextract.low.u32 %v1318
        %v1320 = vextract.high.u32 %v1318
        %v1321 = vmul.u32 %v1314, %v1305
        %v1322 = vadd.s32 %v1317, %v1319
        %vm1323 = vc.u32 %v1317, %v1319
        %v1324 = vadd.s32 %v1320, 1
        %v1325 = vsel %vm1323, %v1324, %v1320
        %v1326 = vadd.s32 %v1321, %v1325
        %v1327 = vadd.s32 %v1326, 536870912
        %v1328 = vshrl.u32 %v1327, 30
        %v1329 = vshll.u32 %v1328, 30
        %v1330 = vsub.s32 %v1326, %v1329
        %vm1331 = vcmp.lt.s32.totalorder %v1330, 0
        %v1332 = vsub.s32 0, %v1330
        %v1333 = vsel %vm1331, %v1332, %v1330
        %v1334 = vclz %v1333
        %v1335 = vsub.s32 %v1334, 2
        %vm1336 = vcmp.gt.s32.totalorder 0, %v1335
        %v1337 = vsel %vm1336, 0, %v1335
        %v1338 = vsub.s32 32, %v1337
        %v1339 = vshll.u32 %v1330, %v1337
        %v1340 = vshrl.u32 %v1322, %v1338
        %v1341 = vor.u32 %v1339, %v1340
        %v1342 = vsub.s32 4294967266, %v1337
        %v1343 = vadd.s32 %v1342, 127
        %v1344 = vshll.u32 %v1343, 23
        %v1345 = vor.u32 4788187, %v1344
        %v1346 = vand.u32 2147483647, %v1345
        %v1348 = vcvt.s32.f32 %v1341
        %v1349 = vmul.f32 %v1348, %v1346
        %v1350 = vxor.u32 %v1349, 2147483648
        %v1351 = vsel %vm1268, %v1350, %v1349
        %v1352 = vsub.s32 4, %v1328
        %v1353 = vsel %vm1268, %v1352, %v1328
        %v1354 = vsel %vm1267, %v953, %v1351
        %v1355 = vsel %vm1267, 0, %v1353
        %v1356 = vcosq.f32.pop %v1354
        %v1357 = vsinq.f32.pop %v1354
        %vm1358 = vweird.f32 %v953
        %v1359 = vadd.s32 %v1355, 3
        %v1360 = vand.u32 %v1359, 3
        %vm1361 = vcmp.lt.s32.totalorder %v1360, 2
        %vm1362 = vcmp.eq.s32.totalorder %v1360, 0
        %v1363 = vxor.u32 %v1357, 2147483648
        %v1364 = vsel %vm1362, %v1356, %v1363
        %vm1365 = vcmp.eq.s32.totalorder %v1360, 2
        %v1366 = vxor.u32 %v1356, 2147483648
        %v1367 = vsel %vm1365, %v1366, %v1357
        %v1368 = vsel %vm1361, %v1364, %v1367
        %v1369 = vsel %vm1358, nan, %v1368
        %v1370 = vld [vmem:[%s3] sm:$0xff]
        %v1371 = vld [vmem:[%s3 + $0x8] sm:$0xff]
        %v1372 = vld [vmem:[%s3 + $0x10] sm:$0xff]
        %v1373 = vld [vmem:[%s3 + $0x18] sm:$0xff]
        %v1374 = vld [vmem:[%s4] sm:$0xff]
        %v1375 = vld [vmem:[%s4 + $0x8] sm:$0xff]
        %v1376 = vld [vmem:[%s4 + $0x10] sm:$0xff]
        %v1377 = vld [vmem:[%s4 + $0x18] sm:$0xff]
        %1379 = vset.pattern.permute.xlu0 0
        %1380 = vperm.xlu0 %1379, %v1374
        %v1381 = vpop.permute.xlu0 %1380
        %1384 = vset.pattern.permute.xlu0 0
        %1385 = vperm.xlu0 %1384, %v1375
        %v1386 = vpop.permute.xlu0 %1385
        %1389 = vset.pattern.permute.xlu0 0
        %1390 = vperm.xlu0 %1389, %v1376
        %v1391 = vpop.permute.xlu0 %1390
        %1394 = vset.pattern.permute.xlu0 0
        %1395 = vperm.xlu0 %1394, %v1377
        %v1396 = vpop.permute.xlu0 %1395
        %vm1398 = vcmask 261120
        %v1400 = vsel %vm1398, %v1370, 0
        %v1403 = vsel %vm1398, %v1371, 0
        %v1406 = vsel %vm1398, %v1372, 0
        %v1409 = vsel %vm1398, %v1373, 0
        %1411 = vmatprep.subr.mxu0 0.0
        %v1412 = vand.u32 %v1057, 4294901760
        %1413 = vmatpush1.msra.mxu0 %v1412
        %1414 = vmatprep.subr.mxu0 0.0
        %v1415 = vand.u32 %v1161, 4294901760
        %1416 = vmatpush1.msra.mxu0 %v1415
        %1417 = vmatprep.subr.mxu0 0.0
        %v1418 = vand.u32 %v1265, 4294901760
        %1419 = vmatpush1.msra.mxu0 %v1418
        %1420 = vmatprep.subr.mxu0 0.0
        %v1421 = vand.u32 %v1369, 4294901760
        %1422 = vmatpush1.msra.mxu0 %v1421
        %1423 = vmatprep.subr.mxu0 0.0
        %1424 = vmatpush1.msra.mxu0 0.0
        %1425 = vmatprep.subr.mxu0 0.0
        %1426 = vmatpush1.msra.mxu0 0.0
        %1427 = vmatprep.subr.mxu0 0.0
        %1428 = vmatpush1.msra.mxu0 0.0
        %1429 = vmatprep.subr.mxu0 0.0
        %1430 = vmatpush1.msra.mxu0 0.0
        %1431 = vmatprep.subr.mxu0 0.0
        %1432 = vmatpush1.msra.mxu0 0.0
        %1433 = vmatprep.subr.mxu0 0.0
        %1434 = vmatpush1.msra.mxu0 0.0
        %1435 = vmatprep.subr.mxu0 0.0
        %1436 = vmatpush1.msra.mxu0 0.0
        %1437 = vmatprep.subr.mxu0 0.0
        %1438 = vmatpush1.msra.mxu0 0.0
        %1439 = vmatprep.subr.mxu0 0.0
        %1440 = vmatpush1.msra.mxu0 0.0
        %1441 = vmatprep.subr.mxu0 0.0
        %1442 = vmatpush1.msra.mxu0 0.0
        %1443 = vmatprep.subr.mxu0 0.0
        %1444 = vmatpush1.msra.mxu0 0.0
        %1445 = vmatprep.subr.mxu0 0.0
        %1446 = vmatpush1.msra.mxu0 0.0
        %1447 = vmatprep.subr.mxu0 0.0
        %1448 = vmatpush1.msra.mxu0 0.0
        %1449 = vmatprep.subr.mxu0 0.0
        %1450 = vmatpush1.msra.mxu0 0.0
        %1451 = vmatprep.subr.mxu0 0.0
        %1452 = vmatpush1.msra.mxu0 0.0
        %1453 = vmatprep.subr.mxu0 0.0
        %1454 = vmatpush1.msra.mxu0 0.0
        %1455 = vmatprep.subr.mxu0 0.0
        %1456 = vmatpush1.msra.mxu0 0.0
        %1457 = vmatprep.subr.mxu0 0.0
        %1458 = vmatpush1.msra.mxu0 0.0
        %1459 = vmatprep.subr.mxu0 0.0
        %1460 = vmatpush1.msra.mxu0 0.0
        %1461 = vmatprep.subr.mxu0 0.0
        %1462 = vmatpush1.msra.mxu0 0.0
        %1463 = vmatprep.subr.mxu0 0.0
        %1464 = vmatpush1.msra.mxu0 0.0
        %1465 = vmatprep.subr.mxu0 0.0
        %1466 = vmatpush1.msra.mxu0 0.0
        %1467 = vmatprep.subr.mxu0 0.0
        %1468 = vmatpush1.msra.mxu0 0.0
        %1469 = vmatprep.subr.mxu0 0.0
        %1470 = vmatpush1.msra.mxu0 0.0
        %1471 = vmatprep.subr.mxu0 0.0
        %1472 = vmatpush1.msra.mxu0 0.0
        %1473 = vmatprep.subr.mxu0 0.0
        %1474 = vmatpush1.msra.mxu0 0.0
        %1475 = vmatprep.subr.mxu0 0.0
        %1476 = vmatpush1.msra.mxu0 0.0
        %1477 = vmatprep.subr.mxu0 0.0
        %1478 = vmatpush1.msra.mxu0 0.0
        %1479 = vmatprep.mubr.f32.mxu0 0.0
        %v1480 = vand.u32 %v1400, 4294901760
        %v1481 = vsub.f32 %v1400, %v1480
        %v1482 = vand.u32 %v1481, 4294901760
        %v1483 = vsub.f32 %v1481, %v1482
        %v1484 = vand.u32 %v1483, 4294901760
        %1485 = vmatmul.mubr.f32.gmra.mrb[0].mxu0 %v1484
        %v1486 = vpop.f32.mrb[0].mxu0
        %v1487 = vadd.f32 %v1381, %v1486
        %v1488 = vpop.f32.mrb[0].mxu0
        %1489 = vmatprep.mubr.f32.mxu0 0.0
        %v1490 = vand.u32 %v1403, 4294901760
        %v1491 = vsub.f32 %v1403, %v1490
        %v1492 = vand.u32 %v1491, 4294901760
        %v1493 = vsub.f32 %v1491, %v1492
        %v1494 = vand.u32 %v1493, 4294901760
        %1495 = vmatmul.mubr.f32.gmra.mrb[0].mxu0 %v1494
        %v1496 = vpop.f32.mrb[0].mxu0
        %v1497 = vadd.f32 %v1386, %v1496
        %v1498 = vpop.f32.mrb[0].mxu0
        %1499 = vmatprep.mubr.f32.mxu0 0.0
        %v1500 = vand.u32 %v1406, 4294901760
        %v1501 = vsub.f32 %v1406, %v1500
        %v1502 = vand.u32 %v1501, 4294901760
        %v1503 = vsub.f32 %v1501, %v1502
        %v1504 = vand.u32 %v1503, 4294901760
        %1505 = vmatmul.mubr.f32.gmra.mrb[0].mxu0 %v1504
        %v1506 = vpop.f32.mrb[0].mxu0
        %v1507 = vadd.f32 %v1391, %v1506
        %v1508 = vpop.f32.mrb[0].mxu0
        %1509 = vmatprep.mubr.f32.mxu0 0.0
        %v1510 = vand.u32 %v1409, 4294901760
        %v1511 = vsub.f32 %v1409, %v1510
        %v1512 = vand.u32 %v1511, 4294901760
        %v1513 = vsub.f32 %v1511, %v1512
        %v1514 = vand.u32 %v1513, 4294901760
        %1515 = vmatmul.mubr.f32.gmra.mrb[0].mxu0 %v1514
        %v1516 = vpop.f32.mrb[0].mxu0
        %v1517 = vadd.f32 %v1396, %v1516
        %v1518 = vpop.f32.mrb[0].mxu0
        %1519 = vdwg.mxu0
        %1520 = vmatprep.subr.mxu0 0.0
        %v1521 = vand.u32 %v1057, 4294901760
        %v1522 = vsub.f32 %v1057, %v1521
        %v1523 = vand.u32 %v1522, 4294901760
        %v1524 = vsub.f32 %v1522, %v1523
        %v1525 = vand.u32 %v1524, 4294901760
        %1526 = vmatpush1.msra.mxu0 %v1525
        %1527 = vmatprep.subr.mxu0 0.0
        %v1528 = vand.u32 %v1161, 4294901760
        %v1529 = vsub.f32 %v1161, %v1528
        %v1530 = vand.u32 %v1529, 4294901760
        %v1531 = vsub.f32 %v1529, %v1530
        %v1532 = vand.u32 %v1531, 4294901760
        %1533 = vmatpush1.msra.mxu0 %v1532
        %1534 = vmatprep.subr.mxu0 0.0
        %v1535 = vand.u32 %v1265, 4294901760
        %v1536 = vsub.f32 %v1265, %v1535
        %v1537 = vand.u32 %v1536, 4294901760
        %v1538 = vsub.f32 %v1536, %v1537
        %v1539 = vand.u32 %v1538, 4294901760
        %1540 = vmatpush1.msra.mxu0 %v1539
        %1541 = vmatprep.subr.mxu0 0.0
        %v1542 = vand.u32 %v1369, 4294901760
        %v1543 = vsub.f32 %v1369, %v1542
        %v1544 = vand.u32 %v1543, 4294901760
        %v1545 = vsub.f32 %v1543, %v1544
        %v1546 = vand.u32 %v1545, 4294901760
        %1547 = vmatpush1.msra.mxu0 %v1546
        %1548 = vmatprep.subr.mxu0 0.0
        %1549 = vmatpush1.msra.mxu0 0.0
        %1550 = vmatprep.subr.mxu0 0.0
        %1551 = vmatpush1.msra.mxu0 0.0
        %1552 = vmatprep.subr.mxu0 0.0
        %1553 = vmatpush1.msra.mxu0 0.0
        %1554 = vmatprep.subr.mxu0 0.0
        %1555 = vmatpush1.msra.mxu0 0.0
        %1556 = vmatprep.subr.mxu0 0.0
        %1557 = vmatpush1.msra.mxu0 0.0
        %1558 = vmatprep.subr.mxu0 0.0
        %1559 = vmatpush1.msra.mxu0 0.0
        %1560 = vmatprep.subr.mxu0 0.0
        %1561 = vmatpush1.msra.mxu0 0.0
        %1562 = vmatprep.subr.mxu0 0.0
        %1563 = vmatpush1.msra.mxu0 0.0
        %1564 = vmatprep.subr.mxu0 0.0
        %1565 = vmatpush1.msra.mxu0 0.0
        %1566 = vmatprep.subr.mxu0 0.0
        %1567 = vmatpush1.msra.mxu0 0.0
        %1568 = vmatprep.subr.mxu0 0.0
        %1569 = vmatpush1.msra.mxu0 0.0
        %1570 = vmatprep.subr.mxu0 0.0
        %1571 = vmatpush1.msra.mxu0 0.0
        %1572 = vmatprep.subr.mxu0 0.0
        %1573 = vmatpush1.msra.mxu0 0.0
        %1574 = vmatprep.subr.mxu0 0.0
        %1575 = vmatpush1.msra.mxu0 0.0
        %1576 = vmatprep.subr.mxu0 0.0
        %1577 = vmatpush1.msra.mxu0 0.0
        %1578 = vmatprep.subr.mxu0 0.0
        %1579 = vmatpush1.msra.mxu0 0.0
        %1580 = vmatprep.subr.mxu0 0.0
        %1581 = vmatpush1.msra.mxu0 0.0
        %1582 = vmatprep.subr.mxu0 0.0
        %1583 = vmatpush1.msra.mxu0 0.0
        %1584 = vmatprep.subr.mxu0 0.0
        %1585 = vmatpush1.msra.mxu0 0.0
        %1586 = vmatprep.subr.mxu0 0.0
        %1587 = vmatpush1.msra.mxu0 0.0
        %1588 = vmatprep.subr.mxu0 0.0
        %1589 = vmatpush1.msra.mxu0 0.0
        %1590 = vmatprep.subr.mxu0 0.0
        %1591 = vmatpush1.msra.mxu0 0.0
        %1592 = vmatprep.subr.mxu0 0.0
        %1593 = vmatpush1.msra.mxu0 0.0
        %1594 = vmatprep.subr.mxu0 0.0
        %1595 = vmatpush1.msra.mxu0 0.0
        %1596 = vmatprep.subr.mxu0 0.0
        %1597 = vmatpush1.msra.mxu0 0.0
        %1598 = vmatprep.subr.mxu0 0.0
        %1599 = vmatpush1.msra.mxu0 0.0
        %1600 = vmatprep.subr.mxu0 0.0
        %1601 = vmatpush1.msra.mxu0 0.0
        %1602 = vmatprep.subr.mxu0 0.0
        %1603 = vmatpush1.msra.mxu0 0.0
        %1604 = vmatprep.mubr.f32.mxu0 0.0
        %v1605 = vand.u32 %v1400, 4294901760
        %1606 = vmatmul.mubr.f32.gmra.mrb[0].mxu0 %v1605
        %v1607 = vpop.f32.mrb[0].mxu0
        %v1608 = vadd.f32 %v1487, %v1607
        %v1609 = vpop.f32.mrb[0].mxu0
        %1610 = vmatprep.mubr.f32.mxu0 0.0
        %v1611 = vand.u32 %v1403, 4294901760
        %1612 = vmatmul.mubr.f32.gmra.mrb[0].mxu0 %v1611
        %v1613 = vpop.f32.mrb[0].mxu0
        %v1614 = vadd.f32 %v1497, %v1613
        %v1615 = vpop.f32.mrb[0].mxu0
        %1616 = vmatprep.mubr.f32.mxu0 0.0
        %v1617 = vand.u32 %v1406, 4294901760
        %1618 = vmatmul.mubr.f32.gmra.mrb[0].mxu0 %v1617
        %v1619 = vpop.f32.mrb[0].mxu0
        %v1620 = vadd.f32 %v1507, %v1619
        %v1621 = vpop.f32.mrb[0].mxu0
        %1622 = vmatprep.mubr.f32.mxu0 0.0
        %v1623 = vand.u32 %v1409, 4294901760
        %1624 = vmatmul.mubr.f32.gmra.mrb[0].mxu0 %v1623
        %v1625 = vpop.f32.mrb[0].mxu0
        %v1626 = vadd.f32 %v1517, %v1625
        %v1627 = vpop.f32.mrb[0].mxu0
        %1628 = vdwg.mxu0
        %1629 = vmatprep.subr.mxu0 0.0
        %v1630 = vand.u32 %v1057, 4294901760
        %v1631 = vsub.f32 %v1057, %v1630
        %1632 = vmatpush1.msra.mxu0 %v1631
        %1633 = vmatprep.subr.mxu0 0.0
        %v1634 = vand.u32 %v1161, 4294901760
        %v1635 = vsub.f32 %v1161, %v1634
        %1636 = vmatpush1.msra.mxu0 %v1635
        %1637 = vmatprep.subr.mxu0 0.0
        %v1638 = vand.u32 %v1265, 4294901760
        %v1639 = vsub.f32 %v1265, %v1638
        %1640 = vmatpush1.msra.mxu0 %v1639
        %1641 = vmatprep.subr.mxu0 0.0
        %v1642 = vand.u32 %v1369, 4294901760
        %v1643 = vsub.f32 %v1369, %v1642
        %1644 = vmatpush1.msra.mxu0 %v1643
        %1645 = vmatprep.subr.mxu0 0.0
        %1646 = vmatpush1.msra.mxu0 0.0
        %1647 = vmatprep.subr.mxu0 0.0
        %1648 = vmatpush1.msra.mxu0 0.0
        %1649 = vmatprep.subr.mxu0 0.0
        %1650 = vmatpush1.msra.mxu0 0.0
        %1651 = vmatprep.subr.mxu0 0.0
        %1652 = vmatpush1.msra.mxu0 0.0
        %1653 = vmatprep.subr.mxu0 0.0
        %1654 = vmatpush1.msra.mxu0 0.0
        %1655 = vmatprep.subr.mxu0 0.0
        %1656 = vmatpush1.msra.mxu0 0.0
        %1657 = vmatprep.subr.mxu0 0.0
        %1658 = vmatpush1.msra.mxu0 0.0
        %1659 = vmatprep.subr.mxu0 0.0
        %1660 = vmatpush1.msra.mxu0 0.0
        %1661 = vmatprep.subr.mxu0 0.0
        %1662 = vmatpush1.msra.mxu0 0.0
        %1663 = vmatprep.subr.mxu0 0.0
        %1664 = vmatpush1.msra.mxu0 0.0
        %1665 = vmatprep.subr.mxu0 0.0
        %1666 = vmatpush1.msra.mxu0 0.0
        %1667 = vmatprep.subr.mxu0 0.0
        %1668 = vmatpush1.msra.mxu0 0.0
        %1669 = vmatprep.subr.mxu0 0.0
        %1670 = vmatpush1.msra.mxu0 0.0
        %1671 = vmatprep.subr.mxu0 0.0
        %1672 = vmatpush1.msra.mxu0 0.0
        %1673 = vmatprep.subr.mxu0 0.0
        %1674 = vmatpush1.msra.mxu0 0.0
        %1675 = vmatprep.subr.mxu0 0.0
        %1676 = vmatpush1.msra.mxu0 0.0
        %1677 = vmatprep.subr.mxu0 0.0
        %1678 = vmatpush1.msra.mxu0 0.0
        %1679 = vmatprep.subr.mxu0 0.0
        %1680 = vmatpush1.msra.mxu0 0.0
        %1681 = vmatprep.subr.mxu0 0.0
        %1682 = vmatpush1.msra.mxu0 0.0
        %1683 = vmatprep.subr.mxu0 0.0
        %1684 = vmatpush1.msra.mxu0 0.0
        %1685 = vmatprep.subr.mxu0 0.0
        %1686 = vmatpush1.msra.mxu0 0.0
        %1687 = vmatprep.subr.mxu0 0.0
        %1688 = vmatpush1.msra.mxu0 0.0
        %1689 = vmatprep.subr.mxu0 0.0
        %1690 = vmatpush1.msra.mxu0 0.0
        %1691 = vmatprep.subr.mxu0 0.0
        %1692 = vmatpush1.msra.mxu0 0.0
        %1693 = vmatprep.subr.mxu0 0.0
        %1694 = vmatpush1.msra.mxu0 0.0
        %1695 = vmatprep.subr.mxu0 0.0
        %1696 = vmatpush1.msra.mxu0 0.0
        %1697 = vmatprep.subr.mxu0 0.0
        %1698 = vmatpush1.msra.mxu0 0.0
        %1699 = vmatprep.subr.mxu0 0.0
        %1700 = vmatpush1.msra.mxu0 0.0
        %1701 = vmatprep.mubr.f32.mxu0 0.0
        %v1702 = vand.u32 %v1400, 4294901760
        %v1703 = vsub.f32 %v1400, %v1702
        %1704 = vmatmul.mubr.f32.gmra.mrb[0].mxu0 %v1703
        %v1705 = vpop.f32.mrb[0].mxu0
        %v1706 = vadd.f32 %v1608, %v1705
        %v1707 = vpop.f32.mrb[0].mxu0
        %1708 = vmatprep.mubr.f32.mxu0 0.0
        %v1709 = vand.u32 %v1403, 4294901760
        %v1710 = vsub.f32 %v1403, %v1709
        %1711 = vmatmul.mubr.f32.gmra.mrb[0].mxu0 %v1710
        %v1712 = vpop.f32.mrb[0].mxu0
        %v1713 = vadd.f32 %v1614, %v1712
        %v1714 = vpop.f32.mrb[0].mxu0
        %1715 = vmatprep.mubr.f32.mxu0 0.0
        %v1716 = vand.u32 %v1406, 4294901760
        %v1717 = vsub.f32 %v1406, %v1716
        %1718 = vmatmul.mubr.f32.gmra.mrb[0].mxu0 %v1717
        %v1719 = vpop.f32.mrb[0].mxu0
        %v1720 = vadd.f32 %v1620, %v1719
        %v1721 = vpop.f32.mrb[0].mxu0
        %1722 = vmatprep.mubr.f32.mxu0 0.0
        %v1723 = vand.u32 %v1409, 4294901760
        %v1724 = vsub.f32 %v1409, %v1723
        %1725 = vmatmul.mubr.f32.gmra.mrb[0].mxu0 %v1724
        %v1726 = vpop.f32.mrb[0].mxu0
        %v1727 = vadd.f32 %v1626, %v1726
        %v1728 = vpop.f32.mrb[0].mxu0
        %1729 = vdwg.mxu0
        %1730 = vmatprep.subr.mxu0 0.0
        %v1731 = vand.u32 %v1057, 4294901760
        %1732 = vmatpush1.msra.mxu0 %v1731
        %1733 = vmatprep.subr.mxu0 0.0
        %v1734 = vand.u32 %v1161, 4294901760
        %1735 = vmatpush1.msra.mxu0 %v1734
        %1736 = vmatprep.subr.mxu0 0.0
        %v1737 = vand.u32 %v1265, 4294901760
        %1738 = vmatpush1.msra.mxu0 %v1737
        %1739 = vmatprep.subr.mxu0 0.0
        %v1740 = vand.u32 %v1369, 4294901760
        %1741 = vmatpush1.msra.mxu0 %v1740
        %1742 = vmatprep.subr.mxu0 0.0
        %1743 = vmatpush1.msra.mxu0 0.0
        %1744 = vmatprep.subr.mxu0 0.0
        %1745 = vmatpush1.msra.mxu0 0.0
        %1746 = vmatprep.subr.mxu0 0.0
        %1747 = vmatpush1.msra.mxu0 0.0
        %1748 = vmatprep.subr.mxu0 0.0
        %1749 = vmatpush1.msra.mxu0 0.0
        %1750 = vmatprep.subr.mxu0 0.0
        %1751 = vmatpush1.msra.mxu0 0.0
        %1752 = vmatprep.subr.mxu0 0.0
        %1753 = vmatpush1.msra.mxu0 0.0
        %1754 = vmatprep.subr.mxu0 0.0
        %1755 = vmatpush1.msra.mxu0 0.0
        %1756 = vmatprep.subr.mxu0 0.0
        %1757 = vmatpush1.msra.mxu0 0.0
        %1758 = vmatprep.subr.mxu0 0.0
        %1759 = vmatpush1.msra.mxu0 0.0
        %1760 = vmatprep.subr.mxu0 0.0
        %1761 = vmatpush1.msra.mxu0 0.0
        %1762 = vmatprep.subr.mxu0 0.0
        %1763 = vmatpush1.msra.mxu0 0.0
        %1764 = vmatprep.subr.mxu0 0.0
        %1765 = vmatpush1.msra.mxu0 0.0
        %1766 = vmatprep.subr.mxu0 0.0
        %1767 = vmatpush1.msra.mxu0 0.0
        %1768 = vmatprep.subr.mxu0 0.0
        %1769 = vmatpush1.msra.mxu0 0.0
        %1770 = vmatprep.subr.mxu0 0.0
        %1771 = vmatpush1.msra.mxu0 0.0
        %1772 = vmatprep.subr.mxu0 0.0
        %1773 = vmatpush1.msra.mxu0 0.0
        %1774 = vmatprep.subr.mxu0 0.0
        %1775 = vmatpush1.msra.mxu0 0.0
        %1776 = vmatprep.subr.mxu0 0.0
        %1777 = vmatpush1.msra.mxu0 0.0
        %1778 = vmatprep.subr.mxu0 0.0
        %1779 = vmatpush1.msra.mxu0 0.0
        %1780 = vmatprep.subr.mxu0 0.0
        %1781 = vmatpush1.msra.mxu0 0.0
        %1782 = vmatprep.subr.mxu0 0.0
        %1783 = vmatpush1.msra.mxu0 0.0
        %1784 = vmatprep.subr.mxu0 0.0
        %1785 = vmatpush1.msra.mxu0 0.0
        %1786 = vmatprep.subr.mxu0 0.0
        %1787 = vmatpush1.msra.mxu0 0.0
        %1788 = vmatprep.subr.mxu0 0.0
        %1789 = vmatpush1.msra.mxu0 0.0
        %1790 = vmatprep.subr.mxu0 0.0
        %1791 = vmatpush1.msra.mxu0 0.0
        %1792 = vmatprep.subr.mxu0 0.0
        %1793 = vmatpush1.msra.mxu0 0.0
        %1794 = vmatprep.subr.mxu0 0.0
        %1795 = vmatpush1.msra.mxu0 0.0
        %1796 = vmatprep.subr.mxu0 0.0
        %1797 = vmatpush1.msra.mxu0 0.0
        %1798 = vmatprep.mubr.f32.mxu0 0.0
        %v1799 = vand.u32 %v1400, 4294901760
        %v1800 = vsub.f32 %v1400, %v1799
        %v1801 = vand.u32 %v1800, 4294901760
        %1802 = vmatmul.mubr.f32.gmra.mrb[0].mxu0 %v1801
        %v1803 = vpop.f32.mrb[0].mxu0
        %v1804 = vadd.f32 %v1706, %v1803
        %v1805 = vpop.f32.mrb[0].mxu0
        %1806 = vmatprep.mubr.f32.mxu0 0.0
        %v1807 = vand.u32 %v1403, 4294901760
        %v1808 = vsub.f32 %v1403, %v1807
        %v1809 = vand.u32 %v1808, 4294901760
        %1810 = vmatmul.mubr.f32.gmra.mrb[0].mxu0 %v1809
        %v1811 = vpop.f32.mrb[0].mxu0
        %v1812 = vadd.f32 %v1713, %v1811
        %v1813 = vpop.f32.mrb[0].mxu0
        %1814 = vmatprep.mubr.f32.mxu0 0.0
        %v1815 = vand.u32 %v1406, 4294901760
        %v1816 = vsub.f32 %v1406, %v1815
        %v1817 = vand.u32 %v1816, 4294901760
        %1818 = vmatmul.mubr.f32.gmra.mrb[0].mxu0 %v1817
        %v1819 = vpop.f32.mrb[0].mxu0
        %v1820 = vadd.f32 %v1720, %v1819
        %v1821 = vpop.f32.mrb[0].mxu0
        %1822 = vmatprep.mubr.f32.mxu0 0.0
        %v1823 = vand.u32 %v1409, 4294901760
        %v1824 = vsub.f32 %v1409, %v1823
        %v1825 = vand.u32 %v1824, 4294901760
        %1826 = vmatmul.mubr.f32.gmra.mrb[0].mxu0 %v1825
        %v1827 = vpop.f32.mrb[0].mxu0
        %v1828 = vadd.f32 %v1727, %v1827
        %v1829 = vpop.f32.mrb[0].mxu0
        %1830 = vdwg.mxu0
        %1831 = vmatprep.subr.mxu0 0.0
        %v1832 = vand.u32 %v1057, 4294901760
        %v1833 = vsub.f32 %v1057, %v1832
        %v1834 = vand.u32 %v1833, 4294901760
        %1835 = vmatpush1.msra.mxu0 %v1834
        %1836 = vmatprep.subr.mxu0 0.0
        %v1837 = vand.u32 %v1161, 4294901760
        %v1838 = vsub.f32 %v1161, %v1837
        %v1839 = vand.u32 %v1838, 4294901760
        %1840 = vmatpush1.msra.mxu0 %v1839
        %1841 = vmatprep.subr.mxu0 0.0
        %v1842 = vand.u32 %v1265, 4294901760
        %v1843 = vsub.f32 %v1265, %v1842
        %v1844 = vand.u32 %v1843, 4294901760
        %1845 = vmatpush1.msra.mxu0 %v1844
        %1846 = vmatprep.subr.mxu0 0.0
        %v1847 = vand.u32 %v1369, 4294901760
        %v1848 = vsub.f32 %v1369, %v1847
        %v1849 = vand.u32 %v1848, 4294901760
        %1850 = vmatpush1.msra.mxu0 %v1849
        %1851 = vmatprep.subr.mxu0 0.0
        %1852 = vmatpush1.msra.mxu0 0.0
        %1853 = vmatprep.subr.mxu0 0.0
        %1854 = vmatpush1.msra.mxu0 0.0
        %1855 = vmatprep.subr.mxu0 0.0
        %1856 = vmatpush1.msra.mxu0 0.0
        %1857 = vmatprep.subr.mxu0 0.0
        %1858 = vmatpush1.msra.mxu0 0.0
        %1859 = vmatprep.subr.mxu0 0.0
        %1860 = vmatpush1.msra.mxu0 0.0
        %1861 = vmatprep.subr.mxu0 0.0
        %1862 = vmatpush1.msra.mxu0 0.0
        %1863 = vmatprep.subr.mxu0 0.0
        %1864 = vmatpush1.msra.mxu0 0.0
        %1865 = vmatprep.subr.mxu0 0.0
        %1866 = vmatpush1.msra.mxu0 0.0
        %1867 = vmatprep.subr.mxu0 0.0
        %1868 = vmatpush1.msra.mxu0 0.0
        %1869 = vmatprep.subr.mxu0 0.0
        %1870 = vmatpush1.msra.mxu0 0.0
        %1871 = vmatprep.subr.mxu0 0.0
        %1872 = vmatpush1.msra.mxu0 0.0
        %1873 = vmatprep.subr.mxu0 0.0
        %1874 = vmatpush1.msra.mxu0 0.0
        %1875 = vmatprep.subr.mxu0 0.0
        %1876 = vmatpush1.msra.mxu0 0.0
        %1877 = vmatprep.subr.mxu0 0.0
        %1878 = vmatpush1.msra.mxu0 0.0
        %1879 = vmatprep.subr.mxu0 0.0
        %1880 = vmatpush1.msra.mxu0 0.0
        %1881 = vmatprep.subr.mxu0 0.0
        %1882 = vmatpush1.msra.mxu0 0.0
        %1883 = vmatprep.subr.mxu0 0.0
        %1884 = vmatpush1.msra.mxu0 0.0
        %1885 = vmatprep.subr.mxu0 0.0
        %1886 = vmatpush1.msra.mxu0 0.0
        %1887 = vmatprep.subr.mxu0 0.0
        %1888 = vmatpush1.msra.mxu0 0.0
        %1889 = vmatprep.subr.mxu0 0.0
        %1890 = vmatpush1.msra.mxu0 0.0
        %1891 = vmatprep.subr.mxu0 0.0
        %1892 = vmatpush1.msra.mxu0 0.0
        %1893 = vmatprep.subr.mxu0 0.0
        %1894 = vmatpush1.msra.mxu0 0.0
        %1895 = vmatprep.subr.mxu0 0.0
        %1896 = vmatpush1.msra.mxu0 0.0
        %1897 = vmatprep.subr.mxu0 0.0
        %1898 = vmatpush1.msra.mxu0 0.0
        %1899 = vmatprep.subr.mxu0 0.0
        %1900 = vmatpush1.msra.mxu0 0.0
        %1901 = vmatprep.subr.mxu0 0.0
        %1902 = vmatpush1.msra.mxu0 0.0
        %1903 = vmatprep.subr.mxu0 0.0
        %1904 = vmatpush1.msra.mxu0 0.0
        %1905 = vmatprep.subr.mxu0 0.0
        %1906 = vmatpush1.msra.mxu0 0.0
        %1907 = vmatprep.mubr.f32.mxu0 0.0
        %v1908 = vand.u32 %v1400, 4294901760
        %1909 = vmatmul.mubr.f32.gmra.mrb[0].mxu0 %v1908
        %v1910 = vpop.f32.mrb[0].mxu0
        %v1911 = vadd.f32 %v1804, %v1910
        %v1912 = vpop.f32.mrb[0].mxu0
        %1913 = vmatprep.mubr.f32.mxu0 0.0
        %v1914 = vand.u32 %v1403, 4294901760
        %1915 = vmatmul.mubr.f32.gmra.mrb[0].mxu0 %v1914
        %v1916 = vpop.f32.mrb[0].mxu0
        %v1917 = vadd.f32 %v1812, %v1916
        %v1918 = vpop.f32.mrb[0].mxu0
        %1919 = vmatprep.mubr.f32.mxu0 0.0
        %v1920 = vand.u32 %v1406, 4294901760
        %1921 = vmatmul.mubr.f32.gmra.mrb[0].mxu0 %v1920
        %v1922 = vpop.f32.mrb[0].mxu0
        %v1923 = vadd.f32 %v1820, %v1922
        %v1924 = vpop.f32.mrb[0].mxu0
        %1925 = vmatprep.mubr.f32.mxu0 0.0
        %v1926 = vand.u32 %v1409, 4294901760
        %1927 = vmatmul.mubr.f32.gmra.mrb[0].mxu0 %v1926
        %v1928 = vpop.f32.mrb[0].mxu0
        %v1929 = vadd.f32 %v1828, %v1928
        %v1930 = vpop.f32.mrb[0].mxu0
        %1931 = vdwg.mxu0
        %1932 = vmatprep.subr.mxu0 0.0
        %v1933 = vand.u32 %v1057, 4294901760
        %1934 = vmatpush1.msra.mxu0 %v1933
        %1935 = vmatprep.subr.mxu0 0.0
        %v1936 = vand.u32 %v1161, 4294901760
        %1937 = vmatpush1.msra.mxu0 %v1936
        %1938 = vmatprep.subr.mxu0 0.0
        %v1939 = vand.u32 %v1265, 4294901760
        %1940 = vmatpush1.msra.mxu0 %v1939
        %1941 = vmatprep.subr.mxu0 0.0
        %v1942 = vand.u32 %v1369, 4294901760
        %1943 = vmatpush1.msra.mxu0 %v1942
        %1944 = vmatprep.subr.mxu0 0.0
        %1945 = vmatpush1.msra.mxu0 0.0
        %1946 = vmatprep.subr.mxu0 0.0
        %1947 = vmatpush1.msra.mxu0 0.0
        %1948 = vmatprep.subr.mxu0 0.0
        %1949 = vmatpush1.msra.mxu0 0.0
        %1950 = vmatprep.subr.mxu0 0.0
        %1951 = vmatpush1.msra.mxu0 0.0
        %1952 = vmatprep.subr.mxu0 0.0
        %1953 = vmatpush1.msra.mxu0 0.0
        %1954 = vmatprep.subr.mxu0 0.0
        %1955 = vmatpush1.msra.mxu0 0.0
        %1956 = vmatprep.subr.mxu0 0.0
        %1957 = vmatpush1.msra.mxu0 0.0
        %1958 = vmatprep.subr.mxu0 0.0
        %1959 = vmatpush1.msra.mxu0 0.0
        %1960 = vmatprep.subr.mxu0 0.0
        %1961 = vmatpush1.msra.mxu0 0.0
        %1962 = vmatprep.subr.mxu0 0.0
        %1963 = vmatpush1.msra.mxu0 0.0
        %1964 = vmatprep.subr.mxu0 0.0
        %1965 = vmatpush1.msra.mxu0 0.0
        %1966 = vmatprep.subr.mxu0 0.0
        %1967 = vmatpush1.msra.mxu0 0.0
        %1968 = vmatprep.subr.mxu0 0.0
        %1969 = vmatpush1.msra.mxu0 0.0
        %1970 = vmatprep.subr.mxu0 0.0
        %1971 = vmatpush1.msra.mxu0 0.0
        %1972 = vmatprep.subr.mxu0 0.0
        %1973 = vmatpush1.msra.mxu0 0.0
        %1974 = vmatprep.subr.mxu0 0.0
        %1975 = vmatpush1.msra.mxu0 0.0
        %1976 = vmatprep.subr.mxu0 0.0
        %1977 = vmatpush1.msra.mxu0 0.0
        %1978 = vmatprep.subr.mxu0 0.0
        %1979 = vmatpush1.msra.mxu0 0.0
        %1980 = vmatprep.subr.mxu0 0.0
        %1981 = vmatpush1.msra.mxu0 0.0
        %1982 = vmatprep.subr.mxu0 0.0
        %1983 = vmatpush1.msra.mxu0 0.0
        %1984 = vmatprep.subr.mxu0 0.0
        %1985 = vmatpush1.msra.mxu0 0.0
        %1986 = vmatprep.subr.mxu0 0.0
        %1987 = vmatpush1.msra.mxu0 0.0
        %1988 = vmatprep.subr.mxu0 0.0
        %1989 = vmatpush1.msra.mxu0 0.0
        %1990 = vmatprep.subr.mxu0 0.0
        %1991 = vmatpush1.msra.mxu0 0.0
        %1992 = vmatprep.subr.mxu0 0.0
        %1993 = vmatpush1.msra.mxu0 0.0
        %1994 = vmatprep.subr.mxu0 0.0
        %1995 = vmatpush1.msra.mxu0 0.0
        %1996 = vmatprep.subr.mxu0 0.0
        %1997 = vmatpush1.msra.mxu0 0.0
        %1998 = vmatprep.subr.mxu0 0.0
        %1999 = vmatpush1.msra.mxu0 0.0
        %2000 = vmatprep.mubr.f32.mxu0 0.0
        %v2001 = vand.u32 %v1400, 4294901760
        %2002 = vmatmul.mubr.f32.gmra.mrb[0].mxu0 %v2001
        %v2003 = vpop.f32.mrb[0].mxu0
        %v2004 = vadd.f32 %v1911, %v2003
        %v2005 = vpop.f32.mrb[0].mxu0
        %2006 = vmatprep.mubr.f32.mxu0 0.0
        %v2007 = vand.u32 %v1403, 4294901760
        %2008 = vmatmul.mubr.f32.gmra.mrb[0].mxu0 %v2007
        %v2009 = vpop.f32.mrb[0].mxu0
        %v2010 = vadd.f32 %v1917, %v2009
        %v2011 = vpop.f32.mrb[0].mxu0
        %2012 = vmatprep.mubr.f32.mxu0 0.0
        %v2013 = vand.u32 %v1406, 4294901760
        %2014 = vmatmul.mubr.f32.gmra.mrb[0].mxu0 %v2013
        %v2015 = vpop.f32.mrb[0].mxu0
        %v2016 = vadd.f32 %v1923, %v2015
        %v2017 = vpop.f32.mrb[0].mxu0
        %2018 = vmatprep.mubr.f32.mxu0 0.0
        %v2019 = vand.u32 %v1409, 4294901760
        %2020 = vmatmul.mubr.f32.gmra.mrb[0].mxu0 %v2019
        %v2021 = vpop.f32.mrb[0].mxu0
        %v2022 = vadd.f32 %v1929, %v2021
        %v2023 = vpop.f32.mrb[0].mxu0
        %2024 = vdwg.mxu0
        %v2025 = vmul.f32 %v2004, 30.0
        %v2026 = vmul.f32 %v2010, 30.0
        %v2027 = vmul.f32 %v2016, 30.0
        %v2028 = vmul.f32 %v2022, 30.0
        %v2029 = vand.u32 2147483647, %v2025
        %vm2030 = vcmp.le.f32.partialorder %v2029, 0.7853982
        %vm2031 = vcmp.lt.s32.totalorder %v2025, 0
        %v2032 = vand.u32 %v2025, 2139095040
        %v2033 = vshrl.u32 %v2032, 23
        %v2034 = vsub.s32 %v2033, 127
        %v2035 = vand.u32 2147483647, %v2025
        %v2036 = vand.u32 %v2035, 8388607
        %v2037 = vor.u32 %v2036, 8388608
        %v2038 = vsub.s32 0, %v2037
        %v2039 = vadd.s32 %v2034, 1
        %vm2040 = vcmp.gt.s32.totalorder %v2039, 0
        %v2041 = vsel %vm2040, %v2039, 0
        %v2042 = vshrl.u32 %v2041, 5
        %v2043 = vand.u32 %v2041, 31
        %v2044 = vsub.s32 32, %v2043
        %v2045 = vshrl.u32 683565275, %v2044
        %v2046 = vshll.u32 683565275, %v2043
        %v2047 = vshrl.u32 2475754826, %v2044
        %v2048 = vor.u32 %v2046, %v2047
        %v2049 = vshll.u32 2475754826, %v2043
        %v2050 = vshrl.u32 2131351028, %v2044
        %v2051 = vor.u32 %v2049, %v2050
        %v2052 = vshll.u32 2131351028, %v2043
        %v2053 = vshrl.u32 2102212464, %v2044
        %v2054 = vor.u32 %v2052, %v2053
        %v2055 = vshll.u32 2102212464, %v2043
        %v2056 = vshrl.u32 920167782, %v2044
        %v2057 = vor.u32 %v2055, %v2056
        %v2058 = vshll.u32 920167782, %v2043
        %v2059 = vshrl.u32 1326507024, %v2044
        %v2060 = vor.u32 %v2058, %v2059
        %vm2061 = vcmp.lt.s32.totalorder %v2042, 1
        %vm2062 = vcmp.lt.s32.totalorder %v2042, 2
        %vm2063 = vcmp.lt.s32.totalorder %v2042, 3
        %vm2064 = vcmp.lt.s32.totalorder %v2042, 4
        %v2065 = vsel %vm2061, %v2045, %v2048
        %v2066 = vsel %vm2064, %v2054, 2102212464
        %v2067 = vsel %vm2063, %v2051, %v2066
        %v2068 = vsel %vm2062, %v2065, %v2067
        %v2069 = vsel %vm2061, %v2048, %v2051
        %v2070 = vsel %vm2064, %v2057, 920167782
        %v2071 = vsel %vm2063, %v2054, %v2070
        %v2072 = vsel %vm2062, %v2069, %v2071
        %v2073 = vsel %vm2061, %v2051, %v2054
        %v2074 = vsel %vm2064, %v2060, 1326507024
        %v2075 = vsel %vm2063, %v2057, %v2074
        %v2076 = vsel %vm2062, %v2073, %v2075
        %v2077 = vshll.u32 %v2037, 8
        %v2078 = vmul.u32.u64.compose %v2077, %v2076
        %v2079 = vextract.low.u32 %v2078
        %v2080 = vextract.high.u32 %v2078
        %v2081 = vmul.u32.u64.compose %v2077, %v2072
        %v2082 = vextract.low.u32 %v2081
        %v2083 = vextract.high.u32 %v2081
        %v2084 = vmul.u32 %v2077, %v2068
        %v2085 = vadd.s32 %v2080, %v2082
        %vm2086 = vc.u32 %v2080, %v2082
        %v2087 = vadd.s32 %v2083, 1
        %v2088 = vsel %vm2086, %v2087, %v2083
        %v2089 = vadd.s32 %v2084, %v2088
        %v2090 = vadd.s32 %v2089, 536870912
        %v2091 = vshrl.u32 %v2090, 30
        %v2092 = vshll.u32 %v2091, 30
        %v2093 = vsub.s32 %v2089, %v2092
        %vm2094 = vcmp.lt.s32.totalorder %v2093, 0
        %v2095 = vsub.s32 0, %v2093
        %v2096 = vsel %vm2094, %v2095, %v2093
        %v2097 = vclz %v2096
        %v2098 = vsub.s32 %v2097, 2
        %vm2099 = vcmp.gt.s32.totalorder 0, %v2098
        %v2100 = vsel %vm2099, 0, %v2098
        %v2101 = vsub.s32 32, %v2100
        %v2102 = vshll.u32 %v2093, %v2100
        %v2103 = vshrl.u32 %v2085, %v2101
        %v2104 = vor.u32 %v2102, %v2103
        %v2105 = vsub.s32 4294967266, %v2100
        %v2106 = vadd.s32 %v2105, 127
        %v2107 = vshll.u32 %v2106, 23
        %v2108 = vor.u32 4788187, %v2107
        %v2109 = vand.u32 2147483647, %v2108
        %v2111 = vcvt.s32.f32 %v2104
        %v2112 = vmul.f32 %v2111, %v2109
        %v2113 = vxor.u32 %v2112, 2147483648
        %v2114 = vsel %vm2031, %v2113, %v2112
        %v2115 = vsub.s32 4, %v2091
        %v2116 = vsel %vm2031, %v2115, %v2091
        %v2117 = vsel %vm2030, %v2025, %v2114
        %v2118 = vsel %vm2030, 0, %v2116
        %v2119 = vcosq.f32.pop %v2117
        %v2120 = vsinq.f32.pop %v2117
        %vm2121 = vweird.f32 %v2025
        %v2122 = vadd.s32 %v2118, 3
        %v2123 = vand.u32 %v2122, 3
        %vm2124 = vcmp.lt.s32.totalorder %v2123, 2
        %vm2125 = vcmp.eq.s32.totalorder %v2123, 0
        %v2126 = vxor.u32 %v2120, 2147483648
        %v2127 = vsel %vm2125, %v2119, %v2126
        %vm2128 = vcmp.eq.s32.totalorder %v2123, 2
        %v2129 = vxor.u32 %v2119, 2147483648
        %v2130 = vsel %vm2128, %v2129, %v2120
        %v2131 = vsel %vm2124, %v2127, %v2130
        %v2132 = vsel %vm2121, nan, %v2131
        %v2133 = vand.u32 2147483647, %v2026
        %vm2134 = vcmp.le.f32.partialorder %v2133, 0.7853982
        %vm2135 = vcmp.lt.s32.totalorder %v2026, 0
        %v2136 = vand.u32 %v2026, 2139095040
        %v2137 = vshrl.u32 %v2136, 23
        %v2138 = vsub.s32 %v2137, 127
        %v2139 = vand.u32 2147483647, %v2026
        %v2140 = vand.u32 %v2139, 8388607
        %v2141 = vor.u32 %v2140, 8388608
        %v2142 = vsub.s32 0, %v2141
        %v2143 = vadd.s32 %v2138, 1
        %vm2144 = vcmp.gt.s32.totalorder %v2143, 0
        %v2145 = vsel %vm2144, %v2143, 0
        %v2146 = vshrl.u32 %v2145, 5
        %v2147 = vand.u32 %v2145, 31
        %v2148 = vsub.s32 32, %v2147
        %v2149 = vshrl.u32 683565275, %v2148
        %v2150 = vshll.u32 683565275, %v2147
        %v2151 = vshrl.u32 2475754826, %v2148
        %v2152 = vor.u32 %v2150, %v2151
        %v2153 = vshll.u32 2475754826, %v2147
        %v2154 = vshrl.u32 2131351028, %v2148
        %v2155 = vor.u32 %v2153, %v2154
        %v2156 = vshll.u32 2131351028, %v2147
        %v2157 = vshrl.u32 2102212464, %v2148
        %v2158 = vor.u32 %v2156, %v2157
        %v2159 = vshll.u32 2102212464, %v2147
        %v2160 = vshrl.u32 920167782, %v2148
        %v2161 = vor.u32 %v2159, %v2160
        %v2162 = vshll.u32 920167782, %v2147
        %v2163 = vshrl.u32 1326507024, %v2148
        %v2164 = vor.u32 %v2162, %v2163
        %vm2165 = vcmp.lt.s32.totalorder %v2146, 1
        %vm2166 = vcmp.lt.s32.totalorder %v2146, 2
        %vm2167 = vcmp.lt.s32.totalorder %v2146, 3
        %vm2168 = vcmp.lt.s32.totalorder %v2146, 4
        %v2169 = vsel %vm2165, %v2149, %v2152
        %v2170 = vsel %vm2168, %v2158, 2102212464
        %v2171 = vsel %vm2167, %v2155, %v2170
        %v2172 = vsel %vm2166, %v2169, %v2171
        %v2173 = vsel %vm2165, %v2152, %v2155
        %v2174 = vsel %vm2168, %v2161, 920167782
        %v2175 = vsel %vm2167, %v2158, %v2174
        %v2176 = vsel %vm2166, %v2173, %v2175
        %v2177 = vsel %vm2165, %v2155, %v2158
        %v2178 = vsel %vm2168, %v2164, 1326507024
        %v2179 = vsel %vm2167, %v2161, %v2178
        %v2180 = vsel %vm2166, %v2177, %v2179
        %v2181 = vshll.u32 %v2141, 8
        %v2182 = vmul.u32.u64.compose %v2181, %v2180
        %v2183 = vextract.low.u32 %v2182
        %v2184 = vextract.high.u32 %v2182
        %v2185 = vmul.u32.u64.compose %v2181, %v2176
        %v2186 = vextract.low.u32 %v2185
        %v2187 = vextract.high.u32 %v2185
        %v2188 = vmul.u32 %v2181, %v2172
        %v2189 = vadd.s32 %v2184, %v2186
        %vm2190 = vc.u32 %v2184, %v2186
        %v2191 = vadd.s32 %v2187, 1
        %v2192 = vsel %vm2190, %v2191, %v2187
        %v2193 = vadd.s32 %v2188, %v2192
        %v2194 = vadd.s32 %v2193, 536870912
        %v2195 = vshrl.u32 %v2194, 30
        %v2196 = vshll.u32 %v2195, 30
        %v2197 = vsub.s32 %v2193, %v2196
        %vm2198 = vcmp.lt.s32.totalorder %v2197, 0
        %v2199 = vsub.s32 0, %v2197
        %v2200 = vsel %vm2198, %v2199, %v2197
        %v2201 = vclz %v2200
        %v2202 = vsub.s32 %v2201, 2
        %vm2203 = vcmp.gt.s32.totalorder 0, %v2202
        %v2204 = vsel %vm2203, 0, %v2202
        %v2205 = vsub.s32 32, %v2204
        %v2206 = vshll.u32 %v2197, %v2204
        %v2207 = vshrl.u32 %v2189, %v2205
        %v2208 = vor.u32 %v2206, %v2207
        %v2209 = vsub.s32 4294967266, %v2204
        %v2210 = vadd.s32 %v2209, 127
        %v2211 = vshll.u32 %v2210, 23
        %v2212 = vor.u32 4788187, %v2211
        %v2213 = vand.u32 2147483647, %v2212
        %v2215 = vcvt.s32.f32 %v2208
        %v2216 = vmul.f32 %v2215, %v2213
        %v2217 = vxor.u32 %v2216, 2147483648
        %v2218 = vsel %vm2135, %v2217, %v2216
        %v2219 = vsub.s32 4, %v2195
        %v2220 = vsel %vm2135, %v2219, %v2195
        %v2221 = vsel %vm2134, %v2026, %v2218
        %v2222 = vsel %vm2134, 0, %v2220
        %v2223 = vcosq.f32.pop %v2221
        %v2224 = vsinq.f32.pop %v2221
        %vm2225 = vweird.f32 %v2026
        %v2226 = vadd.s32 %v2222, 3
        %v2227 = vand.u32 %v2226, 3
        %vm2228 = vcmp.lt.s32.totalorder %v2227, 2
        %vm2229 = vcmp.eq.s32.totalorder %v2227, 0
        %v2230 = vxor.u32 %v2224, 2147483648
        %v2231 = vsel %vm2229, %v2223, %v2230
        %vm2232 = vcmp.eq.s32.totalorder %v2227, 2
        %v2233 = vxor.u32 %v2223, 2147483648
        %v2234 = vsel %vm2232, %v2233, %v2224
        %v2235 = vsel %vm2228, %v2231, %v2234
        %v2236 = vsel %vm2225, nan, %v2235
        %v2237 = vand.u32 2147483647, %v2027
        %vm2238 = vcmp.le.f32.partialorder %v2237, 0.7853982
        %vm2239 = vcmp.lt.s32.totalorder %v2027, 0
        %v2240 = vand.u32 %v2027, 2139095040
        %v2241 = vshrl.u32 %v2240, 23
        %v2242 = vsub.s32 %v2241, 127
        %v2243 = vand.u32 2147483647, %v2027
        %v2244 = vand.u32 %v2243, 8388607
        %v2245 = vor.u32 %v2244, 8388608
        %v2246 = vsub.s32 0, %v2245
        %v2247 = vadd.s32 %v2242, 1
        %vm2248 = vcmp.gt.s32.totalorder %v2247, 0
        %v2249 = vsel %vm2248, %v2247, 0
        %v2250 = vshrl.u32 %v2249, 5
        %v2251 = vand.u32 %v2249, 31
        %v2252 = vsub.s32 32, %v2251
        %v2253 = vshrl.u32 683565275, %v2252
        %v2254 = vshll.u32 683565275, %v2251
        %v2255 = vshrl.u32 2475754826, %v2252
        %v2256 = vor.u32 %v2254, %v2255
        %v2257 = vshll.u32 2475754826, %v2251
        %v2258 = vshrl.u32 2131351028, %v2252
        %v2259 = vor.u32 %v2257, %v2258
        %v2260 = vshll.u32 2131351028, %v2251
        %v2261 = vshrl.u32 2102212464, %v2252
        %v2262 = vor.u32 %v2260, %v2261
        %v2263 = vshll.u32 2102212464, %v2251
        %v2264 = vshrl.u32 920167782, %v2252
        %v2265 = vor.u32 %v2263, %v2264
        %v2266 = vshll.u32 920167782, %v2251
        %v2267 = vshrl.u32 1326507024, %v2252
        %v2268 = vor.u32 %v2266, %v2267
        %vm2269 = vcmp.lt.s32.totalorder %v2250, 1
        %vm2270 = vcmp.lt.s32.totalorder %v2250, 2
        %vm2271 = vcmp.lt.s32.totalorder %v2250, 3
        %vm2272 = vcmp.lt.s32.totalorder %v2250, 4
        %v2273 = vsel %vm2269, %v2253, %v2256
        %v2274 = vsel %vm2272, %v2262, 2102212464
        %v2275 = vsel %vm2271, %v2259, %v2274
        %v2276 = vsel %vm2270, %v2273, %v2275
        %v2277 = vsel %vm2269, %v2256, %v2259
        %v2278 = vsel %vm2272, %v2265, 920167782
        %v2279 = vsel %vm2271, %v2262, %v2278
        %v2280 = vsel %vm2270, %v2277, %v2279
        %v2281 = vsel %vm2269, %v2259, %v2262
        %v2282 = vsel %vm2272, %v2268, 1326507024
        %v2283 = vsel %vm2271, %v2265, %v2282
        %v2284 = vsel %vm2270, %v2281, %v2283
        %v2285 = vshll.u32 %v2245, 8
        %v2286 = vmul.u32.u64.compose %v2285, %v2284
        %v2287 = vextract.low.u32 %v2286
        %v2288 = vextract.high.u32 %v2286
        %v2289 = vmul.u32.u64.compose %v2285, %v2280
        %v2290 = vextract.low.u32 %v2289
        %v2291 = vextract.high.u32 %v2289
        %v2292 = vmul.u32 %v2285, %v2276
        %v2293 = vadd.s32 %v2288, %v2290
        %vm2294 = vc.u32 %v2288, %v2290
        %v2295 = vadd.s32 %v2291, 1
        %v2296 = vsel %vm2294, %v2295, %v2291
        %v2297 = vadd.s32 %v2292, %v2296
        %v2298 = vadd.s32 %v2297, 536870912
        %v2299 = vshrl.u32 %v2298, 30
        %v2300 = vshll.u32 %v2299, 30
        %v2301 = vsub.s32 %v2297, %v2300
        %vm2302 = vcmp.lt.s32.totalorder %v2301, 0
        %v2303 = vsub.s32 0, %v2301
        %v2304 = vsel %vm2302, %v2303, %v2301
        %v2305 = vclz %v2304
        %v2306 = vsub.s32 %v2305, 2
        %vm2307 = vcmp.gt.s32.totalorder 0, %v2306
        %v2308 = vsel %vm2307, 0, %v2306
        %v2309 = vsub.s32 32, %v2308
        %v2310 = vshll.u32 %v2301, %v2308
        %v2311 = vshrl.u32 %v2293, %v2309
        %v2312 = vor.u32 %v2310, %v2311
        %v2313 = vsub.s32 4294967266, %v2308
        %v2314 = vadd.s32 %v2313, 127
        %v2315 = vshll.u32 %v2314, 23
        %v2316 = vor.u32 4788187, %v2315
        %v2317 = vand.u32 2147483647, %v2316
        %v2319 = vcvt.s32.f32 %v2312
        %v2320 = vmul.f32 %v2319, %v2317
        %v2321 = vxor.u32 %v2320, 2147483648
        %v2322 = vsel %vm2239, %v2321, %v2320
        %v2323 = vsub.s32 4, %v2299
        %v2324 = vsel %vm2239, %v2323, %v2299
        %v2325 = vsel %vm2238, %v2027, %v2322
        %v2326 = vsel %vm2238, 0, %v2324
        %v2327 = vcosq.f32.pop %v2325
        %v2328 = vsinq.f32.pop %v2325
        %vm2329 = vweird.f32 %v2027
        %v2330 = vadd.s32 %v2326, 3
        %v2331 = vand.u32 %v2330, 3
        %vm2332 = vcmp.lt.s32.totalorder %v2331, 2
        %vm2333 = vcmp.eq.s32.totalorder %v2331, 0
        %v2334 = vxor.u32 %v2328, 2147483648
        %v2335 = vsel %vm2333, %v2327, %v2334
        %vm2336 = vcmp.eq.s32.totalorder %v2331, 2
        %v2337 = vxor.u32 %v2327, 2147483648
        %v2338 = vsel %vm2336, %v2337, %v2328
        %v2339 = vsel %vm2332, %v2335, %v2338
        %v2340 = vsel %vm2329, nan, %v2339
        %v2341 = vand.u32 2147483647, %v2028
        %vm2342 = vcmp.le.f32.partialorder %v2341, 0.7853982
        %vm2343 = vcmp.lt.s32.totalorder %v2028, 0
        %v2344 = vand.u32 %v2028, 2139095040
        %v2345 = vshrl.u32 %v2344, 23
        %v2346 = vsub.s32 %v2345, 127
        %v2347 = vand.u32 2147483647, %v2028
        %v2348 = vand.u32 %v2347, 8388607
        %v2349 = vor.u32 %v2348, 8388608
        %v2350 = vsub.s32 0, %v2349
        %v2351 = vadd.s32 %v2346, 1
        %vm2352 = vcmp.gt.s32.totalorder %v2351, 0
        %v2353 = vsel %vm2352, %v2351, 0
        %v2354 = vshrl.u32 %v2353, 5
        %v2355 = vand.u32 %v2353, 31
        %v2356 = vsub.s32 32, %v2355
        %v2357 = vshrl.u32 683565275, %v2356
        %v2358 = vshll.u32 683565275, %v2355
        %v2359 = vshrl.u32 2475754826, %v2356
        %v2360 = vor.u32 %v2358, %v2359
        %v2361 = vshll.u32 2475754826, %v2355
        %v2362 = vshrl.u32 2131351028, %v2356
        %v2363 = vor.u32 %v2361, %v2362
        %v2364 = vshll.u32 2131351028, %v2355
        %v2365 = vshrl.u32 2102212464, %v2356
        %v2366 = vor.u32 %v2364, %v2365
        %v2367 = vshll.u32 2102212464, %v2355
        %v2368 = vshrl.u32 920167782, %v2356
        %v2369 = vor.u32 %v2367, %v2368
        %v2370 = vshll.u32 920167782, %v2355
        %v2371 = vshrl.u32 1326507024, %v2356
        %v2372 = vor.u32 %v2370, %v2371
        %vm2373 = vcmp.lt.s32.totalorder %v2354, 1
        %vm2374 = vcmp.lt.s32.totalorder %v2354, 2
        %vm2375 = vcmp.lt.s32.totalorder %v2354, 3
        %vm2376 = vcmp.lt.s32.totalorder %v2354, 4
        %v2377 = vsel %vm2373, %v2357, %v2360
        %v2378 = vsel %vm2376, %v2366, 2102212464
        %v2379 = vsel %vm2375, %v2363, %v2378
        %v2380 = vsel %vm2374, %v2377, %v2379
        %v2381 = vsel %vm2373, %v2360, %v2363
        %v2382 = vsel %vm2376, %v2369, 920167782
        %v2383 = vsel %vm2375, %v2366, %v2382
        %v2384 = vsel %vm2374, %v2381, %v2383
        %v2385 = vsel %vm2373, %v2363, %v2366
        %v2386 = vsel %vm2376, %v2372, 1326507024
        %v2387 = vsel %vm2375, %v2369, %v2386
        %v2388 = vsel %vm2374, %v2385, %v2387
        %v2389 = vshll.u32 %v2349, 8
        %v2390 = vmul.u32.u64.compose %v2389, %v2388
        %v2391 = vextract.low.u32 %v2390
        %v2392 = vextract.high.u32 %v2390
        %v2393 = vmul.u32.u64.compose %v2389, %v2384
        %v2394 = vextract.low.u32 %v2393
        %v2395 = vextract.high.u32 %v2393
        %v2396 = vmul.u32 %v2389, %v2380
        %v2397 = vadd.s32 %v2392, %v2394
        %vm2398 = vc.u32 %v2392, %v2394
        %v2399 = vadd.s32 %v2395, 1
        %v2400 = vsel %vm2398, %v2399, %v2395
        %v2401 = vadd.s32 %v2396, %v2400
        %v2402 = vadd.s32 %v2401, 536870912
        %v2403 = vshrl.u32 %v2402, 30
        %v2404 = vshll.u32 %v2403, 30
        %v2405 = vsub.s32 %v2401, %v2404
        %vm2406 = vcmp.lt.s32.totalorder %v2405, 0
        %v2407 = vsub.s32 0, %v2405
        %v2408 = vsel %vm2406, %v2407, %v2405
        %v2409 = vclz %v2408
        %v2410 = vsub.s32 %v2409, 2
        %vm2411 = vcmp.gt.s32.totalorder 0, %v2410
        %v2412 = vsel %vm2411, 0, %v2410
        %v2413 = vsub.s32 32, %v2412
        %v2414 = vshll.u32 %v2405, %v2412
        %v2415 = vshrl.u32 %v2397, %v2413
        %v2416 = vor.u32 %v2414, %v2415
        %v2417 = vsub.s32 4294967266, %v2412
        %v2418 = vadd.s32 %v2417, 127
        %v2419 = vshll.u32 %v2418, 23
        %v2420 = vor.u32 4788187, %v2419
        %v2421 = vand.u32 2147483647, %v2420
        %v2423 = vcvt.s32.f32 %v2416
        %v2424 = vmul.f32 %v2423, %v2421
        %v2425 = vxor.u32 %v2424, 2147483648
        %v2426 = vsel %vm2343, %v2425, %v2424
        %v2427 = vsub.s32 4, %v2403
        %v2428 = vsel %vm2343, %v2427, %v2403
        %v2429 = vsel %vm2342, %v2028, %v2426
        %v2430 = vsel %vm2342, 0, %v2428
        %v2431 = vcosq.f32.pop %v2429
        %v2432 = vsinq.f32.pop %v2429
        %vm2433 = vweird.f32 %v2028
        %v2434 = vadd.s32 %v2430, 3
        %v2435 = vand.u32 %v2434, 3
        %vm2436 = vcmp.lt.s32.totalorder %v2435, 2
        %vm2437 = vcmp.eq.s32.totalorder %v2435, 0
        %v2438 = vxor.u32 %v2432, 2147483648
        %v2439 = vsel %vm2437, %v2431, %v2438
        %vm2440 = vcmp.eq.s32.totalorder %v2435, 2
        %v2441 = vxor.u32 %v2431, 2147483648
        %v2442 = vsel %vm2440, %v2441, %v2432
        %v2443 = vsel %vm2436, %v2439, %v2442
        %v2444 = vsel %vm2433, nan, %v2443
        %v2445 = vld [vmem:[%s5] sm:$0xff]
        %v2446 = vld [vmem:[%s5 + $0x8] sm:$0xff]
        %v2447 = vld [vmem:[%s5 + $0x10] sm:$0xff]
        %v2448 = vld [vmem:[%s5 + $0x18] sm:$0xff]
        %v2449 = vld [vmem:[%s6] sm:$0xff]
        %v2450 = vld [vmem:[%s6 + $0x8] sm:$0xff]
        %v2451 = vld [vmem:[%s6 + $0x10] sm:$0xff]
        %v2452 = vld [vmem:[%s6 + $0x18] sm:$0xff]
        %2454 = vset.pattern.permute.xlu0 0
        %2455 = vperm.xlu0 %2454, %v2449
        %v2456 = vpop.permute.xlu0 %2455
        %2459 = vset.pattern.permute.xlu0 0
        %2460 = vperm.xlu0 %2459, %v2450
        %v2461 = vpop.permute.xlu0 %2460
        %2464 = vset.pattern.permute.xlu0 0
        %2465 = vperm.xlu0 %2464, %v2451
        %v2466 = vpop.permute.xlu0 %2465
        %2469 = vset.pattern.permute.xlu0 0
        %2470 = vperm.xlu0 %2469, %v2452
        %v2471 = vpop.permute.xlu0 %2470
        %v2474 = vsel %vm1398, %v2445, 0
        %v2477 = vsel %vm1398, %v2446, 0
        %v2480 = vsel %vm1398, %v2447, 0
        %v2483 = vsel %vm1398, %v2448, 0
        %2485 = vmatprep.subr.mxu0 0.0
        %v2486 = vand.u32 %v2132, 4294901760
        %2487 = vmatpush1.msra.mxu0 %v2486
        %2488 = vmatprep.subr.mxu0 0.0
        %v2489 = vand.u32 %v2236, 4294901760
        %2490 = vmatpush1.msra.mxu0 %v2489
        %2491 = vmatprep.subr.mxu0 0.0
        %v2492 = vand.u32 %v2340, 4294901760
        %2493 = vmatpush1.msra.mxu0 %v2492
        %2494 = vmatprep.subr.mxu0 0.0
        %v2495 = vand.u32 %v2444, 4294901760
        %2496 = vmatpush1.msra.mxu0 %v2495
        %2497 = vmatprep.subr.mxu0 0.0
        %2498 = vmatpush1.msra.mxu0 0.0
        %2499 = vmatprep.subr.mxu0 0.0
        %2500 = vmatpush1.msra.mxu0 0.0
        %2501 = vmatprep.subr.mxu0 0.0
        %2502 = vmatpush1.msra.mxu0 0.0
        %2503 = vmatprep.subr.mxu0 0.0
        %2504 = vmatpush1.msra.mxu0 0.0
        %2505 = vmatprep.subr.mxu0 0.0
        %2506 = vmatpush1.msra.mxu0 0.0
        %2507 = vmatprep.subr.mxu0 0.0
        %2508 = vmatpush1.msra.mxu0 0.0
        %2509 = vmatprep.subr.mxu0 0.0
        %2510 = vmatpush1.msra.mxu0 0.0
        %2511 = vmatprep.subr.mxu0 0.0
        %2512 = vmatpush1.msra.mxu0 0.0
        %2513 = vmatprep.subr.mxu0 0.0
        %2514 = vmatpush1.msra.mxu0 0.0
        %2515 = vmatprep.subr.mxu0 0.0
        %2516 = vmatpush1.msra.mxu0 0.0
        %2517 = vmatprep.subr.mxu0 0.0
        %2518 = vmatpush1.msra.mxu0 0.0
        %2519 = vmatprep.subr.mxu0 0.0
        %2520 = vmatpush1.msra.mxu0 0.0
        %2521 = vmatprep.subr.mxu0 0.0
        %2522 = vmatpush1.msra.mxu0 0.0
        %2523 = vmatprep.subr.mxu0 0.0
        %2524 = vmatpush1.msra.mxu0 0.0
        %2525 = vmatprep.subr.mxu0 0.0
        %2526 = vmatpush1.msra.mxu0 0.0
        %2527 = vmatprep.subr.mxu0 0.0
        %2528 = vmatpush1.msra.mxu0 0.0
        %2529 = vmatprep.subr.mxu0 0.0
        %2530 = vmatpush1.msra.mxu0 0.0
        %2531 = vmatprep.subr.mxu0 0.0
        %2532 = vmatpush1.msra.mxu0 0.0
        %2533 = vmatprep.subr.mxu0 0.0
        %2534 = vmatpush1.msra.mxu0 0.0
        %2535 = vmatprep.subr.mxu0 0.0
        %2536 = vmatpush1.msra.mxu0 0.0
        %2537 = vmatprep.subr.mxu0 0.0
        %2538 = vmatpush1.msra.mxu0 0.0
        %2539 = vmatprep.subr.mxu0 0.0
        %2540 = vmatpush1.msra.mxu0 0.0
        %2541 = vmatprep.subr.mxu0 0.0
        %2542 = vmatpush1.msra.mxu0 0.0
        %2543 = vmatprep.subr.mxu0 0.0
        %2544 = vmatpush1.msra.mxu0 0.0
        %2545 = vmatprep.subr.mxu0 0.0
        %2546 = vmatpush1.msra.mxu0 0.0
        %2547 = vmatprep.subr.mxu0 0.0
        %2548 = vmatpush1.msra.mxu0 0.0
        %2549 = vmatprep.subr.mxu0 0.0
        %2550 = vmatpush1.msra.mxu0 0.0
        %2551 = vmatprep.subr.mxu0 0.0
        %2552 = vmatpush1.msra.mxu0 0.0
        %2553 = vmatprep.mubr.f32.mxu0 0.0
        %v2554 = vand.u32 %v2474, 4294901760
        %v2555 = vsub.f32 %v2474, %v2554
        %v2556 = vand.u32 %v2555, 4294901760
        %v2557 = vsub.f32 %v2555, %v2556
        %v2558 = vand.u32 %v2557, 4294901760
        %2559 = vmatmul.mubr.f32.gmra.mrb[0].mxu0 %v2558
        %v2560 = vpop.f32.mrb[0].mxu0
        %v2561 = vadd.f32 %v2456, %v2560
        %v2562 = vpop.f32.mrb[0].mxu0
        %2563 = vmatprep.mubr.f32.mxu0 0.0
        %v2564 = vand.u32 %v2477, 4294901760
        %v2565 = vsub.f32 %v2477, %v2564
        %v2566 = vand.u32 %v2565, 4294901760
        %v2567 = vsub.f32 %v2565, %v2566
        %v2568 = vand.u32 %v2567, 4294901760
        %2569 = vmatmul.mubr.f32.gmra.mrb[0].mxu0 %v2568
        %v2570 = vpop.f32.mrb[0].mxu0
        %v2571 = vadd.f32 %v2461, %v2570
        %v2572 = vpop.f32.mrb[0].mxu0
        %2573 = vmatprep.mubr.f32.mxu0 0.0
        %v2574 = vand.u32 %v2480, 4294901760
        %v2575 = vsub.f32 %v2480, %v2574
        %v2576 = vand.u32 %v2575, 4294901760
        %v2577 = vsub.f32 %v2575, %v2576
        %v2578 = vand.u32 %v2577, 4294901760
        %2579 = vmatmul.mubr.f32.gmra.mrb[0].mxu0 %v2578
        %v2580 = vpop.f32.mrb[0].mxu0
        %v2581 = vadd.f32 %v2466, %v2580
        %v2582 = vpop.f32.mrb[0].mxu0
        %2583 = vmatprep.mubr.f32.mxu0 0.0
        %v2584 = vand.u32 %v2483, 4294901760
        %v2585 = vsub.f32 %v2483, %v2584
        %v2586 = vand.u32 %v2585, 4294901760
        %v2587 = vsub.f32 %v2585, %v2586
        %v2588 = vand.u32 %v2587, 4294901760
        %2589 = vmatmul.mubr.f32.gmra.mrb[0].mxu0 %v2588
        %v2590 = vpop.f32.mrb[0].mxu0
        %v2591 = vadd.f32 %v2471, %v2590
        %v2592 = vpop.f32.mrb[0].mxu0
        %2593 = vdwg.mxu0
        %2594 = vmatprep.subr.mxu0 0.0
        %v2595 = vand.u32 %v2132, 4294901760
        %v2596 = vsub.f32 %v2132, %v2595
        %v2597 = vand.u32 %v2596, 4294901760
        %v2598 = vsub.f32 %v2596, %v2597
        %v2599 = vand.u32 %v2598, 4294901760
        %2600 = vmatpush1.msra.mxu0 %v2599
        %2601 = vmatprep.subr.mxu0 0.0
        %v2602 = vand.u32 %v2236, 4294901760
        %v2603 = vsub.f32 %v2236, %v2602
        %v2604 = vand.u32 %v2603, 4294901760
        %v2605 = vsub.f32 %v2603, %v2604
        %v2606 = vand.u32 %v2605, 4294901760
        %2607 = vmatpush1.msra.mxu0 %v2606
        %2608 = vmatprep.subr.mxu0 0.0
        %v2609 = vand.u32 %v2340, 4294901760
        %v2610 = vsub.f32 %v2340, %v2609
        %v2611 = vand.u32 %v2610, 4294901760
        %v2612 = vsub.f32 %v2610, %v2611
        %v2613 = vand.u32 %v2612, 4294901760
        %2614 = vmatpush1.msra.mxu0 %v2613
        %2615 = vmatprep.subr.mxu0 0.0
        %v2616 = vand.u32 %v2444, 4294901760
        %v2617 = vsub.f32 %v2444, %v2616
        %v2618 = vand.u32 %v2617, 4294901760
        %v2619 = vsub.f32 %v2617, %v2618
        %v2620 = vand.u32 %v2619, 4294901760
        %2621 = vmatpush1.msra.mxu0 %v2620
        %2622 = vmatprep.subr.mxu0 0.0
        %2623 = vmatpush1.msra.mxu0 0.0
        %2624 = vmatprep.subr.mxu0 0.0
        %2625 = vmatpush1.msra.mxu0 0.0
        %2626 = vmatprep.subr.mxu0 0.0
        %2627 = vmatpush1.msra.mxu0 0.0
        %2628 = vmatprep.subr.mxu0 0.0
        %2629 = vmatpush1.msra.mxu0 0.0
        %2630 = vmatprep.subr.mxu0 0.0
        %2631 = vmatpush1.msra.mxu0 0.0
        %2632 = vmatprep.subr.mxu0 0.0
        %2633 = vmatpush1.msra.mxu0 0.0
        %2634 = vmatprep.subr.mxu0 0.0
        %2635 = vmatpush1.msra.mxu0 0.0
        %2636 = vmatprep.subr.mxu0 0.0
        %2637 = vmatpush1.msra.mxu0 0.0
        %2638 = vmatprep.subr.mxu0 0.0
        %2639 = vmatpush1.msra.mxu0 0.0
        %2640 = vmatprep.subr.mxu0 0.0
        %2641 = vmatpush1.msra.mxu0 0.0
        %2642 = vmatprep.subr.mxu0 0.0
        %2643 = vmatpush1.msra.mxu0 0.0
        %2644 = vmatprep.subr.mxu0 0.0
        %2645 = vmatpush1.msra.mxu0 0.0
        %2646 = vmatprep.subr.mxu0 0.0
        %2647 = vmatpush1.msra.mxu0 0.0
        %2648 = vmatprep.subr.mxu0 0.0
        %2649 = vmatpush1.msra.mxu0 0.0
        %2650 = vmatprep.subr.mxu0 0.0
        %2651 = vmatpush1.msra.mxu0 0.0
        %2652 = vmatprep.subr.mxu0 0.0
        %2653 = vmatpush1.msra.mxu0 0.0
        %2654 = vmatprep.subr.mxu0 0.0
        %2655 = vmatpush1.msra.mxu0 0.0
        %2656 = vmatprep.subr.mxu0 0.0
        %2657 = vmatpush1.msra.mxu0 0.0
        %2658 = vmatprep.subr.mxu0 0.0
        %2659 = vmatpush1.msra.mxu0 0.0
        %2660 = vmatprep.subr.mxu0 0.0
        %2661 = vmatpush1.msra.mxu0 0.0
        %2662 = vmatprep.subr.mxu0 0.0
        %2663 = vmatpush1.msra.mxu0 0.0
        %2664 = vmatprep.subr.mxu0 0.0
        %2665 = vmatpush1.msra.mxu0 0.0
        %2666 = vmatprep.subr.mxu0 0.0
        %2667 = vmatpush1.msra.mxu0 0.0
        %2668 = vmatprep.subr.mxu0 0.0
        %2669 = vmatpush1.msra.mxu0 0.0
        %2670 = vmatprep.subr.mxu0 0.0
        %2671 = vmatpush1.msra.mxu0 0.0
        %2672 = vmatprep.subr.mxu0 0.0
        %2673 = vmatpush1.msra.mxu0 0.0
        %2674 = vmatprep.subr.mxu0 0.0
        %2675 = vmatpush1.msra.mxu0 0.0
        %2676 = vmatprep.subr.mxu0 0.0
        %2677 = vmatpush1.msra.mxu0 0.0
        %2678 = vmatprep.mubr.f32.mxu0 0.0
        %v2679 = vand.u32 %v2474, 4294901760
        %2680 = vmatmul.mubr.f32.gmra.mrb[0].mxu0 %v2679
        %v2681 = vpop.f32.mrb[0].mxu0
        %v2682 = vadd.f32 %v2561, %v2681
        %v2683 = vpop.f32.mrb[0].mxu0
        %2684 = vmatprep.mubr.f32.mxu0 0.0
        %v2685 = vand.u32 %v2477, 4294901760
        %2686 = vmatmul.mubr.f32.gmra.mrb[0].mxu0 %v2685
        %v2687 = vpop.f32.mrb[0].mxu0
        %v2688 = vadd.f32 %v2571, %v2687
        %v2689 = vpop.f32.mrb[0].mxu0
        %2690 = vmatprep.mubr.f32.mxu0 0.0
        %v2691 = vand.u32 %v2480, 4294901760
        %2692 = vmatmul.mubr.f32.gmra.mrb[0].mxu0 %v2691
        %v2693 = vpop.f32.mrb[0].mxu0
        %v2694 = vadd.f32 %v2581, %v2693
        %v2695 = vpop.f32.mrb[0].mxu0
        %2696 = vmatprep.mubr.f32.mxu0 0.0
        %v2697 = vand.u32 %v2483, 4294901760
        %2698 = vmatmul.mubr.f32.gmra.mrb[0].mxu0 %v2697
        %v2699 = vpop.f32.mrb[0].mxu0
        %v2700 = vadd.f32 %v2591, %v2699
        %v2701 = vpop.f32.mrb[0].mxu0
        %2702 = vdwg.mxu0
        %2703 = vmatprep.subr.mxu0 0.0
        %v2704 = vand.u32 %v2132, 4294901760
        %v2705 = vsub.f32 %v2132, %v2704
        %2706 = vmatpush1.msra.mxu0 %v2705
        %2707 = vmatprep.subr.mxu0 0.0
        %v2708 = vand.u32 %v2236, 4294901760
        %v2709 = vsub.f32 %v2236, %v2708
        %2710 = vmatpush1.msra.mxu0 %v2709
        %2711 = vmatprep.subr.mxu0 0.0
        %v2712 = vand.u32 %v2340, 4294901760
        %v2713 = vsub.f32 %v2340, %v2712
        %2714 = vmatpush1.msra.mxu0 %v2713
        %2715 = vmatprep.subr.mxu0 0.0
        %v2716 = vand.u32 %v2444, 4294901760
        %v2717 = vsub.f32 %v2444, %v2716
        %2718 = vmatpush1.msra.mxu0 %v2717
        %2719 = vmatprep.subr.mxu0 0.0
        %2720 = vmatpush1.msra.mxu0 0.0
        %2721 = vmatprep.subr.mxu0 0.0
        %2722 = vmatpush1.msra.mxu0 0.0
        %2723 = vmatprep.subr.mxu0 0.0
        %2724 = vmatpush1.msra.mxu0 0.0
        %2725 = vmatprep.subr.mxu0 0.0
        %2726 = vmatpush1.msra.mxu0 0.0
        %2727 = vmatprep.subr.mxu0 0.0
        %2728 = vmatpush1.msra.mxu0 0.0
        %2729 = vmatprep.subr.mxu0 0.0
        %2730 = vmatpush1.msra.mxu0 0.0
        %2731 = vmatprep.subr.mxu0 0.0
        %2732 = vmatpush1.msra.mxu0 0.0
        %2733 = vmatprep.subr.mxu0 0.0
        %2734 = vmatpush1.msra.mxu0 0.0
        %2735 = vmatprep.subr.mxu0 0.0
        %2736 = vmatpush1.msra.mxu0 0.0
        %2737 = vmatprep.subr.mxu0 0.0
        %2738 = vmatpush1.msra.mxu0 0.0
        %2739 = vmatprep.subr.mxu0 0.0
        %2740 = vmatpush1.msra.mxu0 0.0
        %2741 = vmatprep.subr.mxu0 0.0
        %2742 = vmatpush1.msra.mxu0 0.0
        %2743 = vmatprep.subr.mxu0 0.0
        %2744 = vmatpush1.msra.mxu0 0.0
        %2745 = vmatprep.subr.mxu0 0.0
        %2746 = vmatpush1.msra.mxu0 0.0
        %2747 = vmatprep.subr.mxu0 0.0
        %2748 = vmatpush1.msra.mxu0 0.0
        %2749 = vmatprep.subr.mxu0 0.0
        %2750 = vmatpush1.msra.mxu0 0.0
        %2751 = vmatprep.subr.mxu0 0.0
        %2752 = vmatpush1.msra.mxu0 0.0
        %2753 = vmatprep.subr.mxu0 0.0
        %2754 = vmatpush1.msra.mxu0 0.0
        %2755 = vmatprep.subr.mxu0 0.0
        %2756 = vmatpush1.msra.mxu0 0.0
        %2757 = vmatprep.subr.mxu0 0.0
        %2758 = vmatpush1.msra.mxu0 0.0
        %2759 = vmatprep.subr.mxu0 0.0
        %2760 = vmatpush1.msra.mxu0 0.0
        %2761 = vmatprep.subr.mxu0 0.0
        %2762 = vmatpush1.msra.mxu0 0.0
        %2763 = vmatprep.subr.mxu0 0.0
        %2764 = vmatpush1.msra.mxu0 0.0
        %2765 = vmatprep.subr.mxu0 0.0
        %2766 = vmatpush1.msra.mxu0 0.0
        %2767 = vmatprep.subr.mxu0 0.0
        %2768 = vmatpush1.msra.mxu0 0.0
        %2769 = vmatprep.subr.mxu0 0.0
        %2770 = vmatpush1.msra.mxu0 0.0
        %2771 = vmatprep.subr.mxu0 0.0
        %2772 = vmatpush1.msra.mxu0 0.0
        %2773 = vmatprep.subr.mxu0 0.0
        %2774 = vmatpush1.msra.mxu0 0.0
        %2775 = vmatprep.mubr.f32.mxu0 0.0
        %v2776 = vand.u32 %v2474, 4294901760
        %v2777 = vsub.f32 %v2474, %v2776
        %2778 = vmatmul.mubr.f32.gmra.mrb[0].mxu0 %v2777
        %v2779 = vpop.f32.mrb[0].mxu0
        %v2780 = vadd.f32 %v2682, %v2779
        %v2781 = vpop.f32.mrb[0].mxu0
        %2782 = vmatprep.mubr.f32.mxu0 0.0
        %v2783 = vand.u32 %v2477, 4294901760
        %v2784 = vsub.f32 %v2477, %v2783
        %2785 = vmatmul.mubr.f32.gmra.mrb[0].mxu0 %v2784
        %v2786 = vpop.f32.mrb[0].mxu0
        %v2787 = vadd.f32 %v2688, %v2786
        %v2788 = vpop.f32.mrb[0].mxu0
        %2789 = vmatprep.mubr.f32.mxu0 0.0
        %v2790 = vand.u32 %v2480, 4294901760
        %v2791 = vsub.f32 %v2480, %v2790
        %2792 = vmatmul.mubr.f32.gmra.mrb[0].mxu0 %v2791
        %v2793 = vpop.f32.mrb[0].mxu0
        %v2794 = vadd.f32 %v2694, %v2793
        %v2795 = vpop.f32.mrb[0].mxu0
        %2796 = vmatprep.mubr.f32.mxu0 0.0
        %v2797 = vand.u32 %v2483, 4294901760
        %v2798 = vsub.f32 %v2483, %v2797
        %2799 = vmatmul.mubr.f32.gmra.mrb[0].mxu0 %v2798
        %v2800 = vpop.f32.mrb[0].mxu0
        %v2801 = vadd.f32 %v2700, %v2800
        %v2802 = vpop.f32.mrb[0].mxu0
        %2803 = vdwg.mxu0
        %2804 = vmatprep.subr.mxu0 0.0
        %v2805 = vand.u32 %v2132, 4294901760
        %2806 = vmatpush1.msra.mxu0 %v2805
        %2807 = vmatprep.subr.mxu0 0.0
        %v2808 = vand.u32 %v2236, 4294901760
        %2809 = vmatpush1.msra.mxu0 %v2808
        %2810 = vmatprep.subr.mxu0 0.0
        %v2811 = vand.u32 %v2340, 4294901760
        %2812 = vmatpush1.msra.mxu0 %v2811
        %2813 = vmatprep.subr.mxu0 0.0
        %v2814 = vand.u32 %v2444, 4294901760
        %2815 = vmatpush1.msra.mxu0 %v2814
        %2816 = vmatprep.subr.mxu0 0.0
        %2817 = vmatpush1.msra.mxu0 0.0
        %2818 = vmatprep.subr.mxu0 0.0
        %2819 = vmatpush1.msra.mxu0 0.0
        %2820 = vmatprep.subr.mxu0 0.0
        %2821 = vmatpush1.msra.mxu0 0.0
        %2822 = vmatprep.subr.mxu0 0.0
        %2823 = vmatpush1.msra.mxu0 0.0
        %2824 = vmatprep.subr.mxu0 0.0
        %2825 = vmatpush1.msra.mxu0 0.0
        %2826 = vmatprep.subr.mxu0 0.0
        %2827 = vmatpush1.msra.mxu0 0.0
        %2828 = vmatprep.subr.mxu0 0.0
        %2829 = vmatpush1.msra.mxu0 0.0
        %2830 = vmatprep.subr.mxu0 0.0
        %2831 = vmatpush1.msra.mxu0 0.0
        %2832 = vmatprep.subr.mxu0 0.0
        %2833 = vmatpush1.msra.mxu0 0.0
        %2834 = vmatprep.subr.mxu0 0.0
        %2835 = vmatpush1.msra.mxu0 0.0
        %2836 = vmatprep.subr.mxu0 0.0
        %2837 = vmatpush1.msra.mxu0 0.0
        %2838 = vmatprep.subr.mxu0 0.0
        %2839 = vmatpush1.msra.mxu0 0.0
        %2840 = vmatprep.subr.mxu0 0.0
        %2841 = vmatpush1.msra.mxu0 0.0
        %2842 = vmatprep.subr.mxu0 0.0
        %2843 = vmatpush1.msra.mxu0 0.0
        %2844 = vmatprep.subr.mxu0 0.0
        %2845 = vmatpush1.msra.mxu0 0.0
        %2846 = vmatprep.subr.mxu0 0.0
        %2847 = vmatpush1.msra.mxu0 0.0
        %2848 = vmatprep.subr.mxu0 0.0
        %2849 = vmatpush1.msra.mxu0 0.0
        %2850 = vmatprep.subr.mxu0 0.0
        %2851 = vmatpush1.msra.mxu0 0.0
        %2852 = vmatprep.subr.mxu0 0.0
        %2853 = vmatpush1.msra.mxu0 0.0
        %2854 = vmatprep.subr.mxu0 0.0
        %2855 = vmatpush1.msra.mxu0 0.0
        %2856 = vmatprep.subr.mxu0 0.0
        %2857 = vmatpush1.msra.mxu0 0.0
        %2858 = vmatprep.subr.mxu0 0.0
        %2859 = vmatpush1.msra.mxu0 0.0
        %2860 = vmatprep.subr.mxu0 0.0
        %2861 = vmatpush1.msra.mxu0 0.0
        %2862 = vmatprep.subr.mxu0 0.0
        %2863 = vmatpush1.msra.mxu0 0.0
        %2864 = vmatprep.subr.mxu0 0.0
        %2865 = vmatpush1.msra.mxu0 0.0
        %2866 = vmatprep.subr.mxu0 0.0
        %2867 = vmatpush1.msra.mxu0 0.0
        %2868 = vmatprep.subr.mxu0 0.0
        %2869 = vmatpush1.msra.mxu0 0.0
        %2870 = vmatprep.subr.mxu0 0.0
        %2871 = vmatpush1.msra.mxu0 0.0
        %2872 = vmatprep.mubr.f32.mxu0 0.0
        %v2873 = vand.u32 %v2474, 4294901760
        %v2874 = vsub.f32 %v2474, %v2873
        %v2875 = vand.u32 %v2874, 4294901760
        %2876 = vmatmul.mubr.f32.gmra.mrb[0].mxu0 %v2875
        %v2877 = vpop.f32.mrb[0].mxu0
        %v2878 = vadd.f32 %v2780, %v2877
        %v2879 = vpop.f32.mrb[0].mxu0
        %2880 = vmatprep.mubr.f32.mxu0 0.0
        %v2881 = vand.u32 %v2477, 4294901760
        %v2882 = vsub.f32 %v2477, %v2881
        %v2883 = vand.u32 %v2882, 4294901760
        %2884 = vmatmul.mubr.f32.gmra.mrb[0].mxu0 %v2883
        %v2885 = vpop.f32.mrb[0].mxu0
        %v2886 = vadd.f32 %v2787, %v2885
        %v2887 = vpop.f32.mrb[0].mxu0
        %2888 = vmatprep.mubr.f32.mxu0 0.0
        %v2889 = vand.u32 %v2480, 4294901760
        %v2890 = vsub.f32 %v2480, %v2889
        %v2891 = vand.u32 %v2890, 4294901760
        %2892 = vmatmul.mubr.f32.gmra.mrb[0].mxu0 %v2891
        %v2893 = vpop.f32.mrb[0].mxu0
        %v2894 = vadd.f32 %v2794, %v2893
        %v2895 = vpop.f32.mrb[0].mxu0
        %2896 = vmatprep.mubr.f32.mxu0 0.0
        %v2897 = vand.u32 %v2483, 4294901760
        %v2898 = vsub.f32 %v2483, %v2897
        %v2899 = vand.u32 %v2898, 4294901760
        %2900 = vmatmul.mubr.f32.gmra.mrb[0].mxu0 %v2899
        %v2901 = vpop.f32.mrb[0].mxu0
        %v2902 = vadd.f32 %v2801, %v2901
        %v2903 = vpop.f32.mrb[0].mxu0
        %2904 = vdwg.mxu0
        %2905 = vmatprep.subr.mxu0 0.0
        %v2906 = vand.u32 %v2132, 4294901760
        %v2907 = vsub.f32 %v2132, %v2906
        %v2908 = vand.u32 %v2907, 4294901760
        %2909 = vmatpush1.msra.mxu0 %v2908
        %2910 = vmatprep.subr.mxu0 0.0
        %v2911 = vand.u32 %v2236, 4294901760
        %v2912 = vsub.f32 %v2236, %v2911
        %v2913 = vand.u32 %v2912, 4294901760
        %2914 = vmatpush1.msra.mxu0 %v2913
        %2915 = vmatprep.subr.mxu0 0.0
        %v2916 = vand.u32 %v2340, 4294901760
        %v2917 = vsub.f32 %v2340, %v2916
        %v2918 = vand.u32 %v2917, 4294901760
        %2919 = vmatpush1.msra.mxu0 %v2918
        %2920 = vmatprep.subr.mxu0 0.0
        %v2921 = vand.u32 %v2444, 4294901760
        %v2922 = vsub.f32 %v2444, %v2921
        %v2923 = vand.u32 %v2922, 4294901760
        %2924 = vmatpush1.msra.mxu0 %v2923
        %2925 = vmatprep.subr.mxu0 0.0
        %2926 = vmatpush1.msra.mxu0 0.0
        %2927 = vmatprep.subr.mxu0 0.0
        %2928 = vmatpush1.msra.mxu0 0.0
        %2929 = vmatprep.subr.mxu0 0.0
        %2930 = vmatpush1.msra.mxu0 0.0
        %2931 = vmatprep.subr.mxu0 0.0
        %2932 = vmatpush1.msra.mxu0 0.0
        %2933 = vmatprep.subr.mxu0 0.0
        %2934 = vmatpush1.msra.mxu0 0.0
        %2935 = vmatprep.subr.mxu0 0.0
        %2936 = vmatpush1.msra.mxu0 0.0
        %2937 = vmatprep.subr.mxu0 0.0
        %2938 = vmatpush1.msra.mxu0 0.0
        %2939 = vmatprep.subr.mxu0 0.0
        %2940 = vmatpush1.msra.mxu0 0.0
        %2941 = vmatprep.subr.mxu0 0.0
        %2942 = vmatpush1.msra.mxu0 0.0
        %2943 = vmatprep.subr.mxu0 0.0
        %2944 = vmatpush1.msra.mxu0 0.0
        %2945 = vmatprep.subr.mxu0 0.0
        %2946 = vmatpush1.msra.mxu0 0.0
        %2947 = vmatprep.subr.mxu0 0.0
        %2948 = vmatpush1.msra.mxu0 0.0
        %2949 = vmatprep.subr.mxu0 0.0
        %2950 = vmatpush1.msra.mxu0 0.0
        %2951 = vmatprep.subr.mxu0 0.0
        %2952 = vmatpush1.msra.mxu0 0.0
        %2953 = vmatprep.subr.mxu0 0.0
        %2954 = vmatpush1.msra.mxu0 0.0
        %2955 = vmatprep.subr.mxu0 0.0
        %2956 = vmatpush1.msra.mxu0 0.0
        %2957 = vmatprep.subr.mxu0 0.0
        %2958 = vmatpush1.msra.mxu0 0.0
        %2959 = vmatprep.subr.mxu0 0.0
        %2960 = vmatpush1.msra.mxu0 0.0
        %2961 = vmatprep.subr.mxu0 0.0
        %2962 = vmatpush1.msra.mxu0 0.0
        %2963 = vmatprep.subr.mxu0 0.0
        %2964 = vmatpush1.msra.mxu0 0.0
        %2965 = vmatprep.subr.mxu0 0.0
        %2966 = vmatpush1.msra.mxu0 0.0
        %2967 = vmatprep.subr.mxu0 0.0
        %2968 = vmatpush1.msra.mxu0 0.0
        %2969 = vmatprep.subr.mxu0 0.0
        %2970 = vmatpush1.msra.mxu0 0.0
        %2971 = vmatprep.subr.mxu0 0.0
        %2972 = vmatpush1.msra.mxu0 0.0
        %2973 = vmatprep.subr.mxu0 0.0
        %2974 = vmatpush1.msra.mxu0 0.0
        %2975 = vmatprep.subr.mxu0 0.0
        %2976 = vmatpush1.msra.mxu0 0.0
        %2977 = vmatprep.subr.mxu0 0.0
        %2978 = vmatpush1.msra.mxu0 0.0
        %2979 = vmatprep.subr.mxu0 0.0
        %2980 = vmatpush1.msra.mxu0 0.0
        %2981 = vmatprep.mubr.f32.mxu0 0.0
        %v2982 = vand.u32 %v2474, 4294901760
        %2983 = vmatmul.mubr.f32.gmra.mrb[0].mxu0 %v2982
        %v2984 = vpop.f32.mrb[0].mxu0
        %v2985 = vadd.f32 %v2878, %v2984
        %v2986 = vpop.f32.mrb[0].mxu0
        %2987 = vmatprep.mubr.f32.mxu0 0.0
        %v2988 = vand.u32 %v2477, 4294901760
        %2989 = vmatmul.mubr.f32.gmra.mrb[0].mxu0 %v2988
        %v2990 = vpop.f32.mrb[0].mxu0
        %v2991 = vadd.f32 %v2886, %v2990
        %v2992 = vpop.f32.mrb[0].mxu0
        %2993 = vmatprep.mubr.f32.mxu0 0.0
        %v2994 = vand.u32 %v2480, 4294901760
        %2995 = vmatmul.mubr.f32.gmra.mrb[0].mxu0 %v2994
        %v2996 = vpop.f32.mrb[0].mxu0
        %v2997 = vadd.f32 %v2894, %v2996
        %v2998 = vpop.f32.mrb[0].mxu0
        %2999 = vmatprep.mubr.f32.mxu0 0.0
        %v3000 = vand.u32 %v2483, 4294901760
        %3001 = vmatmul.mubr.f32.gmra.mrb[0].mxu0 %v3000
        %v3002 = vpop.f32.mrb[0].mxu0
        %v3003 = vadd.f32 %v2902, %v3002
        %v3004 = vpop.f32.mrb[0].mxu0
        %3005 = vdwg.mxu0
        %3006 = vmatprep.subr.mxu0 0.0
        %v3007 = vand.u32 %v2132, 4294901760
        %3008 = vmatpush1.msra.mxu0 %v3007
        %3009 = vmatprep.subr.mxu0 0.0
        %v3010 = vand.u32 %v2236, 4294901760
        %3011 = vmatpush1.msra.mxu0 %v3010
        %3012 = vmatprep.subr.mxu0 0.0
        %v3013 = vand.u32 %v2340, 4294901760
        %3014 = vmatpush1.msra.mxu0 %v3013
        %3015 = vmatprep.subr.mxu0 0.0
        %v3016 = vand.u32 %v2444, 4294901760
        %3017 = vmatpush1.msra.mxu0 %v3016
        %3018 = vmatprep.subr.mxu0 0.0
        %3019 = vmatpush1.msra.mxu0 0.0
        %3020 = vmatprep.subr.mxu0 0.0
        %3021 = vmatpush1.msra.mxu0 0.0
        %3022 = vmatprep.subr.mxu0 0.0
        %3023 = vmatpush1.msra.mxu0 0.0
        %3024 = vmatprep.subr.mxu0 0.0
        %3025 = vmatpush1.msra.mxu0 0.0
        %3026 = vmatprep.subr.mxu0 0.0
        %3027 = vmatpush1.msra.mxu0 0.0
        %3028 = vmatprep.subr.mxu0 0.0
        %3029 = vmatpush1.msra.mxu0 0.0
        %3030 = vmatprep.subr.mxu0 0.0
        %3031 = vmatpush1.msra.mxu0 0.0
        %3032 = vmatprep.subr.mxu0 0.0
        %3033 = vmatpush1.msra.mxu0 0.0
        %3034 = vmatprep.subr.mxu0 0.0
        %3035 = vmatpush1.msra.mxu0 0.0
        %3036 = vmatprep.subr.mxu0 0.0
        %3037 = vmatpush1.msra.mxu0 0.0
        %3038 = vmatprep.subr.mxu0 0.0
        %3039 = vmatpush1.msra.mxu0 0.0
        %3040 = vmatprep.subr.mxu0 0.0
        %3041 = vmatpush1.msra.mxu0 0.0
        %3042 = vmatprep.subr.mxu0 0.0
        %3043 = vmatpush1.msra.mxu0 0.0
        %3044 = vmatprep.subr.mxu0 0.0
        %3045 = vmatpush1.msra.mxu0 0.0
        %3046 = vmatprep.subr.mxu0 0.0
        %3047 = vmatpush1.msra.mxu0 0.0
        %3048 = vmatprep.subr.mxu0 0.0
        %3049 = vmatpush1.msra.mxu0 0.0
        %3050 = vmatprep.subr.mxu0 0.0
        %3051 = vmatpush1.msra.mxu0 0.0
        %3052 = vmatprep.subr.mxu0 0.0
        %3053 = vmatpush1.msra.mxu0 0.0
        %3054 = vmatprep.subr.mxu0 0.0
        %3055 = vmatpush1.msra.mxu0 0.0
        %3056 = vmatprep.subr.mxu0 0.0
        %3057 = vmatpush1.msra.mxu0 0.0
        %3058 = vmatprep.subr.mxu0 0.0
        %3059 = vmatpush1.msra.mxu0 0.0
        %3060 = vmatprep.subr.mxu0 0.0
        %3061 = vmatpush1.msra.mxu0 0.0
        %3062 = vmatprep.subr.mxu0 0.0
        %3063 = vmatpush1.msra.mxu0 0.0
        %3064 = vmatprep.subr.mxu0 0.0
        %3065 = vmatpush1.msra.mxu0 0.0
        %3066 = vmatprep.subr.mxu0 0.0
        %3067 = vmatpush1.msra.mxu0 0.0
        %3068 = vmatprep.subr.mxu0 0.0
        %3069 = vmatpush1.msra.mxu0 0.0
        %3070 = vmatprep.subr.mxu0 0.0
        %3071 = vmatpush1.msra.mxu0 0.0
        %3072 = vmatprep.subr.mxu0 0.0
        %3073 = vmatpush1.msra.mxu0 0.0
        %3074 = vmatprep.mubr.f32.mxu0 0.0
        %v3075 = vand.u32 %v2474, 4294901760
        %3076 = vmatmul.mubr.f32.gmra.mrb[0].mxu0 %v3075
        %v3077 = vpop.f32.mrb[0].mxu0
        %v3078 = vadd.f32 %v2985, %v3077
        %v3079 = vpop.f32.mrb[0].mxu0
        %3080 = vmatprep.mubr.f32.mxu0 0.0
        %v3081 = vand.u32 %v2477, 4294901760
        %3082 = vmatmul.mubr.f32.gmra.mrb[0].mxu0 %v3081
        %v3083 = vpop.f32.mrb[0].mxu0
        %v3084 = vadd.f32 %v2991, %v3083
        %v3085 = vpop.f32.mrb[0].mxu0
        %3086 = vmatprep.mubr.f32.mxu0 0.0
        %v3087 = vand.u32 %v2480, 4294901760
        %3088 = vmatmul.mubr.f32.gmra.mrb[0].mxu0 %v3087
        %v3089 = vpop.f32.mrb[0].mxu0
        %v3090 = vadd.f32 %v2997, %v3089
        %v3091 = vpop.f32.mrb[0].mxu0
        %3092 = vmatprep.mubr.f32.mxu0 0.0
        %v3093 = vand.u32 %v2483, 4294901760
        %3094 = vmatmul.mubr.f32.gmra.mrb[0].mxu0 %v3093
        %v3095 = vpop.f32.mrb[0].mxu0
        %v3096 = vadd.f32 %v3003, %v3095
        %v3097 = vpop.f32.mrb[0].mxu0
        %3098 = vdwg.mxu0
        %v3099 = vmul.f32 %v3078, 30.0
        %v3100 = vmul.f32 %v3084, 30.0
        %v3101 = vmul.f32 %v3090, 30.0
        %v3102 = vmul.f32 %v3096, 30.0
        %v3103 = vand.u32 2147483647, %v3099
        %vm3104 = vcmp.le.f32.partialorder %v3103, 0.7853982
        %vm3105 = vcmp.lt.s32.totalorder %v3099, 0
        %v3106 = vand.u32 %v3099, 2139095040
        %v3107 = vshrl.u32 %v3106, 23
        %v3108 = vsub.s32 %v3107, 127
        %v3109 = vand.u32 2147483647, %v3099
        %v3110 = vand.u32 %v3109, 8388607
        %v3111 = vor.u32 %v3110, 8388608
        %v3112 = vsub.s32 0, %v3111
        %v3113 = vadd.s32 %v3108, 1
        %vm3114 = vcmp.gt.s32.totalorder %v3113, 0
        %v3115 = vsel %vm3114, %v3113, 0
        %v3116 = vshrl.u32 %v3115, 5
        %v3117 = vand.u32 %v3115, 31
        %v3118 = vsub.s32 32, %v3117
        %v3119 = vshrl.u32 683565275, %v3118
        %v3120 = vshll.u32 683565275, %v3117
        %v3121 = vshrl.u32 2475754826, %v3118
        %v3122 = vor.u32 %v3120, %v3121
        %v3123 = vshll.u32 2475754826, %v3117
        %v3124 = vshrl.u32 2131351028, %v3118
        %v3125 = vor.u32 %v3123, %v3124
        %v3126 = vshll.u32 2131351028, %v3117
        %v3127 = vshrl.u32 2102212464, %v3118
        %v3128 = vor.u32 %v3126, %v3127
        %v3129 = vshll.u32 2102212464, %v3117
        %v3130 = vshrl.u32 920167782, %v3118
        %v3131 = vor.u32 %v3129, %v3130
        %v3132 = vshll.u32 920167782, %v3117
        %v3133 = vshrl.u32 1326507024, %v3118
        %v3134 = vor.u32 %v3132, %v3133
        %vm3135 = vcmp.lt.s32.totalorder %v3116, 1
        %vm3136 = vcmp.lt.s32.totalorder %v3116, 2
        %vm3137 = vcmp.lt.s32.totalorder %v3116, 3
        %vm3138 = vcmp.lt.s32.totalorder %v3116, 4
        %v3139 = vsel %vm3135, %v3119, %v3122
        %v3140 = vsel %vm3138, %v3128, 2102212464
        %v3141 = vsel %vm3137, %v3125, %v3140
        %v3142 = vsel %vm3136, %v3139, %v3141
        %v3143 = vsel %vm3135, %v3122, %v3125
        %v3144 = vsel %vm3138, %v3131, 920167782
        %v3145 = vsel %vm3137, %v3128, %v3144
        %v3146 = vsel %vm3136, %v3143, %v3145
        %v3147 = vsel %vm3135, %v3125, %v3128
        %v3148 = vsel %vm3138, %v3134, 1326507024
        %v3149 = vsel %vm3137, %v3131, %v3148
        %v3150 = vsel %vm3136, %v3147, %v3149
        %v3151 = vshll.u32 %v3111, 8
        %v3152 = vmul.u32.u64.compose %v3151, %v3150
        %v3153 = vextract.low.u32 %v3152
        %v3154 = vextract.high.u32 %v3152
        %v3155 = vmul.u32.u64.compose %v3151, %v3146
        %v3156 = vextract.low.u32 %v3155
        %v3157 = vextract.high.u32 %v3155
        %v3158 = vmul.u32 %v3151, %v3142
        %v3159 = vadd.s32 %v3154, %v3156
        %vm3160 = vc.u32 %v3154, %v3156
        %v3161 = vadd.s32 %v3157, 1
        %v3162 = vsel %vm3160, %v3161, %v3157
        %v3163 = vadd.s32 %v3158, %v3162
        %v3164 = vadd.s32 %v3163, 536870912
        %v3165 = vshrl.u32 %v3164, 30
        %v3166 = vshll.u32 %v3165, 30
        %v3167 = vsub.s32 %v3163, %v3166
        %vm3168 = vcmp.lt.s32.totalorder %v3167, 0
        %v3169 = vsub.s32 0, %v3167
        %v3170 = vsel %vm3168, %v3169, %v3167
        %v3171 = vclz %v3170
        %v3172 = vsub.s32 %v3171, 2
        %vm3173 = vcmp.gt.s32.totalorder 0, %v3172
        %v3174 = vsel %vm3173, 0, %v3172
        %v3175 = vsub.s32 32, %v3174
        %v3176 = vshll.u32 %v3167, %v3174
        %v3177 = vshrl.u32 %v3159, %v3175
        %v3178 = vor.u32 %v3176, %v3177
        %v3179 = vsub.s32 4294967266, %v3174
        %v3180 = vadd.s32 %v3179, 127
        %v3181 = vshll.u32 %v3180, 23
        %v3182 = vor.u32 4788187, %v3181
        %v3183 = vand.u32 2147483647, %v3182
        %v3185 = vcvt.s32.f32 %v3178
        %v3186 = vmul.f32 %v3185, %v3183
        %v3187 = vxor.u32 %v3186, 2147483648
        %v3188 = vsel %vm3105, %v3187, %v3186
        %v3189 = vsub.s32 4, %v3165
        %v3190 = vsel %vm3105, %v3189, %v3165
        %v3191 = vsel %vm3104, %v3099, %v3188
        %v3192 = vsel %vm3104, 0, %v3190
        %v3193 = vcosq.f32.pop %v3191
        %v3194 = vsinq.f32.pop %v3191
        %vm3195 = vweird.f32 %v3099
        %v3196 = vadd.s32 %v3192, 3
        %v3197 = vand.u32 %v3196, 3
        %vm3198 = vcmp.lt.s32.totalorder %v3197, 2
        %vm3199 = vcmp.eq.s32.totalorder %v3197, 0
        %v3200 = vxor.u32 %v3194, 2147483648
        %v3201 = vsel %vm3199, %v3193, %v3200
        %vm3202 = vcmp.eq.s32.totalorder %v3197, 2
        %v3203 = vxor.u32 %v3193, 2147483648
        %v3204 = vsel %vm3202, %v3203, %v3194
        %v3205 = vsel %vm3198, %v3201, %v3204
        %v3206 = vsel %vm3195, nan, %v3205
        %v3207 = vand.u32 2147483647, %v3100
        %vm3208 = vcmp.le.f32.partialorder %v3207, 0.7853982
        %vm3209 = vcmp.lt.s32.totalorder %v3100, 0
        %v3210 = vand.u32 %v3100, 2139095040
        %v3211 = vshrl.u32 %v3210, 23
        %v3212 = vsub.s32 %v3211, 127
        %v3213 = vand.u32 2147483647, %v3100
        %v3214 = vand.u32 %v3213, 8388607
        %v3215 = vor.u32 %v3214, 8388608
        %v3216 = vsub.s32 0, %v3215
        %v3217 = vadd.s32 %v3212, 1
        %vm3218 = vcmp.gt.s32.totalorder %v3217, 0
        %v3219 = vsel %vm3218, %v3217, 0
        %v3220 = vshrl.u32 %v3219, 5
        %v3221 = vand.u32 %v3219, 31
        %v3222 = vsub.s32 32, %v3221
        %v3223 = vshrl.u32 683565275, %v3222
        %v3224 = vshll.u32 683565275, %v3221
        %v3225 = vshrl.u32 2475754826, %v3222
        %v3226 = vor.u32 %v3224, %v3225
        %v3227 = vshll.u32 2475754826, %v3221
        %v3228 = vshrl.u32 2131351028, %v3222
        %v3229 = vor.u32 %v3227, %v3228
        %v3230 = vshll.u32 2131351028, %v3221
        %v3231 = vshrl.u32 2102212464, %v3222
        %v3232 = vor.u32 %v3230, %v3231
        %v3233 = vshll.u32 2102212464, %v3221
        %v3234 = vshrl.u32 920167782, %v3222
        %v3235 = vor.u32 %v3233, %v3234
        %v3236 = vshll.u32 920167782, %v3221
        %v3237 = vshrl.u32 1326507024, %v3222
        %v3238 = vor.u32 %v3236, %v3237
        %vm3239 = vcmp.lt.s32.totalorder %v3220, 1
        %vm3240 = vcmp.lt.s32.totalorder %v3220, 2
        %vm3241 = vcmp.lt.s32.totalorder %v3220, 3
        %vm3242 = vcmp.lt.s32.totalorder %v3220, 4
        %v3243 = vsel %vm3239, %v3223, %v3226
        %v3244 = vsel %vm3242, %v3232, 2102212464
        %v3245 = vsel %vm3241, %v3229, %v3244
        %v3246 = vsel %vm3240, %v3243, %v3245
        %v3247 = vsel %vm3239, %v3226, %v3229
        %v3248 = vsel %vm3242, %v3235, 920167782
        %v3249 = vsel %vm3241, %v3232, %v3248
        %v3250 = vsel %vm3240, %v3247, %v3249
        %v3251 = vsel %vm3239, %v3229, %v3232
        %v3252 = vsel %vm3242, %v3238, 1326507024
        %v3253 = vsel %vm3241, %v3235, %v3252
        %v3254 = vsel %vm3240, %v3251, %v3253
        %v3255 = vshll.u32 %v3215, 8
        %v3256 = vmul.u32.u64.compose %v3255, %v3254
        %v3257 = vextract.low.u32 %v3256
        %v3258 = vextract.high.u32 %v3256
        %v3259 = vmul.u32.u64.compose %v3255, %v3250
        %v3260 = vextract.low.u32 %v3259
        %v3261 = vextract.high.u32 %v3259
        %v3262 = vmul.u32 %v3255, %v3246
        %v3263 = vadd.s32 %v3258, %v3260
        %vm3264 = vc.u32 %v3258, %v3260
        %v3265 = vadd.s32 %v3261, 1
        %v3266 = vsel %vm3264, %v3265, %v3261
        %v3267 = vadd.s32 %v3262, %v3266
        %v3268 = vadd.s32 %v3267, 536870912
        %v3269 = vshrl.u32 %v3268, 30
        %v3270 = vshll.u32 %v3269, 30
        %v3271 = vsub.s32 %v3267, %v3270
        %vm3272 = vcmp.lt.s32.totalorder %v3271, 0
        %v3273 = vsub.s32 0, %v3271
        %v3274 = vsel %vm3272, %v3273, %v3271
        %v3275 = vclz %v3274
        %v3276 = vsub.s32 %v3275, 2
        %vm3277 = vcmp.gt.s32.totalorder 0, %v3276
        %v3278 = vsel %vm3277, 0, %v3276
        %v3279 = vsub.s32 32, %v3278
        %v3280 = vshll.u32 %v3271, %v3278
        %v3281 = vshrl.u32 %v3263, %v3279
        %v3282 = vor.u32 %v3280, %v3281
        %v3283 = vsub.s32 4294967266, %v3278
        %v3284 = vadd.s32 %v3283, 127
        %v3285 = vshll.u32 %v3284, 23
        %v3286 = vor.u32 4788187, %v3285
        %v3287 = vand.u32 2147483647, %v3286
        %v3289 = vcvt.s32.f32 %v3282
        %v3290 = vmul.f32 %v3289, %v3287
        %v3291 = vxor.u32 %v3290, 2147483648
        %v3292 = vsel %vm3209, %v3291, %v3290
        %v3293 = vsub.s32 4, %v3269
        %v3294 = vsel %vm3209, %v3293, %v3269
        %v3295 = vsel %vm3208, %v3100, %v3292
        %v3296 = vsel %vm3208, 0, %v3294
        %v3297 = vcosq.f32.pop %v3295
        %v3298 = vsinq.f32.pop %v3295
        %vm3299 = vweird.f32 %v3100
        %v3300 = vadd.s32 %v3296, 3
        %v3301 = vand.u32 %v3300, 3
        %vm3302 = vcmp.lt.s32.totalorder %v3301, 2
        %vm3303 = vcmp.eq.s32.totalorder %v3301, 0
        %v3304 = vxor.u32 %v3298, 2147483648
        %v3305 = vsel %vm3303, %v3297, %v3304
        %vm3306 = vcmp.eq.s32.totalorder %v3301, 2
        %v3307 = vxor.u32 %v3297, 2147483648
        %v3308 = vsel %vm3306, %v3307, %v3298
        %v3309 = vsel %vm3302, %v3305, %v3308
        %v3310 = vsel %vm3299, nan, %v3309
        %v3311 = vand.u32 2147483647, %v3101
        %vm3312 = vcmp.le.f32.partialorder %v3311, 0.7853982
        %vm3313 = vcmp.lt.s32.totalorder %v3101, 0
        %v3314 = vand.u32 %v3101, 2139095040
        %v3315 = vshrl.u32 %v3314, 23
        %v3316 = vsub.s32 %v3315, 127
        %v3317 = vand.u32 2147483647, %v3101
        %v3318 = vand.u32 %v3317, 8388607
        %v3319 = vor.u32 %v3318, 8388608
        %v3320 = vsub.s32 0, %v3319
        %v3321 = vadd.s32 %v3316, 1
        %vm3322 = vcmp.gt.s32.totalorder %v3321, 0
        %v3323 = vsel %vm3322, %v3321, 0
        %v3324 = vshrl.u32 %v3323, 5
        %v3325 = vand.u32 %v3323, 31
        %v3326 = vsub.s32 32, %v3325
        %v3327 = vshrl.u32 683565275, %v3326
        %v3328 = vshll.u32 683565275, %v3325
        %v3329 = vshrl.u32 2475754826, %v3326
        %v3330 = vor.u32 %v3328, %v3329
        %v3331 = vshll.u32 2475754826, %v3325
        %v3332 = vshrl.u32 2131351028, %v3326
        %v3333 = vor.u32 %v3331, %v3332
        %v3334 = vshll.u32 2131351028, %v3325
        %v3335 = vshrl.u32 2102212464, %v3326
        %v3336 = vor.u32 %v3334, %v3335
        %v3337 = vshll.u32 2102212464, %v3325
        %v3338 = vshrl.u32 920167782, %v3326
        %v3339 = vor.u32 %v3337, %v3338
        %v3340 = vshll.u32 920167782, %v3325
        %v3341 = vshrl.u32 1326507024, %v3326
        %v3342 = vor.u32 %v3340, %v3341
        %vm3343 = vcmp.lt.s32.totalorder %v3324, 1
        %vm3344 = vcmp.lt.s32.totalorder %v3324, 2
        %vm3345 = vcmp.lt.s32.totalorder %v3324, 3
        %vm3346 = vcmp.lt.s32.totalorder %v3324, 4
        %v3347 = vsel %vm3343, %v3327, %v3330
        %v3348 = vsel %vm3346, %v3336, 2102212464
        %v3349 = vsel %vm3345, %v3333, %v3348
        %v3350 = vsel %vm3344, %v3347, %v3349
        %v3351 = vsel %vm3343, %v3330, %v3333
        %v3352 = vsel %vm3346, %v3339, 920167782
        %v3353 = vsel %vm3345, %v3336, %v3352
        %v3354 = vsel %vm3344, %v3351, %v3353
        %v3355 = vsel %vm3343, %v3333, %v3336
        %v3356 = vsel %vm3346, %v3342, 1326507024
        %v3357 = vsel %vm3345, %v3339, %v3356
        %v3358 = vsel %vm3344, %v3355, %v3357
        %v3359 = vshll.u32 %v3319, 8
        %v3360 = vmul.u32.u64.compose %v3359, %v3358
        %v3361 = vextract.low.u32 %v3360
        %v3362 = vextract.high.u32 %v3360
        %v3363 = vmul.u32.u64.compose %v3359, %v3354
        %v3364 = vextract.low.u32 %v3363
        %v3365 = vextract.high.u32 %v3363
        %v3366 = vmul.u32 %v3359, %v3350
        %v3367 = vadd.s32 %v3362, %v3364
        %vm3368 = vc.u32 %v3362, %v3364
        %v3369 = vadd.s32 %v3365, 1
        %v3370 = vsel %vm3368, %v3369, %v3365
        %v3371 = vadd.s32 %v3366, %v3370
        %v3372 = vadd.s32 %v3371, 536870912
        %v3373 = vshrl.u32 %v3372, 30
        %v3374 = vshll.u32 %v3373, 30
        %v3375 = vsub.s32 %v3371, %v3374
        %vm3376 = vcmp.lt.s32.totalorder %v3375, 0
        %v3377 = vsub.s32 0, %v3375
        %v3378 = vsel %vm3376, %v3377, %v3375
        %v3379 = vclz %v3378
        %v3380 = vsub.s32 %v3379, 2
        %vm3381 = vcmp.gt.s32.totalorder 0, %v3380
        %v3382 = vsel %vm3381, 0, %v3380
        %v3383 = vsub.s32 32, %v3382
        %v3384 = vshll.u32 %v3375, %v3382
        %v3385 = vshrl.u32 %v3367, %v3383
        %v3386 = vor.u32 %v3384, %v3385
        %v3387 = vsub.s32 4294967266, %v3382
        %v3388 = vadd.s32 %v3387, 127
        %v3389 = vshll.u32 %v3388, 23
        %v3390 = vor.u32 4788187, %v3389
        %v3391 = vand.u32 2147483647, %v3390
        %v3393 = vcvt.s32.f32 %v3386
        %v3394 = vmul.f32 %v3393, %v3391
        %v3395 = vxor.u32 %v3394, 2147483648
        %v3396 = vsel %vm3313, %v3395, %v3394
        %v3397 = vsub.s32 4, %v3373
        %v3398 = vsel %vm3313, %v3397, %v3373
        %v3399 = vsel %vm3312, %v3101, %v3396
        %v3400 = vsel %vm3312, 0, %v3398
        %v3401 = vcosq.f32.pop %v3399
        %v3402 = vsinq.f32.pop %v3399
        %vm3403 = vweird.f32 %v3101
        %v3404 = vadd.s32 %v3400, 3
        %v3405 = vand.u32 %v3404, 3
        %vm3406 = vcmp.lt.s32.totalorder %v3405, 2
        %vm3407 = vcmp.eq.s32.totalorder %v3405, 0
        %v3408 = vxor.u32 %v3402, 2147483648
        %v3409 = vsel %vm3407, %v3401, %v3408
        %vm3410 = vcmp.eq.s32.totalorder %v3405, 2
        %v3411 = vxor.u32 %v3401, 2147483648
        %v3412 = vsel %vm3410, %v3411, %v3402
        %v3413 = vsel %vm3406, %v3409, %v3412
        %v3414 = vsel %vm3403, nan, %v3413
        %v3415 = vand.u32 2147483647, %v3102
        %vm3416 = vcmp.le.f32.partialorder %v3415, 0.7853982
        %vm3417 = vcmp.lt.s32.totalorder %v3102, 0
        %v3418 = vand.u32 %v3102, 2139095040
        %v3419 = vshrl.u32 %v3418, 23
        %v3420 = vsub.s32 %v3419, 127
        %v3421 = vand.u32 2147483647, %v3102
        %v3422 = vand.u32 %v3421, 8388607
        %v3423 = vor.u32 %v3422, 8388608
        %v3424 = vsub.s32 0, %v3423
        %v3425 = vadd.s32 %v3420, 1
        %vm3426 = vcmp.gt.s32.totalorder %v3425, 0
        %v3427 = vsel %vm3426, %v3425, 0
        %v3428 = vshrl.u32 %v3427, 5
        %v3429 = vand.u32 %v3427, 31
        %v3430 = vsub.s32 32, %v3429
        %v3431 = vshrl.u32 683565275, %v3430
        %v3432 = vshll.u32 683565275, %v3429
        %v3433 = vshrl.u32 2475754826, %v3430
        %v3434 = vor.u32 %v3432, %v3433
        %v3435 = vshll.u32 2475754826, %v3429
        %v3436 = vshrl.u32 2131351028, %v3430
        %v3437 = vor.u32 %v3435, %v3436
        %v3438 = vshll.u32 2131351028, %v3429
        %v3439 = vshrl.u32 2102212464, %v3430
        %v3440 = vor.u32 %v3438, %v3439
        %v3441 = vshll.u32 2102212464, %v3429
        %v3442 = vshrl.u32 920167782, %v3430
        %v3443 = vor.u32 %v3441, %v3442
        %v3444 = vshll.u32 920167782, %v3429
        %v3445 = vshrl.u32 1326507024, %v3430
        %v3446 = vor.u32 %v3444, %v3445
        %vm3447 = vcmp.lt.s32.totalorder %v3428, 1
        %vm3448 = vcmp.lt.s32.totalorder %v3428, 2
        %vm3449 = vcmp.lt.s32.totalorder %v3428, 3
        %vm3450 = vcmp.lt.s32.totalorder %v3428, 4
        %v3451 = vsel %vm3447, %v3431, %v3434
        %v3452 = vsel %vm3450, %v3440, 2102212464
        %v3453 = vsel %vm3449, %v3437, %v3452
        %v3454 = vsel %vm3448, %v3451, %v3453
        %v3455 = vsel %vm3447, %v3434, %v3437
        %v3456 = vsel %vm3450, %v3443, 920167782
        %v3457 = vsel %vm3449, %v3440, %v3456
        %v3458 = vsel %vm3448, %v3455, %v3457
        %v3459 = vsel %vm3447, %v3437, %v3440
        %v3460 = vsel %vm3450, %v3446, 1326507024
        %v3461 = vsel %vm3449, %v3443, %v3460
        %v3462 = vsel %vm3448, %v3459, %v3461
        %v3463 = vshll.u32 %v3423, 8
        %v3464 = vmul.u32.u64.compose %v3463, %v3462
        %v3465 = vextract.low.u32 %v3464
        %v3466 = vextract.high.u32 %v3464
        %v3467 = vmul.u32.u64.compose %v3463, %v3458
        %v3468 = vextract.low.u32 %v3467
        %v3469 = vextract.high.u32 %v3467
        %v3470 = vmul.u32 %v3463, %v3454
        %v3471 = vadd.s32 %v3466, %v3468
        %vm3472 = vc.u32 %v3466, %v3468
        %v3473 = vadd.s32 %v3469, 1
        %v3474 = vsel %vm3472, %v3473, %v3469
        %v3475 = vadd.s32 %v3470, %v3474
        %v3476 = vadd.s32 %v3475, 536870912
        %v3477 = vshrl.u32 %v3476, 30
        %v3478 = vshll.u32 %v3477, 30
        %v3479 = vsub.s32 %v3475, %v3478
        %vm3480 = vcmp.lt.s32.totalorder %v3479, 0
        %v3481 = vsub.s32 0, %v3479
        %v3482 = vsel %vm3480, %v3481, %v3479
        %v3483 = vclz %v3482
        %v3484 = vsub.s32 %v3483, 2
        %vm3485 = vcmp.gt.s32.totalorder 0, %v3484
        %v3486 = vsel %vm3485, 0, %v3484
        %v3487 = vsub.s32 32, %v3486
        %v3488 = vshll.u32 %v3479, %v3486
        %v3489 = vshrl.u32 %v3471, %v3487
        %v3490 = vor.u32 %v3488, %v3489
        %v3491 = vsub.s32 4294967266, %v3486
        %v3492 = vadd.s32 %v3491, 127
        %v3493 = vshll.u32 %v3492, 23
        %v3494 = vor.u32 4788187, %v3493
        %v3495 = vand.u32 2147483647, %v3494
        %v3497 = vcvt.s32.f32 %v3490
        %v3498 = vmul.f32 %v3497, %v3495
        %v3499 = vxor.u32 %v3498, 2147483648
        %v3500 = vsel %vm3417, %v3499, %v3498
        %v3501 = vsub.s32 4, %v3477
        %v3502 = vsel %vm3417, %v3501, %v3477
        %v3503 = vsel %vm3416, %v3102, %v3500
        %v3504 = vsel %vm3416, 0, %v3502
        %v3505 = vcosq.f32.pop %v3503
        %v3506 = vsinq.f32.pop %v3503
        %vm3507 = vweird.f32 %v3102
        %v3508 = vadd.s32 %v3504, 3
        %v3509 = vand.u32 %v3508, 3
        %vm3510 = vcmp.lt.s32.totalorder %v3509, 2
        %vm3511 = vcmp.eq.s32.totalorder %v3509, 0
        %v3512 = vxor.u32 %v3506, 2147483648
        %v3513 = vsel %vm3511, %v3505, %v3512
        %vm3514 = vcmp.eq.s32.totalorder %v3509, 2
        %v3515 = vxor.u32 %v3505, 2147483648
        %v3516 = vsel %vm3514, %v3515, %v3506
        %v3517 = vsel %vm3510, %v3513, %v3516
        %v3518 = vsel %vm3507, nan, %v3517
        %v3519 = vld [vmem:[%s7] sm:$0x1]
        %v3520 = vld [vmem:[#allocation2] sm:$0x1]
        %3522 = vset.pattern.permute.xlu0 0
        %3523 = vperm.xlu0 %3522, %v3520
        %v3524 = vpop.permute.xlu0 %3523
        %v3526 = vlaneseq
        %v3527 = vshrl.u32 %v3526, 7
        %v3528 = vsub.s32 0, %v3527
        %v3529 = vrot.slane %v3524, %v3528
        %v3531 = vsel %vm1398, %v3519, 0
        %3533 = vmatprep.subr.mxu0 0.0
        %v3534 = vand.u32 %v3206, 4294901760
        %3535 = vmatpush1.msra.mxu0 %v3534
        %3536 = vmatprep.subr.mxu0 0.0
        %v3537 = vand.u32 %v3310, 4294901760
        %3538 = vmatpush1.msra.mxu0 %v3537
        %3539 = vmatprep.subr.mxu0 0.0
        %v3540 = vand.u32 %v3414, 4294901760
        %3541 = vmatpush1.msra.mxu0 %v3540
        %3542 = vmatprep.subr.mxu0 0.0
        %v3543 = vand.u32 %v3518, 4294901760
        %3544 = vmatpush1.msra.mxu0 %v3543
        %3545 = vmatprep.subr.mxu0 0.0
        %3546 = vmatpush1.msra.mxu0 0.0
        %3547 = vmatprep.subr.mxu0 0.0
        %3548 = vmatpush1.msra.mxu0 0.0
        %3549 = vmatprep.subr.mxu0 0.0
        %3550 = vmatpush1.msra.mxu0 0.0
        %3551 = vmatprep.subr.mxu0 0.0
        %3552 = vmatpush1.msra.mxu0 0.0
        %3553 = vmatprep.subr.mxu0 0.0
        %3554 = vmatpush1.msra.mxu0 0.0
        %3555 = vmatprep.subr.mxu0 0.0
        %3556 = vmatpush1.msra.mxu0 0.0
        %3557 = vmatprep.subr.mxu0 0.0
        %3558 = vmatpush1.msra.mxu0 0.0
        %3559 = vmatprep.subr.mxu0 0.0
        %3560 = vmatpush1.msra.mxu0 0.0
        %3561 = vmatprep.subr.mxu0 0.0
        %3562 = vmatpush1.msra.mxu0 0.0
        %3563 = vmatprep.subr.mxu0 0.0
        %3564 = vmatpush1.msra.mxu0 0.0
        %3565 = vmatprep.subr.mxu0 0.0
        %3566 = vmatpush1.msra.mxu0 0.0
        %3567 = vmatprep.subr.mxu0 0.0
        %3568 = vmatpush1.msra.mxu0 0.0
        %3569 = vmatprep.subr.mxu0 0.0
        %3570 = vmatpush1.msra.mxu0 0.0
        %3571 = vmatprep.subr.mxu0 0.0
        %3572 = vmatpush1.msra.mxu0 0.0
        %3573 = vmatprep.subr.mxu0 0.0
        %3574 = vmatpush1.msra.mxu0 0.0
        %3575 = vmatprep.subr.mxu0 0.0
        %3576 = vmatpush1.msra.mxu0 0.0
        %3577 = vmatprep.subr.mxu0 0.0
        %3578 = vmatpush1.msra.mxu0 0.0
        %3579 = vmatprep.subr.mxu0 0.0
        %3580 = vmatpush1.msra.mxu0 0.0
        %3581 = vmatprep.subr.mxu0 0.0
        %3582 = vmatpush1.msra.mxu0 0.0
        %3583 = vmatprep.subr.mxu0 0.0
        %3584 = vmatpush1.msra.mxu0 0.0
        %3585 = vmatprep.subr.mxu0 0.0
        %3586 = vmatpush1.msra.mxu0 0.0
        %3587 = vmatprep.subr.mxu0 0.0
        %3588 = vmatpush1.msra.mxu0 0.0
        %3589 = vmatprep.subr.mxu0 0.0
        %3590 = vmatpush1.msra.mxu0 0.0
        %3591 = vmatprep.subr.mxu0 0.0
        %3592 = vmatpush1.msra.mxu0 0.0
        %3593 = vmatprep.subr.mxu0 0.0
        %3594 = vmatpush1.msra.mxu0 0.0
        %3595 = vmatprep.subr.mxu0 0.0
        %3596 = vmatpush1.msra.mxu0 0.0
        %3597 = vmatprep.subr.mxu0 0.0
        %3598 = vmatpush1.msra.mxu0 0.0
        %3599 = vmatprep.subr.mxu0 0.0
        %3600 = vmatpush1.msra.mxu0 0.0
        %3601 = vmatprep.mubr.f32.mxu0 0.0
        %v3602 = vand.u32 %v3531, 4294901760
        %v3603 = vsub.f32 %v3531, %v3602
        %v3604 = vand.u32 %v3603, 4294901760
        %v3605 = vsub.f32 %v3603, %v3604
        %v3606 = vand.u32 %v3605, 4294901760
        %3607 = vmatmul.mubr.f32.gmra.mrb[0].mxu0 %v3606
        %v3608 = vpop.f32.mrb[0].mxu0
        %v3609 = vadd.f32 %v3529, %v3608
        %v3610 = vpop.f32.mrb[0].mxu0
        %3611 = vdwg.mxu0
        %3612 = vmatprep.subr.mxu0 0.0
        %v3613 = vand.u32 %v3206, 4294901760
        %v3614 = vsub.f32 %v3206, %v3613
        %v3615 = vand.u32 %v3614, 4294901760
        %v3616 = vsub.f32 %v3614, %v3615
        %v3617 = vand.u32 %v3616, 4294901760
        %3618 = vmatpush1.msra.mxu0 %v3617
        %3619 = vmatprep.subr.mxu0 0.0
        %v3620 = vand.u32 %v3310, 4294901760
        %v3621 = vsub.f32 %v3310, %v3620
        %v3622 = vand.u32 %v3621, 4294901760
        %v3623 = vsub.f32 %v3621, %v3622
        %v3624 = vand.u32 %v3623, 4294901760
        %3625 = vmatpush1.msra.mxu0 %v3624
        %3626 = vmatprep.subr.mxu0 0.0
        %v3627 = vand.u32 %v3414, 4294901760
        %v3628 = vsub.f32 %v3414, %v3627
        %v3629 = vand.u32 %v3628, 4294901760
        %v3630 = vsub.f32 %v3628, %v3629
        %v3631 = vand.u32 %v3630, 4294901760
        %3632 = vmatpush1.msra.mxu0 %v3631
        %3633 = vmatprep.subr.mxu0 0.0
        %v3634 = vand.u32 %v3518, 4294901760
        %v3635 = vsub.f32 %v3518, %v3634
        %v3636 = vand.u32 %v3635, 4294901760
        %v3637 = vsub.f32 %v3635, %v3636
        %v3638 = vand.u32 %v3637, 4294901760
        %3639 = vmatpush1.msra.mxu0 %v3638
        %3640 = vmatprep.subr.mxu0 0.0
        %3641 = vmatpush1.msra.mxu0 0.0
        %3642 = vmatprep.subr.mxu0 0.0
        %3643 = vmatpush1.msra.mxu0 0.0
        %3644 = vmatprep.subr.mxu0 0.0
        %3645 = vmatpush1.msra.mxu0 0.0
        %3646 = vmatprep.subr.mxu0 0.0
        %3647 = vmatpush1.msra.mxu0 0.0
        %3648 = vmatprep.subr.mxu0 0.0
        %3649 = vmatpush1.msra.mxu0 0.0
        %3650 = vmatprep.subr.mxu0 0.0
        %3651 = vmatpush1.msra.mxu0 0.0
        %3652 = vmatprep.subr.mxu0 0.0
        %3653 = vmatpush1.msra.mxu0 0.0
        %3654 = vmatprep.subr.mxu0 0.0
        %3655 = vmatpush1.msra.mxu0 0.0
        %3656 = vmatprep.subr.mxu0 0.0
        %3657 = vmatpush1.msra.mxu0 0.0
        %3658 = vmatprep.subr.mxu0 0.0
        %3659 = vmatpush1.msra.mxu0 0.0
        %3660 = vmatprep.subr.mxu0 0.0
        %3661 = vmatpush1.msra.mxu0 0.0
        %3662 = vmatprep.subr.mxu0 0.0
        %3663 = vmatpush1.msra.mxu0 0.0
        %3664 = vmatprep.subr.mxu0 0.0
        %3665 = vmatpush1.msra.mxu0 0.0
        %3666 = vmatprep.subr.mxu0 0.0
        %3667 = vmatpush1.msra.mxu0 0.0
        %3668 = vmatprep.subr.mxu0 0.0
        %3669 = vmatpush1.msra.mxu0 0.0
        %3670 = vmatprep.subr.mxu0 0.0
        %3671 = vmatpush1.msra.mxu0 0.0
        %3672 = vmatprep.subr.mxu0 0.0
        %3673 = vmatpush1.msra.mxu0 0.0
        %3674 = vmatprep.subr.mxu0 0.0
        %3675 = vmatpush1.msra.mxu0 0.0
        %3676 = vmatprep.subr.mxu0 0.0
        %3677 = vmatpush1.msra.mxu0 0.0
        %3678 = vmatprep.subr.mxu0 0.0
        %3679 = vmatpush1.msra.mxu0 0.0
        %3680 = vmatprep.subr.mxu0 0.0
        %3681 = vmatpush1.msra.mxu0 0.0
        %3682 = vmatprep.subr.mxu0 0.0
        %3683 = vmatpush1.msra.mxu0 0.0
        %3684 = vmatprep.subr.mxu0 0.0
        %3685 = vmatpush1.msra.mxu0 0.0
        %3686 = vmatprep.subr.mxu0 0.0
        %3687 = vmatpush1.msra.mxu0 0.0
        %3688 = vmatprep.subr.mxu0 0.0
        %3689 = vmatpush1.msra.mxu0 0.0
        %3690 = vmatprep.subr.mxu0 0.0
        %3691 = vmatpush1.msra.mxu0 0.0
        %3692 = vmatprep.subr.mxu0 0.0
        %3693 = vmatpush1.msra.mxu0 0.0
        %3694 = vmatprep.subr.mxu0 0.0
        %3695 = vmatpush1.msra.mxu0 0.0
        %3696 = vmatprep.mubr.f32.mxu0 0.0
        %v3697 = vand.u32 %v3531, 4294901760
        %3698 = vmatmul.mubr.f32.gmra.mrb[0].mxu0 %v3697
        %v3699 = vpop.f32.mrb[0].mxu0
        %v3700 = vadd.f32 %v3609, %v3699
        %v3701 = vpop.f32.mrb[0].mxu0
        %3702 = vdwg.mxu0
        %3703 = vmatprep.subr.mxu0 0.0
        %v3704 = vand.u32 %v3206, 4294901760
        %v3705 = vsub.f32 %v3206, %v3704
        %3706 = vmatpush1.msra.mxu0 %v3705
        %3707 = vmatprep.subr.mxu0 0.0
        %v3708 = vand.u32 %v3310, 4294901760
        %v3709 = vsub.f32 %v3310, %v3708
        %3710 = vmatpush1.msra.mxu0 %v3709
        %3711 = vmatprep.subr.mxu0 0.0
        %v3712 = vand.u32 %v3414, 4294901760
        %v3713 = vsub.f32 %v3414, %v3712
        %3714 = vmatpush1.msra.mxu0 %v3713
        %3715 = vmatprep.subr.mxu0 0.0
        %v3716 = vand.u32 %v3518, 4294901760
        %v3717 = vsub.f32 %v3518, %v3716
        %3718 = vmatpush1.msra.mxu0 %v3717
        %3719 = vmatprep.subr.mxu0 0.0
        %3720 = vmatpush1.msra.mxu0 0.0
        %3721 = vmatprep.subr.mxu0 0.0
        %3722 = vmatpush1.msra.mxu0 0.0
        %3723 = vmatprep.subr.mxu0 0.0
        %3724 = vmatpush1.msra.mxu0 0.0
        %3725 = vmatprep.subr.mxu0 0.0
        %3726 = vmatpush1.msra.mxu0 0.0
        %3727 = vmatprep.subr.mxu0 0.0
        %3728 = vmatpush1.msra.mxu0 0.0
        %3729 = vmatprep.subr.mxu0 0.0
        %3730 = vmatpush1.msra.mxu0 0.0
        %3731 = vmatprep.subr.mxu0 0.0
        %3732 = vmatpush1.msra.mxu0 0.0
        %3733 = vmatprep.subr.mxu0 0.0
        %3734 = vmatpush1.msra.mxu0 0.0
        %3735 = vmatprep.subr.mxu0 0.0
        %3736 = vmatpush1.msra.mxu0 0.0
        %3737 = vmatprep.subr.mxu0 0.0
        %3738 = vmatpush1.msra.mxu0 0.0
        %3739 = vmatprep.subr.mxu0 0.0
        %3740 = vmatpush1.msra.mxu0 0.0
        %3741 = vmatprep.subr.mxu0 0.0
        %3742 = vmatpush1.msra.mxu0 0.0
        %3743 = vmatprep.subr.mxu0 0.0
        %3744 = vmatpush1.msra.mxu0 0.0
        %3745 = vmatprep.subr.mxu0 0.0
        %3746 = vmatpush1.msra.mxu0 0.0
        %3747 = vmatprep.subr.mxu0 0.0
        %3748 = vmatpush1.msra.mxu0 0.0
        %3749 = vmatprep.subr.mxu0 0.0
        %3750 = vmatpush1.msra.mxu0 0.0
        %3751 = vmatprep.subr.mxu0 0.0
        %3752 = vmatpush1.msra.mxu0 0.0
        %3753 = vmatprep.subr.mxu0 0.0
        %3754 = vmatpush1.msra.mxu0 0.0
        %3755 = vmatprep.subr.mxu0 0.0
        %3756 = vmatpush1.msra.mxu0 0.0
        %3757 = vmatprep.subr.mxu0 0.0
        %3758 = vmatpush1.msra.mxu0 0.0
        %3759 = vmatprep.subr.mxu0 0.0
        %3760 = vmatpush1.msra.mxu0 0.0
        %3761 = vmatprep.subr.mxu0 0.0
        %3762 = vmatpush1.msra.mxu0 0.0
        %3763 = vmatprep.subr.mxu0 0.0
        %3764 = vmatpush1.msra.mxu0 0.0
        %3765 = vmatprep.subr.mxu0 0.0
        %3766 = vmatpush1.msra.mxu0 0.0
        %3767 = vmatprep.subr.mxu0 0.0
        %3768 = vmatpush1.msra.mxu0 0.0
        %3769 = vmatprep.subr.mxu0 0.0
        %3770 = vmatpush1.msra.mxu0 0.0
        %3771 = vmatprep.subr.mxu0 0.0
        %3772 = vmatpush1.msra.mxu0 0.0
        %3773 = vmatprep.subr.mxu0 0.0
        %3774 = vmatpush1.msra.mxu0 0.0
        %3775 = vmatprep.mubr.f32.mxu0 0.0
        %v3776 = vand.u32 %v3531, 4294901760
        %v3777 = vsub.f32 %v3531, %v3776
        %3778 = vmatmul.mubr.f32.gmra.mrb[0].mxu0 %v3777
        %v3779 = vpop.f32.mrb[0].mxu0
        %v3780 = vadd.f32 %v3700, %v3779
        %v3781 = vpop.f32.mrb[0].mxu0
        %3782 = vdwg.mxu0
        %3783 = vmatprep.subr.mxu0 0.0
        %v3784 = vand.u32 %v3206, 4294901760
        %3785 = vmatpush1.msra.mxu0 %v3784
        %3786 = vmatprep.subr.mxu0 0.0
        %v3787 = vand.u32 %v3310, 4294901760
        %3788 = vmatpush1.msra.mxu0 %v3787
        %3789 = vmatprep.subr.mxu0 0.0
        %v3790 = vand.u32 %v3414, 4294901760
        %3791 = vmatpush1.msra.mxu0 %v3790
        %3792 = vmatprep.subr.mxu0 0.0
        %v3793 = vand.u32 %v3518, 4294901760
        %3794 = vmatpush1.msra.mxu0 %v3793
        %3795 = vmatprep.subr.mxu0 0.0
        %3796 = vmatpush1.msra.mxu0 0.0
        %3797 = vmatprep.subr.mxu0 0.0
        %3798 = vmatpush1.msra.mxu0 0.0
        %3799 = vmatprep.subr.mxu0 0.0
        %3800 = vmatpush1.msra.mxu0 0.0
        %3801 = vmatprep.subr.mxu0 0.0
        %3802 = vmatpush1.msra.mxu0 0.0
        %3803 = vmatprep.subr.mxu0 0.0
        %3804 = vmatpush1.msra.mxu0 0.0
        %3805 = vmatprep.subr.mxu0 0.0
        %3806 = vmatpush1.msra.mxu0 0.0
        %3807 = vmatprep.subr.mxu0 0.0
        %3808 = vmatpush1.msra.mxu0 0.0
        %3809 = vmatprep.subr.mxu0 0.0
        %3810 = vmatpush1.msra.mxu0 0.0
        %3811 = vmatprep.subr.mxu0 0.0
        %3812 = vmatpush1.msra.mxu0 0.0
        %3813 = vmatprep.subr.mxu0 0.0
        %3814 = vmatpush1.msra.mxu0 0.0
        %3815 = vmatprep.subr.mxu0 0.0
        %3816 = vmatpush1.msra.mxu0 0.0
        %3817 = vmatprep.subr.mxu0 0.0
        %3818 = vmatpush1.msra.mxu0 0.0
        %3819 = vmatprep.subr.mxu0 0.0
        %3820 = vmatpush1.msra.mxu0 0.0
        %3821 = vmatprep.subr.mxu0 0.0
        %3822 = vmatpush1.msra.mxu0 0.0
        %3823 = vmatprep.subr.mxu0 0.0
        %3824 = vmatpush1.msra.mxu0 0.0
        %3825 = vmatprep.subr.mxu0 0.0
        %3826 = vmatpush1.msra.mxu0 0.0
        %3827 = vmatprep.subr.mxu0 0.0
        %3828 = vmatpush1.msra.mxu0 0.0
        %3829 = vmatprep.subr.mxu0 0.0
        %3830 = vmatpush1.msra.mxu0 0.0
        %3831 = vmatprep.subr.mxu0 0.0
        %3832 = vmatpush1.msra.mxu0 0.0
        %3833 = vmatprep.subr.mxu0 0.0
        %3834 = vmatpush1.msra.mxu0 0.0
        %3835 = vmatprep.subr.mxu0 0.0
        %3836 = vmatpush1.msra.mxu0 0.0
        %3837 = vmatprep.subr.mxu0 0.0
        %3838 = vmatpush1.msra.mxu0 0.0
        %3839 = vmatprep.subr.mxu0 0.0
        %3840 = vmatpush1.msra.mxu0 0.0
        %3841 = vmatprep.subr.mxu0 0.0
        %3842 = vmatpush1.msra.mxu0 0.0
        %3843 = vmatprep.subr.mxu0 0.0
        %3844 = vmatpush1.msra.mxu0 0.0
        %3845 = vmatprep.subr.mxu0 0.0
        %3846 = vmatpush1.msra.mxu0 0.0
        %3847 = vmatprep.subr.mxu0 0.0
        %3848 = vmatpush1.msra.mxu0 0.0
        %3849 = vmatprep.subr.mxu0 0.0
        %3850 = vmatpush1.msra.mxu0 0.0
        %3851 = vmatprep.mubr.f32.mxu0 0.0
        %v3852 = vand.u32 %v3531, 4294901760
        %v3853 = vsub.f32 %v3531, %v3852
        %v3854 = vand.u32 %v3853, 4294901760
        %3855 = vmatmul.mubr.f32.gmra.mrb[0].mxu0 %v3854
        %v3856 = vpop.f32.mrb[0].mxu0
        %v3857 = vadd.f32 %v3780, %v3856
        %v3858 = vpop.f32.mrb[0].mxu0
        %3859 = vdwg.mxu0
        %3860 = vmatprep.subr.mxu0 0.0
        %v3861 = vand.u32 %v3206, 4294901760
        %v3862 = vsub.f32 %v3206, %v3861
        %v3863 = vand.u32 %v3862, 4294901760
        %3864 = vmatpush1.msra.mxu0 %v3863
        %3865 = vmatprep.subr.mxu0 0.0
        %v3866 = vand.u32 %v3310, 4294901760
        %v3867 = vsub.f32 %v3310, %v3866
        %v3868 = vand.u32 %v3867, 4294901760
        %3869 = vmatpush1.msra.mxu0 %v3868
        %3870 = vmatprep.subr.mxu0 0.0
        %v3871 = vand.u32 %v3414, 4294901760
        %v3872 = vsub.f32 %v3414, %v3871
        %v3873 = vand.u32 %v3872, 4294901760
        %3874 = vmatpush1.msra.mxu0 %v3873
        %3875 = vmatprep.subr.mxu0 0.0
        %v3876 = vand.u32 %v3518, 4294901760
        %v3877 = vsub.f32 %v3518, %v3876
        %v3878 = vand.u32 %v3877, 4294901760
        %3879 = vmatpush1.msra.mxu0 %v3878
        %3880 = vmatprep.subr.mxu0 0.0
        %3881 = vmatpush1.msra.mxu0 0.0
        %3882 = vmatprep.subr.mxu0 0.0
        %3883 = vmatpush1.msra.mxu0 0.0
        %3884 = vmatprep.subr.mxu0 0.0
        %3885 = vmatpush1.msra.mxu0 0.0
        %3886 = vmatprep.subr.mxu0 0.0
        %3887 = vmatpush1.msra.mxu0 0.0
        %3888 = vmatprep.subr.mxu0 0.0
        %3889 = vmatpush1.msra.mxu0 0.0
        %3890 = vmatprep.subr.mxu0 0.0
        %3891 = vmatpush1.msra.mxu0 0.0
        %3892 = vmatprep.subr.mxu0 0.0
        %3893 = vmatpush1.msra.mxu0 0.0
        %3894 = vmatprep.subr.mxu0 0.0
        %3895 = vmatpush1.msra.mxu0 0.0
        %3896 = vmatprep.subr.mxu0 0.0
        %3897 = vmatpush1.msra.mxu0 0.0
        %3898 = vmatprep.subr.mxu0 0.0
        %3899 = vmatpush1.msra.mxu0 0.0
        %3900 = vmatprep.subr.mxu0 0.0
        %3901 = vmatpush1.msra.mxu0 0.0
        %3902 = vmatprep.subr.mxu0 0.0
        %3903 = vmatpush1.msra.mxu0 0.0
        %3904 = vmatprep.subr.mxu0 0.0
        %3905 = vmatpush1.msra.mxu0 0.0
        %3906 = vmatprep.subr.mxu0 0.0
        %3907 = vmatpush1.msra.mxu0 0.0
        %3908 = vmatprep.subr.mxu0 0.0
        %3909 = vmatpush1.msra.mxu0 0.0
        %3910 = vmatprep.subr.mxu0 0.0
        %3911 = vmatpush1.msra.mxu0 0.0
        %3912 = vmatprep.subr.mxu0 0.0
        %3913 = vmatpush1.msra.mxu0 0.0
        %3914 = vmatprep.subr.mxu0 0.0
        %3915 = vmatpush1.msra.mxu0 0.0
        %3916 = vmatprep.subr.mxu0 0.0
        %3917 = vmatpush1.msra.mxu0 0.0
        %3918 = vmatprep.subr.mxu0 0.0
        %3919 = vmatpush1.msra.mxu0 0.0
        %3920 = vmatprep.subr.mxu0 0.0
        %3921 = vmatpush1.msra.mxu0 0.0
        %3922 = vmatprep.subr.mxu0 0.0
        %3923 = vmatpush1.msra.mxu0 0.0
        %3924 = vmatprep.subr.mxu0 0.0
        %3925 = vmatpush1.msra.mxu0 0.0
        %3926 = vmatprep.subr.mxu0 0.0
        %3927 = vmatpush1.msra.mxu0 0.0
        %3928 = vmatprep.subr.mxu0 0.0
        %3929 = vmatpush1.msra.mxu0 0.0
        %3930 = vmatprep.subr.mxu0 0.0
        %3931 = vmatpush1.msra.mxu0 0.0
        %3932 = vmatprep.subr.mxu0 0.0
        %3933 = vmatpush1.msra.mxu0 0.0
        %3934 = vmatprep.subr.mxu0 0.0
        %3935 = vmatpush1.msra.mxu0 0.0
        %3936 = vmatprep.mubr.f32.mxu0 0.0
        %v3937 = vand.u32 %v3531, 4294901760
        %3938 = vmatmul.mubr.f32.gmra.mrb[0].mxu0 %v3937
        %v3939 = vpop.f32.mrb[0].mxu0
        %v3940 = vadd.f32 %v3857, %v3939
        %v3941 = vpop.f32.mrb[0].mxu0
        %3942 = vdwg.mxu0
        %3943 = vmatprep.subr.mxu0 0.0
        %v3944 = vand.u32 %v3206, 4294901760
        %3945 = vmatpush1.msra.mxu0 %v3944
        %3946 = vmatprep.subr.mxu0 0.0
        %v3947 = vand.u32 %v3310, 4294901760
        %3948 = vmatpush1.msra.mxu0 %v3947
        %3949 = vmatprep.subr.mxu0 0.0
        %v3950 = vand.u32 %v3414, 4294901760
        %3951 = vmatpush1.msra.mxu0 %v3950
        %3952 = vmatprep.subr.mxu0 0.0
        %v3953 = vand.u32 %v3518, 4294901760
        %3954 = vmatpush1.msra.mxu0 %v3953
        %3955 = vmatprep.subr.mxu0 0.0
        %3956 = vmatpush1.msra.mxu0 0.0
        %3957 = vmatprep.subr.mxu0 0.0
        %3958 = vmatpush1.msra.mxu0 0.0
        %3959 = vmatprep.subr.mxu0 0.0
        %3960 = vmatpush1.msra.mxu0 0.0
        %3961 = vmatprep.subr.mxu0 0.0
        %3962 = vmatpush1.msra.mxu0 0.0
        %3963 = vmatprep.subr.mxu0 0.0
        %3964 = vmatpush1.msra.mxu0 0.0
        %3965 = vmatprep.subr.mxu0 0.0
        %3966 = vmatpush1.msra.mxu0 0.0
        %3967 = vmatprep.subr.mxu0 0.0
        %3968 = vmatpush1.msra.mxu0 0.0
        %3969 = vmatprep.subr.mxu0 0.0
        %3970 = vmatpush1.msra.mxu0 0.0
        %3971 = vmatprep.subr.mxu0 0.0
        %3972 = vmatpush1.msra.mxu0 0.0
        %3973 = vmatprep.subr.mxu0 0.0
        %3974 = vmatpush1.msra.mxu0 0.0
        %3975 = vmatprep.subr.mxu0 0.0
        %3976 = vmatpush1.msra.mxu0 0.0
        %3977 = vmatprep.subr.mxu0 0.0
        %3978 = vmatpush1.msra.mxu0 0.0
        %3979 = vmatprep.subr.mxu0 0.0
        %3980 = vmatpush1.msra.mxu0 0.0
        %3981 = vmatprep.subr.mxu0 0.0
        %3982 = vmatpush1.msra.mxu0 0.0
        %3983 = vmatprep.subr.mxu0 0.0
        %3984 = vmatpush1.msra.mxu0 0.0
        %3985 = vmatprep.subr.mxu0 0.0
        %3986 = vmatpush1.msra.mxu0 0.0
        %3987 = vmatprep.subr.mxu0 0.0
        %3988 = vmatpush1.msra.mxu0 0.0
        %3989 = vmatprep.subr.mxu0 0.0
        %3990 = vmatpush1.msra.mxu0 0.0
        %3991 = vmatprep.subr.mxu0 0.0
        %3992 = vmatpush1.msra.mxu0 0.0
        %3993 = vmatprep.subr.mxu0 0.0
        %3994 = vmatpush1.msra.mxu0 0.0
        %3995 = vmatprep.subr.mxu0 0.0
        %3996 = vmatpush1.msra.mxu0 0.0
        %3997 = vmatprep.subr.mxu0 0.0
        %3998 = vmatpush1.msra.mxu0 0.0
        %3999 = vmatprep.subr.mxu0 0.0
        %4000 = vmatpush1.msra.mxu0 0.0
        %4001 = vmatprep.subr.mxu0 0.0
        %4002 = vmatpush1.msra.mxu0 0.0
        %4003 = vmatprep.subr.mxu0 0.0
        %4004 = vmatpush1.msra.mxu0 0.0
        %4005 = vmatprep.subr.mxu0 0.0
        %4006 = vmatpush1.msra.mxu0 0.0
        %4007 = vmatprep.subr.mxu0 0.0
        %4008 = vmatpush1.msra.mxu0 0.0
        %4009 = vmatprep.subr.mxu0 0.0
        %4010 = vmatpush1.msra.mxu0 0.0
        %4011 = vmatprep.mubr.f32.mxu0 0.0
        %v4012 = vand.u32 %v3531, 4294901760
        %4013 = vmatmul.mubr.f32.gmra.mrb[0].mxu0 %v4012
        %v4014 = vpop.f32.mrb[0].mxu0
        %v4015 = vadd.f32 %v3940, %v4014
        %v4016 = vpop.f32.mrb[0].mxu0
        %4017 = vdwg.mxu0
        %4018 = vst [vmem:[%s324] sm:$0x1] %v4015
        %s4019 = sand.u32 %s227, 1
        %s4020 = scalar_lea.sflag [#allocation4], %s4019
        %s4021 = sand.u32 %s227, 1
        %s4022 = scalar_lea.vmem [#allocation3], %s4021
        // Predicated region
        $region57: #{tpu_custom_call.1} parent=55 // pred_check
          %p4023 = pneg %p237
        $region58: #{tpu_custom_call.1} parent=55 // pred_check_branch
          %4025 = sbr.rel (%p4023) target = $region60
        $region59: #{tpu_custom_call.1} parent=55 // pred_region
          %s4027 = ssub.s32 16, 16
          %4028 = vsyncadd %s4020, %s4027
          %s4029 = smul.addr %s25, 16
          %s4030 = scalar_lea.hbm %s9, %s4029
          %s4032 = sshll.u32 %s4022, 4
          %s4033 = int_to_ptr.vmem [resolvable:$true] %s4032
          %4035 = dma.vmem_to_hbm [thread:$0]  %s4033, 16, %s4030, %s4020
        $region60: #{tpu_custom_call.1} parent=55 // pred_fallthru
          _
      $region56: #{tpu_custom_call.1} parent=5 // pred_fallthru
        _
      %p4036 = scmp.le.s32.totalorder 2, %s20
      // Predicated region
      $region61: #{tpu_custom_call.1} parent=5 // pred_check
        %p4037 = pneg %p4036
      $region62: #{tpu_custom_call.1} parent=5 // pred_check_branch
        %4039 = sbr.rel (%p4037) target = $region64
      $region63: #{tpu_custom_call.1} parent=5 // pred_region
        %s4040 = ssub.s32 %s20, 2
        // Predicated region
        $region65: #{tpu_custom_call.1} parent=63 // pred_check
          %p4041 = pneg %p243
        $region66: #{tpu_custom_call.1} parent=63 // pred_check_branch
          %4043 = sbr.rel (%p4041) target = $region68
        $region67: #{tpu_custom_call.1} parent=63 // pred_region
          %s4044 = sand.u32 %s228, 1
          %s4045 = scalar_lea.sflag [#allocation4], %s4044
          %s4046 = sand.u32 %s228, 1
          %s4047 = scalar_lea.vmem [#allocation3], %s4046
          %4048 = dma.done %s4045, 16
        $region68: #{tpu_custom_call.1} parent=63 // pred_fallthru
          _
      $region64: #{tpu_custom_call.1} parent=5 // pred_fallthru
        _
    $region6: #{tpu_custom_call.1} parent=1 // loop_footer
      %s24 = sadd.s32 1, %s20
    $region7: #{tpu_custom_call.1} parent=1 // loop_footer_branch
      %19 = sbr.rel target = $region3
    $region8: #{tpu_custom_call.1} parent=1 // loop_exit
      _
    %4049 = vsyncpa [#allocation4], 1
    %s4050 = scalar_lea.sflag [#allocation4], 1
    %4051 = vsyncpa %s4050, 1

</llo_original>
